<compile_context>
chip_gen: v7x
topology: tpu7x:2x2x1
jax: 0.10.0
libtpu: 0.0.40
codegen_flags: <defaults>
</compile_context>

<pallas_src>
from functools import partial

import jax
import jax.numpy as jnp
from jax.experimental import pallas as pl
from jax.experimental.pallas import tpu as pltpu


def _lem_kernel(patch_ref, xres_ref, w_ref, b_ref, out_ref, enh_ref, *, ph, pw, emb):
    """One grid step = `tile` (batch, channel, patch) slices.

    patch_ref : (tile, ph*pw)        slice-major patch pixels
    xres_ref  : (tile, ph*pw)        residual (literal scrambled view of x)
    w_ref     : (ph*(pw+2E), ph*pw)  block-diagonal fused [g | theta | f]
    b_ref     : (ph*(pw+2E), 1)      fused bias
    out_ref   : (tile, ph*pw)
    enh_ref   : (ph*pw, tile)        VMEM scratch for the lane-dense result
    """
    # Put the slice index on the 128-lane axis for the whole compute phase.
    pt_ld = patch_ref[...].T                                     # (ph*pw, tile)

    # Fused projection: ONE MXU matmul yields, already lane-dense and stacked,
    #   rows [0, ph*pw)            : scale * g   (p-major, k-minor)
    #   rows [ph*pw, ph*pw + ph*E) : theta       (p-major, e-minor)
    #   rows [ph*pw + ph*E, ...)   : f           (q-major, e-minor)
    proj = jnp.dot(w_ref[...], pt_ld, preferred_element_type=jnp.float32)
    proj = proj + b_ref[...]

    th_off = ph * pw
    f_off = th_off + ph * emb
    t = pt_ld.shape[-1]
    f3 = proj[f_off:f_off + ph * emb, :].reshape(ph, emb, t)     # (q, E, tile)

    for p in range(ph):                                          # static unroll
        th_p = proj[th_off + p * emb:th_off + (p + 1) * emb, :]  # (E, tile)
        # s[q, t] = sum_e theta[p, e, t] * f[q, e, t] : lane-dense VPU
        # multiplies + sublane reduction, no per-slice MXU matmuls.
        s_p = jnp.sum(th_p[None, :, :] * f3, axis=1)             # (ph, tile)
        m = jnp.max(s_p, axis=0, keepdims=True)
        e = jnp.exp(s_p - m)
        inv = 1.0 / jnp.sum(e, axis=0, keepdims=True)            # recip of row sums
        w_p = e * inv                                            # softmax over q
        # scale*(weights * g); g block is at sublane offset 0 (review item 4).
        enh_ref[p * pw:(p + 1) * pw, :] = w_p * proj[p * pw:(p + 1) * pw, :]

    # Back to slice-major once; residual add; single 64-lane-wide store.
    out_ref[...] = enh_ref[...].T + xres_ref[...]


def _pick_tile(total, max_tile):
    """Largest step size that divides `total` (no pad / no output slice)."""
    if total <= max_tile:
        return total
    for d in range(max_tile - max_tile % 8, 7, -8):
        if total % d == 0:
            return d
    return 0


def local_enhancement_forward(x, params, num_patches, *, max_tile=1024):
    B, C, H, W = x.shape
    P = num_patches
    ph, pw = H // P, W // P
    N = P * P
    E, Cin = params["w_theta"].shape
    PP = ph * pw

    assert pw == Cin, "nn.Linear(in_channels, ...) acts on the patch-width axis"
    assert ph == pw, "element-wise weights * g requires square patches"

    total = B * C * N

    # Patch gather, slice order (b, c, n) with n = pi*P + pj.
    # TODO(synk): this is the one remaining wrapper-side XLA transpose pass.
    patches = (x.reshape(B, C, P, ph, P, pw)
                .transpose(0, 1, 2, 4, 3, 5)
                .reshape(total, PP)).astype(jnp.float32)
    # Residual companion of the literal `.view(B, -1, H, W)`: a raw reshape.
    x_res = x.reshape(total, PP).astype(jnp.float32)

    # Block-diagonal fused projection weights, rows = [ g | theta | f ],
    # `scale` folded into the g block.
    scale = params["scale"].astype(jnp.float32)[0]
    eye = jnp.eye(ph, dtype=jnp.float32)
    w_big = jnp.concatenate([
        jnp.kron(eye, scale * params["w_g"].astype(jnp.float32)),
        jnp.kron(eye, params["w_theta"].astype(jnp.float32)),
        jnp.kron(eye, params["w_f"].astype(jnp.float32)),
    ], axis=0)                                                   # (ph*(Cin+2E), PP)
    b_big = jnp.concatenate([
        jnp.tile(scale * params["b_g"].astype(jnp.float32), ph),
        jnp.tile(params["b_theta"].astype(jnp.float32), ph),
        jnp.tile(params["b_f"].astype(jnp.float32), ph),
    ])[:, None]                                                  # (ph*(Cin+2E), 1)
    frows = w_big.shape[0]

    tile = _pick_tile(total, max_tile)
    if tile:
        total_pad = total
    else:
        # Fallback only when no multiple-of-8 divisor <= max_tile exists.
        tile = max(8, max_tile - max_tile % 8)
        total_pad = -(-total // tile) * tile
        pad = total_pad - total
        patches = jnp.pad(patches, ((0, pad), (0, 0)))
        x_res = jnp.pad(x_res, ((0, pad), (0, 0)))

    slab = pl.BlockSpec((tile, PP), lambda i: (i, 0))
    out = pl.pallas_call(
        partial(_lem_kernel, ph=ph, pw=pw, emb=E),
        out_shape=jax.ShapeDtypeStruct((total_pad, PP), jnp.float32),
        grid=(total_pad // tile,),
        in_specs=[
            slab,                                            # patches
            slab,                                            # residual view
            pl.BlockSpec((frows, PP), lambda i: (0, 0)),     # fused block-diag W
            pl.BlockSpec((frows, 1), lambda i: (0, 0)),      # fused bias
        ],
        out_specs=slab,
        scratch_shapes=[pltpu.VMEM((PP, tile), jnp.float32)],
        # TODO(synk): use pltpu.CORE_PARALLEL here for genuine 2-TC sharding on v7x.
        compiler_params=pltpu.CompilerParams(
            dimension_semantics=("parallel",),
            vmem_limit_bytes=32 * 1024 * 1024),
    )(patches, x_res, w_big, b_big)

    if total_pad != total:
        out = out[:total]
    # (b, c, n) slice order -> the final result is just a raw reshape.
    return out.reshape(B, C, H, W)


def _reference(x, params, num_patches):
    """Pure-JAX reference of the same (fixed) semantics, for validation."""
    B, C, H, W = x.shape
    P = num_patches
    ph, pw = H // P, W // P
    N = P * P
    patches = (x.reshape(B, C, P, ph, P, pw)
                .transpose(0, 2, 4, 1, 3, 5)
                .reshape(B, N, C, ph, pw))
    theta = patches @ params["w_theta"].T + params["b_theta"]
    f = patches @ params["w_f"].T + params["b_f"]
    g = patches @ params["w_g"].T + params["b_g"]
    s = jnp.einsum("bncpe,bncqe->bncpq", theta, f)
    w = jax.nn.softmax(s, axis=-1)
    enhanced = w * g
    enhanced = enhanced.transpose(0, 2, 1, 3, 4).reshape(B, C, H, W)
    return params["scale"][0] * enhanced + x


if __name__ == "__main__":
    # Small shapes consistent with the module's constraints:
    #   W // num_patches == in_channels, square patches.
    B, C, H, W = 2, 4, 16, 16
    num_patches = 2
    in_channels = W // num_patches      # 8  (Linear in_features)
    embedding_dim = 32

    key = jax.random.PRNGKey(0)
    ks = jax.random.split(key, 7)
    x = jax.random.normal(ks[0], (B, C, H, W), jnp.float32)

    params = {
        "w_theta": 0.1 * jax.random.normal(ks[1], (embedding_dim, in_channels), jnp.float32),
        "b_theta": 0.1 * jax.random.normal(ks[2], (embedding_dim,), jnp.float32),
        "w_f": 0.1 * jax.random.normal(ks[3], (embedding_dim, in_channels), jnp.float32),
        "b_f": 0.1 * jax.random.normal(ks[4], (embedding_dim,), jnp.float32),
        "w_g": 0.1 * jax.random.normal(ks[5], (in_channels, in_channels), jnp.float32),
        "b_g": 0.1 * jax.random.normal(ks[6], (in_channels,), jnp.float32),
        "scale": jnp.ones((1,), jnp.float32),   # nn.Parameter(torch.ones(1))
    }

    out = local_enhancement_forward(x, params, num_patches)
    out = jax.block_until_ready(out)

    ref = _reference(x, params, num_patches)
    assert out.shape == (B, C, H, W)
    assert jnp.allclose(out, ref, atol=1e-4, rtol=1e-4), "Pallas kernel mismatch vs reference"
    print("KERNEL_OK")
</pallas_src>

<mosaic_0001>
module attributes {stable_mosaic.version = 11 : i64} {
  func.func @_lem_kernel(%arg0: i32, %arg1: memref<32x64xf32, #tpu.memory_space<vmem>>, %arg2: memref<32x64xf32, #tpu.memory_space<vmem>>, %arg3: memref<576x64xf32, #tpu.memory_space<vmem>>, %arg4: memref<576x1xf32, #tpu.memory_space<vmem>>, %arg5: memref<32x64xf32, #tpu.memory_space<vmem>>, %arg6: memref<64x32xf32, #tpu.memory_space<vmem>>) attributes {dimension_semantics = [#tpu.dimension_semantics<parallel>], iteration_bounds = array<i64: 1>, scalar_prefetch = 0 : i64, scratch_operands = 1 : i64, tpu.core_type = #tpu.core_type<tc>, window_params = [{transform_indices = @transform_0, window_bounds = array<i64: 32, 64>}, {transform_indices = @transform_1, window_bounds = array<i64: 32, 64>}, {pipeline_mode = #tpu.pipeline_mode<synchronous>, transform_indices = @transform_2, window_bounds = array<i64: 576, 64>}, {pipeline_mode = #tpu.pipeline_mode<synchronous>, transform_indices = @transform_3, window_bounds = array<i64: 576, 1>}, {transform_indices = @transform_4, window_bounds = array<i64: 32, 64>}]} {
    %c0 = arith.constant 0 : index
    %c0_0 = arith.constant 0 : index
    %0 = vector.load %arg1[%c0, %c0_0] : memref<32x64xf32, #tpu.memory_space<vmem>>, vector<32x64xf32>
    %1 = tpu.transpose %0, [1, 0] : vector<32x64xf32> -> vector<64x32xf32>
    %c0_1 = arith.constant 0 : index
    %c0_2 = arith.constant 0 : index
    %2 = vector.load %arg3[%c0_1, %c0_2] : memref<576x64xf32, #tpu.memory_space<vmem>>, vector<576x64xf32>
    %cst = arith.constant dense<0.000000e+00> : vector<576x32xf32>
    %3 = tpu.matmul %2, %1, %cst {dimension_numbers = #tpu.dot_dimension_numbers<[1], [0], [0], [1], [0, 0, 1, 1], [], []>} : vector<576x64xf32>, vector<64x32xf32>, vector<576x32xf32> -> vector<576x32xf32>
    %c0_3 = arith.constant 0 : index
    %c0_4 = arith.constant 0 : index
    %4 = vector.load %arg4[%c0_3, %c0_4] : memref<576x1xf32, #tpu.memory_space<vmem>>, vector<576x1xf32>
    %5 = vector.broadcast %4 : vector<576x1xf32> to vector<576x32xf32>
    %6 = arith.addf %3, %5 : vector<576x32xf32>
    %7 = vector.extract_strided_slice %6 {offsets = [320, 0], sizes = [256, 32], strides = [1, 1]} : vector<576x32xf32> to vector<256x32xf32>
    %8 = vector.shape_cast %7 : vector<256x32xf32> to vector<8x32x32xf32>
    %9 = vector.extract_strided_slice %6 {offsets = [64, 0], sizes = [32, 32], strides = [1, 1]} : vector<576x32xf32> to vector<32x32xf32>
    %10 = vector.shape_cast %9 : vector<32x32xf32> to vector<1x32x32xf32>
    %11 = vector.broadcast %10 : vector<1x32x32xf32> to vector<8x32x32xf32>
    %12 = arith.mulf %11, %8 : vector<8x32x32xf32>
    %cst_5 = arith.constant dense<0.000000e+00> : vector<8x32xf32>
    %13 = vector.multi_reduction <add>, %12, %cst_5 [1] : vector<8x32x32xf32> to vector<8x32xf32>
    %cst_6 = arith.constant dense<0xFF800000> : vector<32xf32>
    %14 = vector.multi_reduction <maximumf>, %13, %cst_6 [0] : vector<8x32xf32> to vector<32xf32>
    %15 = vector.shape_cast %14 : vector<32xf32> to vector<1x32xf32>
    %16 = vector.broadcast %15 : vector<1x32xf32> to vector<8x32xf32>
    %17 = arith.subf %13, %16 : vector<8x32xf32>
    %18 = math.exp %17 : vector<8x32xf32>
    %cst_7 = arith.constant dense<0.000000e+00> : vector<32xf32>
    %19 = vector.multi_reduction <add>, %18, %cst_7 [0] : vector<8x32xf32> to vector<32xf32>
    %20 = vector.shape_cast %19 : vector<32xf32> to vector<1x32xf32>
    %cst_8 = arith.constant 1.000000e+00 : f32
    %21 = vector.broadcast %cst_8 : f32 to vector<1x32xf32>
    %22 = arith.divf %21, %20 : vector<1x32xf32>
    %23 = vector.broadcast %22 : vector<1x32xf32> to vector<8x32xf32>
    %24 = arith.mulf %18, %23 : vector<8x32xf32>
    %25 = vector.extract_strided_slice %6 {offsets = [0, 0], sizes = [8, 32], strides = [1, 1]} : vector<576x32xf32> to vector<8x32xf32>
    %26 = arith.mulf %24, %25 : vector<8x32xf32>
    %c0_9 = arith.constant 0 : index
    %c0_10 = arith.constant 0 : index
    %27 = vector.load %arg6[%c0_9, %c0_10] : memref<64x32xf32, #tpu.memory_space<vmem>>, vector<8x32xf32>
    tpu.vector_store %arg6[%c0_9, %c0_10], %26 {strides = array<i32>} : memref<64x32xf32, #tpu.memory_space<vmem>>, vector<8x32xf32>,
    %28 = vector.extract_strided_slice %6 {offsets = [96, 0], sizes = [32, 32], strides = [1, 1]} : vector<576x32xf32> to vector<32x32xf32>
    %29 = vector.shape_cast %28 : vector<32x32xf32> to vector<1x32x32xf32>
    %30 = vector.broadcast %29 : vector<1x32x32xf32> to vector<8x32x32xf32>
    %31 = arith.mulf %30, %8 : vector<8x32x32xf32>
    %cst_11 = arith.constant dense<0.000000e+00> : vector<8x32xf32>
    %32 = vector.multi_reduction <add>, %31, %cst_11 [1] : vector<8x32x32xf32> to vector<8x32xf32>
    %cst_12 = arith.constant dense<0xFF800000> : vector<32xf32>
    %33 = vector.multi_reduction <maximumf>, %32, %cst_12 [0] : vector<8x32xf32> to vector<32xf32>
    %34 = vector.shape_cast %33 : vector<32xf32> to vector<1x32xf32>
    %35 = vector.broadcast %34 : vector<1x32xf32> to vector<8x32xf32>
    %36 = arith.subf %32, %35 : vector<8x32xf32>
    %37 = math.exp %36 : vector<8x32xf32>
    %cst_13 = arith.constant dense<0.000000e+00> : vector<32xf32>
    %38 = vector.multi_reduction <add>, %37, %cst_13 [0] : vector<8x32xf32> to vector<32xf32>
    %39 = vector.shape_cast %38 : vector<32xf32> to vector<1x32xf32>
    %cst_14 = arith.constant 1.000000e+00 : f32
    %40 = vector.broadcast %cst_14 : f32 to vector<1x32xf32>
    %41 = arith.divf %40, %39 : vector<1x32xf32>
    %42 = vector.broadcast %41 : vector<1x32xf32> to vector<8x32xf32>
    %43 = arith.mulf %37, %42 : vector<8x32xf32>
    %44 = vector.extract_strided_slice %6 {offsets = [8, 0], sizes = [8, 32], strides = [1, 1]} : vector<576x32xf32> to vector<8x32xf32>
    %45 = arith.mulf %43, %44 : vector<8x32xf32>
    %c8 = arith.constant 8 : index
    %c0_15 = arith.constant 0 : index
    %46 = vector.load %arg6[%c8, %c0_15] : memref<64x32xf32, #tpu.memory_space<vmem>>, vector<8x32xf32>
    tpu.vector_store %arg6[%c8, %c0_15], %45 {strides = array<i32>} : memref<64x32xf32, #tpu.memory_space<vmem>>, vector<8x32xf32>,
    %47 = vector.extract_strided_slice %6 {offsets = [128, 0], sizes = [32, 32], strides = [1, 1]} : vector<576x32xf32> to vector<32x32xf32>
    %48 = vector.shape_cast %47 : vector<32x32xf32> to vector<1x32x32xf32>
    %49 = vector.broadcast %48 : vector<1x32x32xf32> to vector<8x32x32xf32>
    %50 = arith.mulf %49, %8 : vector<8x32x32xf32>
    %cst_16 = arith.constant dense<0.000000e+00> : vector<8x32xf32>
    %51 = vector.multi_reduction <add>, %50, %cst_16 [1] : vector<8x32x32xf32> to vector<8x32xf32>
    %cst_17 = arith.constant dense<0xFF800000> : vector<32xf32>
    %52 = vector.multi_reduction <maximumf>, %51, %cst_17 [0] : vector<8x32xf32> to vector<32xf32>
    %53 = vector.shape_cast %52 : vector<32xf32> to vector<1x32xf32>
    %54 = vector.broadcast %53 : vector<1x32xf32> to vector<8x32xf32>
    %55 = arith.subf %51, %54 : vector<8x32xf32>
    %56 = math.exp %55 : vector<8x32xf32>
    %cst_18 = arith.constant dense<0.000000e+00> : vector<32xf32>
    %57 = vector.multi_reduction <add>, %56, %cst_18 [0] : vector<8x32xf32> to vector<32xf32>
    %58 = vector.shape_cast %57 : vector<32xf32> to vector<1x32xf32>
    %cst_19 = arith.constant 1.000000e+00 : f32
    %59 = vector.broadcast %cst_19 : f32 to vector<1x32xf32>
    %60 = arith.divf %59, %58 : vector<1x32xf32>
    %61 = vector.broadcast %60 : vector<1x32xf32> to vector<8x32xf32>
    %62 = arith.mulf %56, %61 : vector<8x32xf32>
    %63 = vector.extract_strided_slice %6 {offsets = [16, 0], sizes = [8, 32], strides = [1, 1]} : vector<576x32xf32> to vector<8x32xf32>
    %64 = arith.mulf %62, %63 : vector<8x32xf32>
    %c16 = arith.constant 16 : index
    %c0_20 = arith.constant 0 : index
    %65 = vector.load %arg6[%c16, %c0_20] : memref<64x32xf32, #tpu.memory_space<vmem>>, vector<8x32xf32>
    tpu.vector_store %arg6[%c16, %c0_20], %64 {strides = array<i32>} : memref<64x32xf32, #tpu.memory_space<vmem>>, vector<8x32xf32>,
    %66 = vector.extract_strided_slice %6 {offsets = [160, 0], sizes = [32, 32], strides = [1, 1]} : vector<576x32xf32> to vector<32x32xf32>
    %67 = vector.shape_cast %66 : vector<32x32xf32> to vector<1x32x32xf32>
    %68 = vector.broadcast %67 : vector<1x32x32xf32> to vector<8x32x32xf32>
    %69 = arith.mulf %68, %8 : vector<8x32x32xf32>
    %cst_21 = arith.constant dense<0.000000e+00> : vector<8x32xf32>
    %70 = vector.multi_reduction <add>, %69, %cst_21 [1] : vector<8x32x32xf32> to vector<8x32xf32>
    %cst_22 = arith.constant dense<0xFF800000> : vector<32xf32>
    %71 = vector.multi_reduction <maximumf>, %70, %cst_22 [0] : vector<8x32xf32> to vector<32xf32>
    %72 = vector.shape_cast %71 : vector<32xf32> to vector<1x32xf32>
    %73 = vector.broadcast %72 : vector<1x32xf32> to vector<8x32xf32>
    %74 = arith.subf %70, %73 : vector<8x32xf32>
    %75 = math.exp %74 : vector<8x32xf32>
    %cst_23 = arith.constant dense<0.000000e+00> : vector<32xf32>
    %76 = vector.multi_reduction <add>, %75, %cst_23 [0] : vector<8x32xf32> to vector<32xf32>
    %77 = vector.shape_cast %76 : vector<32xf32> to vector<1x32xf32>
    %cst_24 = arith.constant 1.000000e+00 : f32
    %78 = vector.broadcast %cst_24 : f32 to vector<1x32xf32>
    %79 = arith.divf %78, %77 : vector<1x32xf32>
    %80 = vector.broadcast %79 : vector<1x32xf32> to vector<8x32xf32>
    %81 = arith.mulf %75, %80 : vector<8x32xf32>
    %82 = vector.extract_strided_slice %6 {offsets = [24, 0], sizes = [8, 32], strides = [1, 1]} : vector<576x32xf32> to vector<8x32xf32>
    %83 = arith.mulf %81, %82 : vector<8x32xf32>
    %c24 = arith.constant 24 : index
    %c0_25 = arith.constant 0 : index
    %84 = vector.load %arg6[%c24, %c0_25] : memref<64x32xf32, #tpu.memory_space<vmem>>, vector<8x32xf32>
    tpu.vector_store %arg6[%c24, %c0_25], %83 {strides = array<i32>} : memref<64x32xf32, #tpu.memory_space<vmem>>, vector<8x32xf32>,
    %85 = vector.extract_strided_slice %6 {offsets = [192, 0], sizes = [32, 32], strides = [1, 1]} : vector<576x32xf32> to vector<32x32xf32>
    %86 = vector.shape_cast %85 : vector<32x32xf32> to vector<1x32x32xf32>
    %87 = vector.broadcast %86 : vector<1x32x32xf32> to vector<8x32x32xf32>
    %88 = arith.mulf %87, %8 : vector<8x32x32xf32>
    %cst_26 = arith.constant dense<0.000000e+00> : vector<8x32xf32>
    %89 = vector.multi_reduction <add>, %88, %cst_26 [1] : vector<8x32x32xf32> to vector<8x32xf32>
    %cst_27 = arith.constant dense<0xFF800000> : vector<32xf32>
    %90 = vector.multi_reduction <maximumf>, %89, %cst_27 [0] : vector<8x32xf32> to vector<32xf32>
    %91 = vector.shape_cast %90 : vector<32xf32> to vector<1x32xf32>
    %92 = vector.broadcast %91 : vector<1x32xf32> to vector<8x32xf32>
    %93 = arith.subf %89, %92 : vector<8x32xf32>
    %94 = math.exp %93 : vector<8x32xf32>
    %cst_28 = arith.constant dense<0.000000e+00> : vector<32xf32>
    %95 = vector.multi_reduction <add>, %94, %cst_28 [0] : vector<8x32xf32> to vector<32xf32>
    %96 = vector.shape_cast %95 : vector<32xf32> to vector<1x32xf32>
    %cst_29 = arith.constant 1.000000e+00 : f32
    %97 = vector.broadcast %cst_29 : f32 to vector<1x32xf32>
    %98 = arith.divf %97, %96 : vector<1x32xf32>
    %99 = vector.broadcast %98 : vector<1x32xf32> to vector<8x32xf32>
    %100 = arith.mulf %94, %99 : vector<8x32xf32>
    %101 = vector.extract_strided_slice %6 {offsets = [32, 0], sizes = [8, 32], strides = [1, 1]} : vector<576x32xf32> to vector<8x32xf32>
    %102 = arith.mulf %100, %101 : vector<8x32xf32>
    %c32 = arith.constant 32 : index
    %c0_30 = arith.constant 0 : index
    %103 = vector.load %arg6[%c32, %c0_30] : memref<64x32xf32, #tpu.memory_space<vmem>>, vector<8x32xf32>
    tpu.vector_store %arg6[%c32, %c0_30], %102 {strides = array<i32>} : memref<64x32xf32, #tpu.memory_space<vmem>>, vector<8x32xf32>,
    %104 = vector.extract_strided_slice %6 {offsets = [224, 0], sizes = [32, 32], strides = [1, 1]} : vector<576x32xf32> to vector<32x32xf32>
    %105 = vector.shape_cast %104 : vector<32x32xf32> to vector<1x32x32xf32>
    %106 = vector.broadcast %105 : vector<1x32x32xf32> to vector<8x32x32xf32>
    %107 = arith.mulf %106, %8 : vector<8x32x32xf32>
    %cst_31 = arith.constant dense<0.000000e+00> : vector<8x32xf32>
    %108 = vector.multi_reduction <add>, %107, %cst_31 [1] : vector<8x32x32xf32> to vector<8x32xf32>
    %cst_32 = arith.constant dense<0xFF800000> : vector<32xf32>
    %109 = vector.multi_reduction <maximumf>, %108, %cst_32 [0] : vector<8x32xf32> to vector<32xf32>
    %110 = vector.shape_cast %109 : vector<32xf32> to vector<1x32xf32>
    %111 = vector.broadcast %110 : vector<1x32xf32> to vector<8x32xf32>
    %112 = arith.subf %108, %111 : vector<8x32xf32>
    %113 = math.exp %112 : vector<8x32xf32>
    %cst_33 = arith.constant dense<0.000000e+00> : vector<32xf32>
    %114 = vector.multi_reduction <add>, %113, %cst_33 [0] : vector<8x32xf32> to vector<32xf32>
    %115 = vector.shape_cast %114 : vector<32xf32> to vector<1x32xf32>
    %cst_34 = arith.constant 1.000000e+00 : f32
    %116 = vector.broadcast %cst_34 : f32 to vector<1x32xf32>
    %117 = arith.divf %116, %115 : vector<1x32xf32>
    %118 = vector.broadcast %117 : vector<1x32xf32> to vector<8x32xf32>
    %119 = arith.mulf %113, %118 : vector<8x32xf32>
    %120 = vector.extract_strided_slice %6 {offsets = [40, 0], sizes = [8, 32], strides = [1, 1]} : vector<576x32xf32> to vector<8x32xf32>
    %121 = arith.mulf %119, %120 : vector<8x32xf32>
    %c40 = arith.constant 40 : index
    %c0_35 = arith.constant 0 : index
    %122 = vector.load %arg6[%c40, %c0_35] : memref<64x32xf32, #tpu.memory_space<vmem>>, vector<8x32xf32>
    tpu.vector_store %arg6[%c40, %c0_35], %121 {strides = array<i32>} : memref<64x32xf32, #tpu.memory_space<vmem>>, vector<8x32xf32>,
    %123 = vector.extract_strided_slice %6 {offsets = [256, 0], sizes = [32, 32], strides = [1, 1]} : vector<576x32xf32> to vector<32x32xf32>
    %124 = vector.shape_cast %123 : vector<32x32xf32> to vector<1x32x32xf32>
    %125 = vector.broadcast %124 : vector<1x32x32xf32> to vector<8x32x32xf32>
    %126 = arith.mulf %125, %8 : vector<8x32x32xf32>
    %cst_36 = arith.constant dense<0.000000e+00> : vector<8x32xf32>
    %127 = vector.multi_reduction <add>, %126, %cst_36 [1] : vector<8x32x32xf32> to vector<8x32xf32>
    %cst_37 = arith.constant dense<0xFF800000> : vector<32xf32>
    %128 = vector.multi_reduction <maximumf>, %127, %cst_37 [0] : vector<8x32xf32> to vector<32xf32>
    %129 = vector.shape_cast %128 : vector<32xf32> to vector<1x32xf32>
    %130 = vector.broadcast %129 : vector<1x32xf32> to vector<8x32xf32>
    %131 = arith.subf %127, %130 : vector<8x32xf32>
    %132 = math.exp %131 : vector<8x32xf32>
    %cst_38 = arith.constant dense<0.000000e+00> : vector<32xf32>
    %133 = vector.multi_reduction <add>, %132, %cst_38 [0] : vector<8x32xf32> to vector<32xf32>
    %134 = vector.shape_cast %133 : vector<32xf32> to vector<1x32xf32>
    %cst_39 = arith.constant 1.000000e+00 : f32
    %135 = vector.broadcast %cst_39 : f32 to vector<1x32xf32>
    %136 = arith.divf %135, %134 : vector<1x32xf32>
    %137 = vector.broadcast %136 : vector<1x32xf32> to vector<8x32xf32>
    %138 = arith.mulf %132, %137 : vector<8x32xf32>
    %139 = vector.extract_strided_slice %6 {offsets = [48, 0], sizes = [8, 32], strides = [1, 1]} : vector<576x32xf32> to vector<8x32xf32>
    %140 = arith.mulf %138, %139 : vector<8x32xf32>
    %c48 = arith.constant 48 : index
    %c0_40 = arith.constant 0 : index
    %141 = vector.load %arg6[%c48, %c0_40] : memref<64x32xf32, #tpu.memory_space<vmem>>, vector<8x32xf32>
    tpu.vector_store %arg6[%c48, %c0_40], %140 {strides = array<i32>} : memref<64x32xf32, #tpu.memory_space<vmem>>, vector<8x32xf32>,
    %142 = vector.extract_strided_slice %6 {offsets = [288, 0], sizes = [32, 32], strides = [1, 1]} : vector<576x32xf32> to vector<32x32xf32>
    %143 = vector.shape_cast %142 : vector<32x32xf32> to vector<1x32x32xf32>
    %144 = vector.broadcast %143 : vector<1x32x32xf32> to vector<8x32x32xf32>
    %145 = arith.mulf %144, %8 : vector<8x32x32xf32>
    %cst_41 = arith.constant dense<0.000000e+00> : vector<8x32xf32>
    %146 = vector.multi_reduction <add>, %145, %cst_41 [1] : vector<8x32x32xf32> to vector<8x32xf32>
    %cst_42 = arith.constant dense<0xFF800000> : vector<32xf32>
    %147 = vector.multi_reduction <maximumf>, %146, %cst_42 [0] : vector<8x32xf32> to vector<32xf32>
    %148 = vector.shape_cast %147 : vector<32xf32> to vector<1x32xf32>
    %149 = vector.broadcast %148 : vector<1x32xf32> to vector<8x32xf32>
    %150 = arith.subf %146, %149 : vector<8x32xf32>
    %151 = math.exp %150 : vector<8x32xf32>
    %cst_43 = arith.constant dense<0.000000e+00> : vector<32xf32>
    %152 = vector.multi_reduction <add>, %151, %cst_43 [0] : vector<8x32xf32> to vector<32xf32>
    %153 = vector.shape_cast %152 : vector<32xf32> to vector<1x32xf32>
    %cst_44 = arith.constant 1.000000e+00 : f32
    %154 = vector.broadcast %cst_44 : f32 to vector<1x32xf32>
    %155 = arith.divf %154, %153 : vector<1x32xf32>
    %156 = vector.broadcast %155 : vector<1x32xf32> to vector<8x32xf32>
    %157 = arith.mulf %151, %156 : vector<8x32xf32>
    %158 = vector.extract_strided_slice %6 {offsets = [56, 0], sizes = [8, 32], strides = [1, 1]} : vector<576x32xf32> to vector<8x32xf32>
    %159 = arith.mulf %157, %158 : vector<8x32xf32>
    %c56 = arith.constant 56 : index
    %c0_45 = arith.constant 0 : index
    %160 = vector.load %arg6[%c56, %c0_45] : memref<64x32xf32, #tpu.memory_space<vmem>>, vector<8x32xf32>
    tpu.vector_store %arg6[%c56, %c0_45], %159 {strides = array<i32>} : memref<64x32xf32, #tpu.memory_space<vmem>>, vector<8x32xf32>,
    %c0_46 = arith.constant 0 : index
    %c0_47 = arith.constant 0 : index
    %161 = vector.load %arg6[%c0_46, %c0_47] : memref<64x32xf32, #tpu.memory_space<vmem>>, vector<64x32xf32>
    %162 = tpu.transpose %161, [1, 0] : vector<64x32xf32> -> vector<32x64xf32>
    %c0_48 = arith.constant 0 : index
    %c0_49 = arith.constant 0 : index
    %163 = vector.load %arg2[%c0_48, %c0_49] : memref<32x64xf32, #tpu.memory_space<vmem>>, vector<32x64xf32>
    %164 = arith.addf %162, %163 : vector<32x64xf32>
    %c0_50 = arith.constant 0 : index
    %c0_51 = arith.constant 0 : index
    %165 = vector.load %arg5[%c0_50, %c0_51] : memref<32x64xf32, #tpu.memory_space<vmem>>, vector<32x64xf32>
    tpu.vector_store %arg5[%c0_50, %c0_51], %164 {strides = array<i32>} : memref<32x64xf32, #tpu.memory_space<vmem>>, vector<32x64xf32>,
    return
  }
  func.func @transform_0(%arg0: i32) -> (i32, i32) {
    %c0_i32 = arith.constant 0 : i32
    %c0_i32_0 = arith.constant 0 : i32
    return %arg0, %c0_i32 : i32, i32
  }
  func.func @transform_1(%arg0: i32) -> (i32, i32) {
    %c0_i32 = arith.constant 0 : i32
    %c0_i32_0 = arith.constant 0 : i32
    return %arg0, %c0_i32 : i32, i32
  }
  func.func @transform_2(%arg0: i32) -> (i32, i32) {
    %c0_i32 = arith.constant 0 : i32
    %c0_i32_0 = arith.constant 0 : i32
    %c0_i32_1 = arith.constant 0 : i32
    return %c0_i32, %c0_i32_0 : i32, i32
  }
  func.func @transform_3(%arg0: i32) -> (i32, i32) {
    %c0_i32 = arith.constant 0 : i32
    %c0_i32_0 = arith.constant 0 : i32
    %c0_i32_1 = arith.constant 0 : i32
    return %c0_i32, %c0_i32_0 : i32, i32
  }
  func.func @transform_4(%arg0: i32) -> (i32, i32) {
    %c0_i32 = arith.constant 0 : i32
    %c0_i32_0 = arith.constant 0 : i32
    return %arg0, %c0_i32 : i32, i32
  }
}

</mosaic_0001>

<llo_original>
// kernel: tpu_custom_call.1
$region0: #{tpu_custom_call.1}
  #allocation0 [shape = 'u32[]', space=smem, size = 0x4, offset = 0x4, fixed_abs, tag = 'smem constant byte address 0x4 - core index']
  #allocation1 [shape = 'u32[144,128]{1,0:T(1,128)}', space=vmem, size = 0x12000, scoped, tag = 'internal scratch']
  #allocation2 [shape = 'f32[64,32]{1,0:T(8,128)}', space=vmem, size = 0x8000, scoped, tag = 'scratch operand']
  %s0 = inlined_call_operand.vmem [shape: f32[32,64], index: 0, kind: input, shape index: {}]
  %s1 = inlined_call_operand.vmem [shape: f32[32,64], index: 1, kind: input, shape index: {}]
  %s2 = inlined_call_operand.vmem [shape: f32[576,64], index: 2, kind: input, shape index: {}]
  %s3 = inlined_call_operand.vmem [shape: f32[576,1], index: 3, kind: input, shape index: {}]
  %s4 = inlined_call_operand.hbm [shape: f32[32,64], index: 4, kind: output, shape index: {}]
  %s5 = sld [smem:[#allocation0]]
  $region26: #{tpu_custom_call.1} parent=0
    _
  %s7 = ssub.s32 1, %s5
  %s8 = scalar_select 0, %s7, %s5
  $region1: #{tpu_custom_call.1} parent=0
    #allocation3 [shape = 'u8[16384]{0}', space=vmem, size = 0x4000, scoped, tag = 'output window, operand 0, single buffered']
    #allocation4 [shape = 's32[1]{0}', space=sflag, size = 0x4, scoped, tag = 'scoped memory for tpu_custom_call.1']
    %9 = vsyncpa [#allocation4], 0
    // Predicated region
    $region2: #{tpu_custom_call.1} parent=1 // pred_check
      _
    $region3: #{tpu_custom_call.1} parent=1 // pred_check_branch
      %11 = sbr.rel (0) target = $region5
    $region4: #{tpu_custom_call.1} parent=1 // pred_region
      _
    $region5: #{tpu_custom_call.1} parent=1 // pred_fallthru
      _
    // Predicated region
    $region6: #{tpu_custom_call.1} parent=1 // pred_check
      _
    $region7: #{tpu_custom_call.1} parent=1 // pred_check_branch
      %13 = sbr.rel (0) target = $region9
    $region8: #{tpu_custom_call.1} parent=1 // pred_region
      _
    $region9: #{tpu_custom_call.1} parent=1 // pred_fallthru
      _
    // Predicated region
    $region10: #{tpu_custom_call.1} parent=1 // pred_check
      _
    $region11: #{tpu_custom_call.1} parent=1 // pred_check_branch
      %15 = sbr.rel (0) target = $region13
    $region12: #{tpu_custom_call.1} parent=1 // pred_region
      _
    $region13: #{tpu_custom_call.1} parent=1 // pred_fallthru
      _
    // Predicated region
    $region14: #{tpu_custom_call.1} parent=1 // pred_check
      _
    $region15: #{tpu_custom_call.1} parent=1 // pred_check_branch
      %17 = sbr.rel (0) target = $region17
    $region16: #{tpu_custom_call.1} parent=1 // pred_region
      _
    $region17: #{tpu_custom_call.1} parent=1 // pred_fallthru
      _
    %v18 = vld [vmem:[%s0] sm:$0xff]
    %v19 = vld [vmem:[%s0 + $0x8] sm:$0xff]
    %v20 = vld [vmem:[%s0 + $0x10] sm:$0xff]
    %v21 = vld [vmem:[%s0 + $0x18] sm:$0xff]
    %v22 = vld [vmem:[%s2] sm:$0xff]
    %v23 = vld [vmem:[%s2 + $0x8] sm:$0xff]
    %v24 = vld [vmem:[%s2 + $0x10] sm:$0xff]
    %v25 = vld [vmem:[%s2 + $0x18] sm:$0xff]
    %v26 = vld [vmem:[%s2 + $0x20] sm:$0xff]
    %v27 = vld [vmem:[%s2 + $0x28] sm:$0xff]
    %v28 = vld [vmem:[%s2 + $0x30] sm:$0xff]
    %v29 = vld [vmem:[%s2 + $0x38] sm:$0xff]
    %v30 = vld [vmem:[%s2 + $0x40] sm:$0xff]
    %v31 = vld [vmem:[%s2 + $0x48] sm:$0xff]
    %v32 = vld [vmem:[%s2 + $0x50] sm:$0xff]
    %v33 = vld [vmem:[%s2 + $0x58] sm:$0xff]
    %v34 = vld [vmem:[%s2 + $0x60] sm:$0xff]
    %v35 = vld [vmem:[%s2 + $0x68] sm:$0xff]
    %v36 = vld [vmem:[%s2 + $0x70] sm:$0xff]
    %v37 = vld [vmem:[%s2 + $0x78] sm:$0xff]
    %v38 = vld [vmem:[%s2 + $0x80] sm:$0xff]
    %v39 = vld [vmem:[%s2 + $0x88] sm:$0xff]
    %v40 = vld [vmem:[%s2 + $0x90] sm:$0xff]
    %v41 = vld [vmem:[%s2 + $0x98] sm:$0xff]
    %v42 = vld [vmem:[%s2 + $0xa0] sm:$0xff]
    %v43 = vld [vmem:[%s2 + $0xa8] sm:$0xff]
    %v44 = vld [vmem:[%s2 + $0xb0] sm:$0xff]
    %v45 = vld [vmem:[%s2 + $0xb8] sm:$0xff]
    %v46 = vld [vmem:[%s2 + $0xc0] sm:$0xff]
    %v47 = vld [vmem:[%s2 + $0xc8] sm:$0xff]
    %v48 = vld [vmem:[%s2 + $0xd0] sm:$0xff]
    %v49 = vld [vmem:[%s2 + $0xd8] sm:$0xff]
    %v50 = vld [vmem:[%s2 + $0xe0] sm:$0xff]
    %v51 = vld [vmem:[%s2 + $0xe8] sm:$0xff]
    %v52 = vld [vmem:[%s2 + $0xf0] sm:$0xff]
    %v53 = vld [vmem:[%s2 + $0xf8] sm:$0xff]
    %v54 = vld [vmem:[%s2 + $0x100] sm:$0xff]
    %v55 = vld [vmem:[%s2 + $0x108] sm:$0xff]
    %v56 = vld [vmem:[%s2 + $0x110] sm:$0xff]
    %v57 = vld [vmem:[%s2 + $0x118] sm:$0xff]
    %v58 = vld [vmem:[%s2 + $0x120] sm:$0xff]
    %v59 = vld [vmem:[%s2 + $0x128] sm:$0xff]
    %v60 = vld [vmem:[%s2 + $0x130] sm:$0xff]
    %v61 = vld [vmem:[%s2 + $0x138] sm:$0xff]
    %v62 = vld [vmem:[%s2 + $0x140] sm:$0xff]
    %v63 = vld [vmem:[%s2 + $0x148] sm:$0xff]
    %v64 = vld [vmem:[%s2 + $0x150] sm:$0xff]
    %v65 = vld [vmem:[%s2 + $0x158] sm:$0xff]
    %v66 = vld [vmem:[%s2 + $0x160] sm:$0xff]
    %v67 = vld [vmem:[%s2 + $0x168] sm:$0xff]
    %v68 = vld [vmem:[%s2 + $0x170] sm:$0xff]
    %v69 = vld [vmem:[%s2 + $0x178] sm:$0xff]
    %v70 = vld [vmem:[%s2 + $0x180] sm:$0xff]
    %v71 = vld [vmem:[%s2 + $0x188] sm:$0xff]
    %v72 = vld [vmem:[%s2 + $0x190] sm:$0xff]
    %v73 = vld [vmem:[%s2 + $0x198] sm:$0xff]
    %v74 = vld [vmem:[%s2 + $0x1a0] sm:$0xff]
    %v75 = vld [vmem:[%s2 + $0x1a8] sm:$0xff]
    %v76 = vld [vmem:[%s2 + $0x1b0] sm:$0xff]
    %v77 = vld [vmem:[%s2 + $0x1b8] sm:$0xff]
    %v78 = vld [vmem:[%s2 + $0x1c0] sm:$0xff]
    %v79 = vld [vmem:[%s2 + $0x1c8] sm:$0xff]
    %v80 = vld [vmem:[%s2 + $0x1d0] sm:$0xff]
    %v81 = vld [vmem:[%s2 + $0x1d8] sm:$0xff]
    %v82 = vld [vmem:[%s2 + $0x1e0] sm:$0xff]
    %v83 = vld [vmem:[%s2 + $0x1e8] sm:$0xff]
    %v84 = vld [vmem:[%s2 + $0x1f0] sm:$0xff]
    %v85 = vld [vmem:[%s2 + $0x1f8] sm:$0xff]
    %v86 = vld [vmem:[%s2 + $0x200] sm:$0xff]
    %v87 = vld [vmem:[%s2 + $0x208] sm:$0xff]
    %v88 = vld [vmem:[%s2 + $0x210] sm:$0xff]
    %v89 = vld [vmem:[%s2 + $0x218] sm:$0xff]
    %v90 = vld [vmem:[%s2 + $0x220] sm:$0xff]
    %v91 = vld [vmem:[%s2 + $0x228] sm:$0xff]
    %v92 = vld [vmem:[%s2 + $0x230] sm:$0xff]
    %v93 = vld [vmem:[%s2 + $0x238] sm:$0xff]
    %v94 = vld [vmem:[%s3] sm:$0xff]
    %v95 = vld [vmem:[%s3 + $0x8] sm:$0xff]
    %v96 = vld [vmem:[%s3 + $0x10] sm:$0xff]
    %v97 = vld [vmem:[%s3 + $0x18] sm:$0xff]
    %v98 = vld [vmem:[%s3 + $0x20] sm:$0xff]
    %v99 = vld [vmem:[%s3 + $0x28] sm:$0xff]
    %v100 = vld [vmem:[%s3 + $0x30] sm:$0xff]
    %v101 = vld [vmem:[%s3 + $0x38] sm:$0xff]
    %v102 = vld [vmem:[%s3 + $0x40] sm:$0xff]
    %v103 = vld [vmem:[%s3 + $0x48] sm:$0xff]
    %v104 = vld [vmem:[%s3 + $0x50] sm:$0xff]
    %v105 = vld [vmem:[%s3 + $0x58] sm:$0xff]
    %v106 = vld [vmem:[%s3 + $0x60] sm:$0xff]
    %v107 = vld [vmem:[%s3 + $0x68] sm:$0xff]
    %v108 = vld [vmem:[%s3 + $0x70] sm:$0xff]
    %v109 = vld [vmem:[%s3 + $0x78] sm:$0xff]
    %v110 = vld [vmem:[%s3 + $0x80] sm:$0xff]
    %v111 = vld [vmem:[%s3 + $0x88] sm:$0xff]
    %v112 = vld [vmem:[%s3 + $0x90] sm:$0xff]
    %v113 = vld [vmem:[%s3 + $0x98] sm:$0xff]
    %v114 = vld [vmem:[%s3 + $0xa0] sm:$0xff]
    %v115 = vld [vmem:[%s3 + $0xa8] sm:$0xff]
    %v116 = vld [vmem:[%s3 + $0xb0] sm:$0xff]
    %v117 = vld [vmem:[%s3 + $0xb8] sm:$0xff]
    %v118 = vld [vmem:[%s3 + $0xc0] sm:$0xff]
    %v119 = vld [vmem:[%s3 + $0xc8] sm:$0xff]
    %v120 = vld [vmem:[%s3 + $0xd0] sm:$0xff]
    %v121 = vld [vmem:[%s3 + $0xd8] sm:$0xff]
    %v122 = vld [vmem:[%s3 + $0xe0] sm:$0xff]
    %v123 = vld [vmem:[%s3 + $0xe8] sm:$0xff]
    %v124 = vld [vmem:[%s3 + $0xf0] sm:$0xff]
    %v125 = vld [vmem:[%s3 + $0xf8] sm:$0xff]
    %v126 = vld [vmem:[%s3 + $0x100] sm:$0xff]
    %v127 = vld [vmem:[%s3 + $0x108] sm:$0xff]
    %v128 = vld [vmem:[%s3 + $0x110] sm:$0xff]
    %v129 = vld [vmem:[%s3 + $0x118] sm:$0xff]
    %v130 = vld [vmem:[%s3 + $0x120] sm:$0xff]
    %v131 = vld [vmem:[%s3 + $0x128] sm:$0xff]
    %v132 = vld [vmem:[%s3 + $0x130] sm:$0xff]
    %v133 = vld [vmem:[%s3 + $0x138] sm:$0xff]
    %v134 = vld [vmem:[%s3 + $0x140] sm:$0xff]
    %v135 = vld [vmem:[%s3 + $0x148] sm:$0xff]
    %v136 = vld [vmem:[%s3 + $0x150] sm:$0xff]
    %v137 = vld [vmem:[%s3 + $0x158] sm:$0xff]
    %v138 = vld [vmem:[%s3 + $0x160] sm:$0xff]
    %v139 = vld [vmem:[%s3 + $0x168] sm:$0xff]
    %v140 = vld [vmem:[%s3 + $0x170] sm:$0xff]
    %v141 = vld [vmem:[%s3 + $0x178] sm:$0xff]
    %v142 = vld [vmem:[%s3 + $0x180] sm:$0xff]
    %v143 = vld [vmem:[%s3 + $0x188] sm:$0xff]
    %v144 = vld [vmem:[%s3 + $0x190] sm:$0xff]
    %v145 = vld [vmem:[%s3 + $0x198] sm:$0xff]
    %v146 = vld [vmem:[%s3 + $0x1a0] sm:$0xff]
    %v147 = vld [vmem:[%s3 + $0x1a8] sm:$0xff]
    %v148 = vld [vmem:[%s3 + $0x1b0] sm:$0xff]
    %v149 = vld [vmem:[%s3 + $0x1b8] sm:$0xff]
    %v150 = vld [vmem:[%s3 + $0x1c0] sm:$0xff]
    %v151 = vld [vmem:[%s3 + $0x1c8] sm:$0xff]
    %v152 = vld [vmem:[%s3 + $0x1d0] sm:$0xff]
    %v153 = vld [vmem:[%s3 + $0x1d8] sm:$0xff]
    %v154 = vld [vmem:[%s3 + $0x1e0] sm:$0xff]
    %v155 = vld [vmem:[%s3 + $0x1e8] sm:$0xff]
    %v156 = vld [vmem:[%s3 + $0x1f0] sm:$0xff]
    %v157 = vld [vmem:[%s3 + $0x1f8] sm:$0xff]
    %v158 = vld [vmem:[%s3 + $0x200] sm:$0xff]
    %v159 = vld [vmem:[%s3 + $0x208] sm:$0xff]
    %v160 = vld [vmem:[%s3 + $0x210] sm:$0xff]
    %v161 = vld [vmem:[%s3 + $0x218] sm:$0xff]
    %v162 = vld [vmem:[%s3 + $0x220] sm:$0xff]
    %v163 = vld [vmem:[%s3 + $0x228] sm:$0xff]
    %v164 = vld [vmem:[%s3 + $0x230] sm:$0xff]
    %v165 = vld [vmem:[%s3 + $0x238] sm:$0xff]
    %167 = vset.pattern.permute.xlu0 0
    %168 = vperm.xlu0 %167, %v94
    %v169 = vpop.permute.xlu0 %168
    %172 = vset.pattern.permute.xlu0 0
    %173 = vperm.xlu0 %172, %v95
    %v174 = vpop.permute.xlu0 %173
    %177 = vset.pattern.permute.xlu0 0
    %178 = vperm.xlu0 %177, %v96
    %v179 = vpop.permute.xlu0 %178
    %182 = vset.pattern.permute.xlu0 0
    %183 = vperm.xlu0 %182, %v97
    %v184 = vpop.permute.xlu0 %183
    %187 = vset.pattern.permute.xlu0 0
    %188 = vperm.xlu0 %187, %v98
    %v189 = vpop.permute.xlu0 %188
    %192 = vset.pattern.permute.xlu0 0
    %193 = vperm.xlu0 %192, %v99
    %v194 = vpop.permute.xlu0 %193
    %197 = vset.pattern.permute.xlu0 0
    %198 = vperm.xlu0 %197, %v100
    %v199 = vpop.permute.xlu0 %198
    %202 = vset.pattern.permute.xlu0 0
    %203 = vperm.xlu0 %202, %v101
    %v204 = vpop.permute.xlu0 %203
    %207 = vset.pattern.permute.xlu0 0
    %208 = vperm.xlu0 %207, %v102
    %v209 = vpop.permute.xlu0 %208
    %212 = vset.pattern.permute.xlu0 0
    %213 = vperm.xlu0 %212, %v103
    %v214 = vpop.permute.xlu0 %213
    %217 = vset.pattern.permute.xlu0 0
    %218 = vperm.xlu0 %217, %v104
    %v219 = vpop.permute.xlu0 %218
    %222 = vset.pattern.permute.xlu0 0
    %223 = vperm.xlu0 %222, %v105
    %v224 = vpop.permute.xlu0 %223
    %227 = vset.pattern.permute.xlu0 0
    %228 = vperm.xlu0 %227, %v106
    %v229 = vpop.permute.xlu0 %228
    %232 = vset.pattern.permute.xlu0 0
    %233 = vperm.xlu0 %232, %v107
    %v234 = vpop.permute.xlu0 %233
    %237 = vset.pattern.permute.xlu0 0
    %238 = vperm.xlu0 %237, %v108
    %v239 = vpop.permute.xlu0 %238
    %242 = vset.pattern.permute.xlu0 0
    %243 = vperm.xlu0 %242, %v109
    %v244 = vpop.permute.xlu0 %243
    %247 = vset.pattern.permute.xlu0 0
    %248 = vperm.xlu0 %247, %v110
    %v249 = vpop.permute.xlu0 %248
    %252 = vset.pattern.permute.xlu0 0
    %253 = vperm.xlu0 %252, %v111
    %v254 = vpop.permute.xlu0 %253
    %257 = vset.pattern.permute.xlu0 0
    %258 = vperm.xlu0 %257, %v112
    %v259 = vpop.permute.xlu0 %258
    %262 = vset.pattern.permute.xlu0 0
    %263 = vperm.xlu0 %262, %v113
    %v264 = vpop.permute.xlu0 %263
    %267 = vset.pattern.permute.xlu0 0
    %268 = vperm.xlu0 %267, %v114
    %v269 = vpop.permute.xlu0 %268
    %272 = vset.pattern.permute.xlu0 0
    %273 = vperm.xlu0 %272, %v115
    %v274 = vpop.permute.xlu0 %273
    %277 = vset.pattern.permute.xlu0 0
    %278 = vperm.xlu0 %277, %v116
    %v279 = vpop.permute.xlu0 %278
    %282 = vset.pattern.permute.xlu0 0
    %283 = vperm.xlu0 %282, %v117
    %v284 = vpop.permute.xlu0 %283
    %287 = vset.pattern.permute.xlu0 0
    %288 = vperm.xlu0 %287, %v118
    %v289 = vpop.permute.xlu0 %288
    %292 = vset.pattern.permute.xlu0 0
    %293 = vperm.xlu0 %292, %v119
    %v294 = vpop.permute.xlu0 %293
    %297 = vset.pattern.permute.xlu0 0
    %298 = vperm.xlu0 %297, %v120
    %v299 = vpop.permute.xlu0 %298
    %302 = vset.pattern.permute.xlu0 0
    %303 = vperm.xlu0 %302, %v121
    %v304 = vpop.permute.xlu0 %303
    %307 = vset.pattern.permute.xlu0 0
    %308 = vperm.xlu0 %307, %v122
    %v309 = vpop.permute.xlu0 %308
    %312 = vset.pattern.permute.xlu0 0
    %313 = vperm.xlu0 %312, %v123
    %v314 = vpop.permute.xlu0 %313
    %317 = vset.pattern.permute.xlu0 0
    %318 = vperm.xlu0 %317, %v124
    %v319 = vpop.permute.xlu0 %318
    %322 = vset.pattern.permute.xlu0 0
    %323 = vperm.xlu0 %322, %v125
    %v324 = vpop.permute.xlu0 %323
    %327 = vset.pattern.permute.xlu0 0
    %328 = vperm.xlu0 %327, %v126
    %v329 = vpop.permute.xlu0 %328
    %332 = vset.pattern.permute.xlu0 0
    %333 = vperm.xlu0 %332, %v127
    %v334 = vpop.permute.xlu0 %333
    %337 = vset.pattern.permute.xlu0 0
    %338 = vperm.xlu0 %337, %v128
    %v339 = vpop.permute.xlu0 %338
    %342 = vset.pattern.permute.xlu0 0
    %343 = vperm.xlu0 %342, %v129
    %v344 = vpop.permute.xlu0 %343
    %347 = vset.pattern.permute.xlu0 0
    %348 = vperm.xlu0 %347, %v130
    %v349 = vpop.permute.xlu0 %348
    %352 = vset.pattern.permute.xlu0 0
    %353 = vperm.xlu0 %352, %v131
    %v354 = vpop.permute.xlu0 %353
    %357 = vset.pattern.permute.xlu0 0
    %358 = vperm.xlu0 %357, %v132
    %v359 = vpop.permute.xlu0 %358
    %362 = vset.pattern.permute.xlu0 0
    %363 = vperm.xlu0 %362, %v133
    %v364 = vpop.permute.xlu0 %363
    %367 = vset.pattern.permute.xlu0 0
    %368 = vperm.xlu0 %367, %v134
    %v369 = vpop.permute.xlu0 %368
    %372 = vset.pattern.permute.xlu0 0
    %373 = vperm.xlu0 %372, %v135
    %v374 = vpop.permute.xlu0 %373
    %377 = vset.pattern.permute.xlu0 0
    %378 = vperm.xlu0 %377, %v136
    %v379 = vpop.permute.xlu0 %378
    %382 = vset.pattern.permute.xlu0 0
    %383 = vperm.xlu0 %382, %v137
    %v384 = vpop.permute.xlu0 %383
    %387 = vset.pattern.permute.xlu0 0
    %388 = vperm.xlu0 %387, %v138
    %v389 = vpop.permute.xlu0 %388
    %392 = vset.pattern.permute.xlu0 0
    %393 = vperm.xlu0 %392, %v139
    %v394 = vpop.permute.xlu0 %393
    %397 = vset.pattern.permute.xlu0 0
    %398 = vperm.xlu0 %397, %v140
    %v399 = vpop.permute.xlu0 %398
    %402 = vset.pattern.permute.xlu0 0
    %403 = vperm.xlu0 %402, %v141
    %v404 = vpop.permute.xlu0 %403
    %407 = vset.pattern.permute.xlu0 0
    %408 = vperm.xlu0 %407, %v142
    %v409 = vpop.permute.xlu0 %408
    %412 = vset.pattern.permute.xlu0 0
    %413 = vperm.xlu0 %412, %v143
    %v414 = vpop.permute.xlu0 %413
    %417 = vset.pattern.permute.xlu0 0
    %418 = vperm.xlu0 %417, %v144
    %v419 = vpop.permute.xlu0 %418
    %422 = vset.pattern.permute.xlu0 0
    %423 = vperm.xlu0 %422, %v145
    %v424 = vpop.permute.xlu0 %423
    %427 = vset.pattern.permute.xlu0 0
    %428 = vperm.xlu0 %427, %v146
    %v429 = vpop.permute.xlu0 %428
    %432 = vset.pattern.permute.xlu0 0
    %433 = vperm.xlu0 %432, %v147
    %v434 = vpop.permute.xlu0 %433
    %437 = vset.pattern.permute.xlu0 0
    %438 = vperm.xlu0 %437, %v148
    %v439 = vpop.permute.xlu0 %438
    %442 = vset.pattern.permute.xlu0 0
    %443 = vperm.xlu0 %442, %v149
    %v444 = vpop.permute.xlu0 %443
    %447 = vset.pattern.permute.xlu0 0
    %448 = vperm.xlu0 %447, %v150
    %v449 = vpop.permute.xlu0 %448
    %452 = vset.pattern.permute.xlu0 0
    %453 = vperm.xlu0 %452, %v151
    %v454 = vpop.permute.xlu0 %453
    %457 = vset.pattern.permute.xlu0 0
    %458 = vperm.xlu0 %457, %v152
    %v459 = vpop.permute.xlu0 %458
    %462 = vset.pattern.permute.xlu0 0
    %463 = vperm.xlu0 %462, %v153
    %v464 = vpop.permute.xlu0 %463
    %467 = vset.pattern.permute.xlu0 0
    %468 = vperm.xlu0 %467, %v154
    %v469 = vpop.permute.xlu0 %468
    %472 = vset.pattern.permute.xlu0 0
    %473 = vperm.xlu0 %472, %v155
    %v474 = vpop.permute.xlu0 %473
    %477 = vset.pattern.permute.xlu0 0
    %478 = vperm.xlu0 %477, %v156
    %v479 = vpop.permute.xlu0 %478
    %482 = vset.pattern.permute.xlu0 0
    %483 = vperm.xlu0 %482, %v157
    %v484 = vpop.permute.xlu0 %483
    %487 = vset.pattern.permute.xlu0 0
    %488 = vperm.xlu0 %487, %v158
    %v489 = vpop.permute.xlu0 %488
    %492 = vset.pattern.permute.xlu0 0
    %493 = vperm.xlu0 %492, %v159
    %v494 = vpop.permute.xlu0 %493
    %497 = vset.pattern.permute.xlu0 0
    %498 = vperm.xlu0 %497, %v160
    %v499 = vpop.permute.xlu0 %498
    %502 = vset.pattern.permute.xlu0 0
    %503 = vperm.xlu0 %502, %v161
    %v504 = vpop.permute.xlu0 %503
    %507 = vset.pattern.permute.xlu0 0
    %508 = vperm.xlu0 %507, %v162
    %v509 = vpop.permute.xlu0 %508
    %512 = vset.pattern.permute.xlu0 0
    %513 = vperm.xlu0 %512, %v163
    %v514 = vpop.permute.xlu0 %513
    %517 = vset.pattern.permute.xlu0 0
    %518 = vperm.xlu0 %517, %v164
    %v519 = vpop.permute.xlu0 %518
    %522 = vset.pattern.permute.xlu0 0
    %523 = vperm.xlu0 %522, %v165
    %v524 = vpop.permute.xlu0 %523
    %vm526 = vcmask 523264
    %v528 = vsel %vm526, %v22, 0
    %v531 = vsel %vm526, %v23, 0
    %v534 = vsel %vm526, %v24, 0
    %v537 = vsel %vm526, %v25, 0
    %v540 = vsel %vm526, %v26, 0
    %v543 = vsel %vm526, %v27, 0
    %v546 = vsel %vm526, %v28, 0
    %v549 = vsel %vm526, %v29, 0
    %v552 = vsel %vm526, %v30, 0
    %v555 = vsel %vm526, %v31, 0
    %v558 = vsel %vm526, %v32, 0
    %v561 = vsel %vm526, %v33, 0
    %v564 = vsel %vm526, %v34, 0
    %v567 = vsel %vm526, %v35, 0
    %v570 = vsel %vm526, %v36, 0
    %v573 = vsel %vm526, %v37, 0
    %v576 = vsel %vm526, %v38, 0
    %v579 = vsel %vm526, %v39, 0
    %v582 = vsel %vm526, %v40, 0
    %v585 = vsel %vm526, %v41, 0
    %v588 = vsel %vm526, %v42, 0
    %v591 = vsel %vm526, %v43, 0
    %v594 = vsel %vm526, %v44, 0
    %v597 = vsel %vm526, %v45, 0
    %v600 = vsel %vm526, %v46, 0
    %v603 = vsel %vm526, %v47, 0
    %v606 = vsel %vm526, %v48, 0
    %v609 = vsel %vm526, %v49, 0
    %v612 = vsel %vm526, %v50, 0
    %v615 = vsel %vm526, %v51, 0
    %v618 = vsel %vm526, %v52, 0
    %v621 = vsel %vm526, %v53, 0
    %v624 = vsel %vm526, %v54, 0
    %v627 = vsel %vm526, %v55, 0
    %v630 = vsel %vm526, %v56, 0
    %v633 = vsel %vm526, %v57, 0
    %v636 = vsel %vm526, %v58, 0
    %v639 = vsel %vm526, %v59, 0
    %v642 = vsel %vm526, %v60, 0
    %v645 = vsel %vm526, %v61, 0
    %v648 = vsel %vm526, %v62, 0
    %v651 = vsel %vm526, %v63, 0
    %v654 = vsel %vm526, %v64, 0
    %v657 = vsel %vm526, %v65, 0
    %v660 = vsel %vm526, %v66, 0
    %v663 = vsel %vm526, %v67, 0
    %v666 = vsel %vm526, %v68, 0
    %v669 = vsel %vm526, %v69, 0
    %v672 = vsel %vm526, %v70, 0
    %v675 = vsel %vm526, %v71, 0
    %v678 = vsel %vm526, %v72, 0
    %v681 = vsel %vm526, %v73, 0
    %v684 = vsel %vm526, %v74, 0
    %v687 = vsel %vm526, %v75, 0
    %v690 = vsel %vm526, %v76, 0
    %v693 = vsel %vm526, %v77, 0
    %v696 = vsel %vm526, %v78, 0
    %v699 = vsel %vm526, %v79, 0
    %v702 = vsel %vm526, %v80, 0
    %v705 = vsel %vm526, %v81, 0
    %v708 = vsel %vm526, %v82, 0
    %v711 = vsel %vm526, %v83, 0
    %v714 = vsel %vm526, %v84, 0
    %v717 = vsel %vm526, %v85, 0
    %v720 = vsel %vm526, %v86, 0
    %v723 = vsel %vm526, %v87, 0
    %v726 = vsel %vm526, %v88, 0
    %v729 = vsel %vm526, %v89, 0
    %v732 = vsel %vm526, %v90, 0
    %v735 = vsel %vm526, %v91, 0
    %v738 = vsel %vm526, %v92, 0
    %v741 = vsel %vm526, %v93, 0
    %v744 = vsel %vm526, %v18, 0
    %v747 = vsel %vm526, %v19, 0
    %v750 = vsel %vm526, %v20, 0
    %v753 = vsel %vm526, %v21, 0
    %755 = vmatprep.subr.mxu0 0.0
    %756 = vmatpush1.xpose.msra.mxu0 %v744
    %757 = vmatprep.subr.mxu0 0.0
    %758 = vmatpush1.xpose.msra.mxu0 %v747
    %759 = vmatprep.subr.mxu0 0.0
    %760 = vmatpush1.xpose.msra.mxu0 %v750
    %761 = vmatprep.subr.mxu0 0.0
    %762 = vmatpush1.xpose.msra.mxu0 %v753
    %763 = vmatprep.subr.mxu0 0.0
    %764 = vmatpush1.xpose.msra.mxu0 0.0
    %765 = vmatprep.subr.mxu0 0.0
    %766 = vmatpush1.xpose.msra.mxu0 0.0
    %767 = vmatprep.subr.mxu0 0.0
    %768 = vmatpush1.xpose.msra.mxu0 0.0
    %769 = vmatprep.subr.mxu0 0.0
    %770 = vmatpush1.xpose.msra.mxu0 0.0
    %771 = vmatprep.subr.mxu0 0.0
    %772 = vmatpush1.xpose.msra.mxu0 0.0
    %773 = vmatprep.subr.mxu0 0.0
    %774 = vmatpush1.xpose.msra.mxu0 0.0
    %775 = vmatprep.subr.mxu0 0.0
    %776 = vmatpush1.xpose.msra.mxu0 0.0
    %777 = vmatprep.subr.mxu0 0.0
    %778 = vmatpush1.xpose.msra.mxu0 0.0
    %779 = vmatprep.subr.mxu0 0.0
    %780 = vmatpush1.xpose.msra.mxu0 0.0
    %781 = vmatprep.subr.mxu0 0.0
    %782 = vmatpush1.xpose.msra.mxu0 0.0
    %783 = vmatprep.subr.mxu0 0.0
    %784 = vmatpush1.xpose.msra.mxu0 0.0
    %785 = vmatprep.subr.mxu0 0.0
    %786 = vmatpush1.xpose.msra.mxu0 0.0
    %787 = vmatprep.subr.mxu0 0.0
    %788 = vmatpush1.xpose.msra.mxu0 0.0
    %789 = vmatprep.subr.mxu0 0.0
    %790 = vmatpush1.xpose.msra.mxu0 0.0
    %791 = vmatprep.subr.mxu0 0.0
    %792 = vmatpush1.xpose.msra.mxu0 0.0
    %793 = vmatprep.subr.mxu0 0.0
    %794 = vmatpush1.xpose.msra.mxu0 0.0
    %795 = vmatprep.subr.mxu0 0.0
    %796 = vmatpush1.xpose.msra.mxu0 0.0
    %797 = vmatprep.subr.mxu0 0.0
    %798 = vmatpush1.xpose.msra.mxu0 0.0
    %799 = vmatprep.subr.mxu0 0.0
    %800 = vmatpush1.xpose.msra.mxu0 0.0
    %801 = vmatprep.subr.mxu0 0.0
    %802 = vmatpush1.xpose.msra.mxu0 0.0
    %803 = vmatprep.subr.mxu0 0.0
    %804 = vmatpush1.xpose.msra.mxu0 0.0
    %805 = vmatprep.subr.mxu0 0.0
    %806 = vmatpush1.xpose.msra.mxu0 0.0
    %807 = vmatprep.subr.mxu0 0.0
    %808 = vmatpush1.xpose.msra.mxu0 0.0
    %809 = vmatprep.subr.mxu0 0.0
    %810 = vmatpush1.xpose.msra.mxu0 0.0
    %811 = vmatprep.subr.mxu0 0.0
    %812 = vmatpush1.xpose.msra.mxu0 0.0
    %813 = vmatprep.subr.mxu0 0.0
    %814 = vmatpush1.xpose.msra.mxu0 0.0
    %815 = vmatprep.subr.mxu0 0.0
    %816 = vmatpush1.xpose.msra.mxu0 0.0
    %817 = vmatprep.subr.mxu0 0.0
    %818 = vmatpush1.xpose.msra.mxu0 0.0
    %819 = vmatprep.mubr.f32.mxu0 0.0
    %820 = vmatmul.mubr.f32.gmra.mrb[0].mxu0 %v528
    %v821 = vpop.f32.mrb[0].mxu0
    %v822 = vadd.f32 %v169, %v821
    %v823 = vpop.f32.mrb[0].mxu0
    %824 = vmatprep.mubr.f32.mxu0 0.0
    %825 = vmatmul.mubr.f32.gmra.mrb[0].mxu0 %v531
    %v826 = vpop.f32.mrb[0].mxu0
    %v827 = vadd.f32 %v174, %v826
    %v828 = vpop.f32.mrb[0].mxu0
    %829 = vmatprep.mubr.f32.mxu0 0.0
    %830 = vmatmul.mubr.f32.gmra.mrb[0].mxu0 %v534
    %v831 = vpop.f32.mrb[0].mxu0
    %v832 = vadd.f32 %v179, %v831
    %v833 = vpop.f32.mrb[0].mxu0
    %834 = vmatprep.mubr.f32.mxu0 0.0
    %835 = vmatmul.mubr.f32.gmra.mrb[0].mxu0 %v537
    %v836 = vpop.f32.mrb[0].mxu0
    %v837 = vadd.f32 %v184, %v836
    %v838 = vpop.f32.mrb[0].mxu0
    %839 = vmatprep.mubr.f32.mxu0 0.0
    %840 = vmatmul.mubr.f32.gmra.mrb[0].mxu0 %v540
    %v841 = vpop.f32.mrb[0].mxu0
    %v842 = vadd.f32 %v189, %v841
    %v843 = vpop.f32.mrb[0].mxu0
    %844 = vmatprep.mubr.f32.mxu0 0.0
    %845 = vmatmul.mubr.f32.gmra.mrb[0].mxu0 %v543
    %v846 = vpop.f32.mrb[0].mxu0
    %v847 = vadd.f32 %v194, %v846
    %v848 = vpop.f32.mrb[0].mxu0
    %849 = vmatprep.mubr.f32.mxu0 0.0
    %850 = vmatmul.mubr.f32.gmra.mrb[0].mxu0 %v546
    %v851 = vpop.f32.mrb[0].mxu0
    %v852 = vadd.f32 %v199, %v851
    %v853 = vpop.f32.mrb[0].mxu0
    %854 = vmatprep.mubr.f32.mxu0 0.0
    %855 = vmatmul.mubr.f32.gmra.mrb[0].mxu0 %v549
    %v856 = vpop.f32.mrb[0].mxu0
    %v857 = vadd.f32 %v204, %v856
    %v858 = vpop.f32.mrb[0].mxu0
    %859 = vmatprep.mubr.f32.mxu0 0.0
    %860 = vmatmul.mubr.f32.gmra.mrb[0].mxu0 %v552
    %v861 = vpop.f32.mrb[0].mxu0
    %v862 = vadd.f32 %v209, %v861
    %v863 = vpop.f32.mrb[0].mxu0
    %864 = vmatprep.mubr.f32.mxu0 0.0
    %865 = vmatmul.mubr.f32.gmra.mrb[0].mxu0 %v555
    %v866 = vpop.f32.mrb[0].mxu0
    %v867 = vadd.f32 %v214, %v866
    %v868 = vpop.f32.mrb[0].mxu0
    %869 = vmatprep.mubr.f32.mxu0 0.0
    %870 = vmatmul.mubr.f32.gmra.mrb[0].mxu0 %v558
    %v871 = vpop.f32.mrb[0].mxu0
    %v872 = vadd.f32 %v219, %v871
    %v873 = vpop.f32.mrb[0].mxu0
    %874 = vmatprep.mubr.f32.mxu0 0.0
    %875 = vmatmul.mubr.f32.gmra.mrb[0].mxu0 %v561
    %v876 = vpop.f32.mrb[0].mxu0
    %v877 = vadd.f32 %v224, %v876
    %v878 = vpop.f32.mrb[0].mxu0
    %879 = vmatprep.mubr.f32.mxu0 0.0
    %880 = vmatmul.mubr.f32.gmra.mrb[0].mxu0 %v564
    %v881 = vpop.f32.mrb[0].mxu0
    %v882 = vadd.f32 %v229, %v881
    %v883 = vpop.f32.mrb[0].mxu0
    %884 = vmatprep.mubr.f32.mxu0 0.0
    %885 = vmatmul.mubr.f32.gmra.mrb[0].mxu0 %v567
    %v886 = vpop.f32.mrb[0].mxu0
    %v887 = vadd.f32 %v234, %v886
    %v888 = vpop.f32.mrb[0].mxu0
    %889 = vmatprep.mubr.f32.mxu0 0.0
    %890 = vmatmul.mubr.f32.gmra.mrb[0].mxu0 %v570
    %v891 = vpop.f32.mrb[0].mxu0
    %v892 = vadd.f32 %v239, %v891
    %v893 = vpop.f32.mrb[0].mxu0
    %894 = vmatprep.mubr.f32.mxu0 0.0
    %895 = vmatmul.mubr.f32.gmra.mrb[0].mxu0 %v573
    %v896 = vpop.f32.mrb[0].mxu0
    %v897 = vadd.f32 %v244, %v896
    %v898 = vpop.f32.mrb[0].mxu0
    %899 = vmatprep.mubr.f32.mxu0 0.0
    %900 = vmatmul.mubr.f32.gmra.mrb[0].mxu0 %v576
    %v901 = vpop.f32.mrb[0].mxu0
    %v902 = vadd.f32 %v249, %v901
    %v903 = vpop.f32.mrb[0].mxu0
    %904 = vmatprep.mubr.f32.mxu0 0.0
    %905 = vmatmul.mubr.f32.gmra.mrb[0].mxu0 %v579
    %v906 = vpop.f32.mrb[0].mxu0
    %v907 = vadd.f32 %v254, %v906
    %v908 = vpop.f32.mrb[0].mxu0
    %909 = vmatprep.mubr.f32.mxu0 0.0
    %910 = vmatmul.mubr.f32.gmra.mrb[0].mxu0 %v582
    %v911 = vpop.f32.mrb[0].mxu0
    %v912 = vadd.f32 %v259, %v911
    %v913 = vpop.f32.mrb[0].mxu0
    %914 = vmatprep.mubr.f32.mxu0 0.0
    %915 = vmatmul.mubr.f32.gmra.mrb[0].mxu0 %v585
    %v916 = vpop.f32.mrb[0].mxu0
    %v917 = vadd.f32 %v264, %v916
    %v918 = vpop.f32.mrb[0].mxu0
    %919 = vmatprep.mubr.f32.mxu0 0.0
    %920 = vmatmul.mubr.f32.gmra.mrb[0].mxu0 %v588
    %v921 = vpop.f32.mrb[0].mxu0
    %v922 = vadd.f32 %v269, %v921
    %v923 = vpop.f32.mrb[0].mxu0
    %924 = vmatprep.mubr.f32.mxu0 0.0
    %925 = vmatmul.mubr.f32.gmra.mrb[0].mxu0 %v591
    %v926 = vpop.f32.mrb[0].mxu0
    %v927 = vadd.f32 %v274, %v926
    %v928 = vpop.f32.mrb[0].mxu0
    %929 = vmatprep.mubr.f32.mxu0 0.0
    %930 = vmatmul.mubr.f32.gmra.mrb[0].mxu0 %v594
    %v931 = vpop.f32.mrb[0].mxu0
    %v932 = vadd.f32 %v279, %v931
    %v933 = vpop.f32.mrb[0].mxu0
    %934 = vmatprep.mubr.f32.mxu0 0.0
    %935 = vmatmul.mubr.f32.gmra.mrb[0].mxu0 %v597
    %v936 = vpop.f32.mrb[0].mxu0
    %v937 = vadd.f32 %v284, %v936
    %v938 = vpop.f32.mrb[0].mxu0
    %939 = vmatprep.mubr.f32.mxu0 0.0
    %940 = vmatmul.mubr.f32.gmra.mrb[0].mxu0 %v600
    %v941 = vpop.f32.mrb[0].mxu0
    %v942 = vadd.f32 %v289, %v941
    %v943 = vpop.f32.mrb[0].mxu0
    %944 = vmatprep.mubr.f32.mxu0 0.0
    %945 = vmatmul.mubr.f32.gmra.mrb[0].mxu0 %v603
    %v946 = vpop.f32.mrb[0].mxu0
    %v947 = vadd.f32 %v294, %v946
    %v948 = vpop.f32.mrb[0].mxu0
    %949 = vmatprep.mubr.f32.mxu0 0.0
    %950 = vmatmul.mubr.f32.gmra.mrb[0].mxu0 %v606
    %v951 = vpop.f32.mrb[0].mxu0
    %v952 = vadd.f32 %v299, %v951
    %v953 = vpop.f32.mrb[0].mxu0
    %954 = vmatprep.mubr.f32.mxu0 0.0
    %955 = vmatmul.mubr.f32.gmra.mrb[0].mxu0 %v609
    %v956 = vpop.f32.mrb[0].mxu0
    %v957 = vadd.f32 %v304, %v956
    %v958 = vpop.f32.mrb[0].mxu0
    %959 = vmatprep.mubr.f32.mxu0 0.0
    %960 = vmatmul.mubr.f32.gmra.mrb[0].mxu0 %v612
    %v961 = vpop.f32.mrb[0].mxu0
    %v962 = vadd.f32 %v309, %v961
    %v963 = vpop.f32.mrb[0].mxu0
    %964 = vmatprep.mubr.f32.mxu0 0.0
    %965 = vmatmul.mubr.f32.gmra.mrb[0].mxu0 %v615
    %v966 = vpop.f32.mrb[0].mxu0
    %v967 = vadd.f32 %v314, %v966
    %v968 = vpop.f32.mrb[0].mxu0
    %969 = vmatprep.mubr.f32.mxu0 0.0
    %970 = vmatmul.mubr.f32.gmra.mrb[0].mxu0 %v618
    %v971 = vpop.f32.mrb[0].mxu0
    %v972 = vadd.f32 %v319, %v971
    %v973 = vpop.f32.mrb[0].mxu0
    %974 = vmatprep.mubr.f32.mxu0 0.0
    %975 = vmatmul.mubr.f32.gmra.mrb[0].mxu0 %v621
    %v976 = vpop.f32.mrb[0].mxu0
    %v977 = vadd.f32 %v324, %v976
    %v978 = vpop.f32.mrb[0].mxu0
    %979 = vmatprep.mubr.f32.mxu0 0.0
    %980 = vmatmul.mubr.f32.gmra.mrb[0].mxu0 %v624
    %v981 = vpop.f32.mrb[0].mxu0
    %v982 = vadd.f32 %v329, %v981
    %v983 = vpop.f32.mrb[0].mxu0
    %984 = vmatprep.mubr.f32.mxu0 0.0
    %985 = vmatmul.mubr.f32.gmra.mrb[0].mxu0 %v627
    %v986 = vpop.f32.mrb[0].mxu0
    %v987 = vadd.f32 %v334, %v986
    %v988 = vpop.f32.mrb[0].mxu0
    %989 = vmatprep.mubr.f32.mxu0 0.0
    %990 = vmatmul.mubr.f32.gmra.mrb[0].mxu0 %v630
    %v991 = vpop.f32.mrb[0].mxu0
    %v992 = vadd.f32 %v339, %v991
    %v993 = vpop.f32.mrb[0].mxu0
    %994 = vmatprep.mubr.f32.mxu0 0.0
    %995 = vmatmul.mubr.f32.gmra.mrb[0].mxu0 %v633
    %v996 = vpop.f32.mrb[0].mxu0
    %v997 = vadd.f32 %v344, %v996
    %v998 = vpop.f32.mrb[0].mxu0
    %999 = vmatprep.mubr.f32.mxu0 0.0
    %1000 = vmatmul.mubr.f32.gmra.mrb[0].mxu0 %v636
    %v1001 = vpop.f32.mrb[0].mxu0
    %v1002 = vadd.f32 %v349, %v1001
    %v1003 = vpop.f32.mrb[0].mxu0
    %1004 = vmatprep.mubr.f32.mxu0 0.0
    %1005 = vmatmul.mubr.f32.gmra.mrb[0].mxu0 %v639
    %v1006 = vpop.f32.mrb[0].mxu0
    %v1007 = vadd.f32 %v354, %v1006
    %v1008 = vpop.f32.mrb[0].mxu0
    %1009 = vmatprep.mubr.f32.mxu0 0.0
    %1010 = vmatmul.mubr.f32.gmra.mrb[0].mxu0 %v642
    %v1011 = vpop.f32.mrb[0].mxu0
    %v1012 = vadd.f32 %v359, %v1011
    %v1013 = vpop.f32.mrb[0].mxu0
    %1014 = vmatprep.mubr.f32.mxu0 0.0
    %1015 = vmatmul.mubr.f32.gmra.mrb[0].mxu0 %v645
    %v1016 = vpop.f32.mrb[0].mxu0
    %v1017 = vadd.f32 %v364, %v1016
    %v1018 = vpop.f32.mrb[0].mxu0
    %1019 = vmatprep.mubr.f32.mxu0 0.0
    %1020 = vmatmul.mubr.f32.gmra.mrb[0].mxu0 %v648
    %v1021 = vpop.f32.mrb[0].mxu0
    %v1022 = vadd.f32 %v369, %v1021
    %v1023 = vpop.f32.mrb[0].mxu0
    %1024 = vmatprep.mubr.f32.mxu0 0.0
    %1025 = vmatmul.mubr.f32.gmra.mrb[0].mxu0 %v651
    %v1026 = vpop.f32.mrb[0].mxu0
    %v1027 = vadd.f32 %v374, %v1026
    %v1028 = vpop.f32.mrb[0].mxu0
    %1029 = vmatprep.mubr.f32.mxu0 0.0
    %1030 = vmatmul.mubr.f32.gmra.mrb[0].mxu0 %v654
    %v1031 = vpop.f32.mrb[0].mxu0
    %v1032 = vadd.f32 %v379, %v1031
    %v1033 = vpop.f32.mrb[0].mxu0
    %1034 = vmatprep.mubr.f32.mxu0 0.0
    %1035 = vmatmul.mubr.f32.gmra.mrb[0].mxu0 %v657
    %v1036 = vpop.f32.mrb[0].mxu0
    %v1037 = vadd.f32 %v384, %v1036
    %v1038 = vpop.f32.mrb[0].mxu0
    %1039 = vmatprep.mubr.f32.mxu0 0.0
    %1040 = vmatmul.mubr.f32.gmra.mrb[0].mxu0 %v660
    %v1041 = vpop.f32.mrb[0].mxu0
    %v1042 = vadd.f32 %v389, %v1041
    %v1043 = vpop.f32.mrb[0].mxu0
    %1044 = vmatprep.mubr.f32.mxu0 0.0
    %1045 = vmatmul.mubr.f32.gmra.mrb[0].mxu0 %v663
    %v1046 = vpop.f32.mrb[0].mxu0
    %v1047 = vadd.f32 %v394, %v1046
    %v1048 = vpop.f32.mrb[0].mxu0
    %1049 = vmatprep.mubr.f32.mxu0 0.0
    %1050 = vmatmul.mubr.f32.gmra.mrb[0].mxu0 %v666
    %v1051 = vpop.f32.mrb[0].mxu0
    %v1052 = vadd.f32 %v399, %v1051
    %v1053 = vpop.f32.mrb[0].mxu0
    %1054 = vmatprep.mubr.f32.mxu0 0.0
    %1055 = vmatmul.mubr.f32.gmra.mrb[0].mxu0 %v669
    %v1056 = vpop.f32.mrb[0].mxu0
    %v1057 = vadd.f32 %v404, %v1056
    %v1058 = vpop.f32.mrb[0].mxu0
    %1059 = vmatprep.mubr.f32.mxu0 0.0
    %1060 = vmatmul.mubr.f32.gmra.mrb[0].mxu0 %v672
    %v1061 = vpop.f32.mrb[0].mxu0
    %v1062 = vadd.f32 %v409, %v1061
    %v1063 = vpop.f32.mrb[0].mxu0
    %1064 = vmatprep.mubr.f32.mxu0 0.0
    %1065 = vmatmul.mubr.f32.gmra.mrb[0].mxu0 %v675
    %v1066 = vpop.f32.mrb[0].mxu0
    %v1067 = vadd.f32 %v414, %v1066
    %v1068 = vpop.f32.mrb[0].mxu0
    %1069 = vmatprep.mubr.f32.mxu0 0.0
    %1070 = vmatmul.mubr.f32.gmra.mrb[0].mxu0 %v678
    %v1071 = vpop.f32.mrb[0].mxu0
    %v1072 = vadd.f32 %v419, %v1071
    %v1073 = vpop.f32.mrb[0].mxu0
    %1074 = vmatprep.mubr.f32.mxu0 0.0
    %1075 = vmatmul.mubr.f32.gmra.mrb[0].mxu0 %v681
    %v1076 = vpop.f32.mrb[0].mxu0
    %v1077 = vadd.f32 %v424, %v1076
    %v1078 = vpop.f32.mrb[0].mxu0
    %1079 = vmatprep.mubr.f32.mxu0 0.0
    %1080 = vmatmul.mubr.f32.gmra.mrb[0].mxu0 %v684
    %v1081 = vpop.f32.mrb[0].mxu0
    %v1082 = vadd.f32 %v429, %v1081
    %v1083 = vpop.f32.mrb[0].mxu0
    %1084 = vmatprep.mubr.f32.mxu0 0.0
    %1085 = vmatmul.mubr.f32.gmra.mrb[0].mxu0 %v687
    %v1086 = vpop.f32.mrb[0].mxu0
    %v1087 = vadd.f32 %v434, %v1086
    %v1088 = vpop.f32.mrb[0].mxu0
    %1089 = vmatprep.mubr.f32.mxu0 0.0
    %1090 = vmatmul.mubr.f32.gmra.mrb[0].mxu0 %v690
    %v1091 = vpop.f32.mrb[0].mxu0
    %v1092 = vadd.f32 %v439, %v1091
    %v1093 = vpop.f32.mrb[0].mxu0
    %1094 = vmatprep.mubr.f32.mxu0 0.0
    %1095 = vmatmul.mubr.f32.gmra.mrb[0].mxu0 %v693
    %v1096 = vpop.f32.mrb[0].mxu0
    %v1097 = vadd.f32 %v444, %v1096
    %v1098 = vpop.f32.mrb[0].mxu0
    %1099 = vmatprep.mubr.f32.mxu0 0.0
    %1100 = vmatmul.mubr.f32.gmra.mrb[0].mxu0 %v696
    %v1101 = vpop.f32.mrb[0].mxu0
    %v1102 = vadd.f32 %v449, %v1101
    %v1103 = vpop.f32.mrb[0].mxu0
    %1104 = vmatprep.mubr.f32.mxu0 0.0
    %1105 = vmatmul.mubr.f32.gmra.mrb[0].mxu0 %v699
    %v1106 = vpop.f32.mrb[0].mxu0
    %v1107 = vadd.f32 %v454, %v1106
    %v1108 = vpop.f32.mrb[0].mxu0
    %1109 = vmatprep.mubr.f32.mxu0 0.0
    %1110 = vmatmul.mubr.f32.gmra.mrb[0].mxu0 %v702
    %v1111 = vpop.f32.mrb[0].mxu0
    %v1112 = vadd.f32 %v459, %v1111
    %v1113 = vpop.f32.mrb[0].mxu0
    %1114 = vmatprep.mubr.f32.mxu0 0.0
    %1115 = vmatmul.mubr.f32.gmra.mrb[0].mxu0 %v705
    %v1116 = vpop.f32.mrb[0].mxu0
    %v1117 = vadd.f32 %v464, %v1116
    %v1118 = vpop.f32.mrb[0].mxu0
    %1119 = vmatprep.mubr.f32.mxu0 0.0
    %1120 = vmatmul.mubr.f32.gmra.mrb[0].mxu0 %v708
    %v1121 = vpop.f32.mrb[0].mxu0
    %v1122 = vadd.f32 %v469, %v1121
    %v1123 = vpop.f32.mrb[0].mxu0
    %1124 = vmatprep.mubr.f32.mxu0 0.0
    %1125 = vmatmul.mubr.f32.gmra.mrb[0].mxu0 %v711
    %v1126 = vpop.f32.mrb[0].mxu0
    %v1127 = vadd.f32 %v474, %v1126
    %v1128 = vpop.f32.mrb[0].mxu0
    %1129 = vmatprep.mubr.f32.mxu0 0.0
    %1130 = vmatmul.mubr.f32.gmra.mrb[0].mxu0 %v714
    %v1131 = vpop.f32.mrb[0].mxu0
    %v1132 = vadd.f32 %v479, %v1131
    %v1133 = vpop.f32.mrb[0].mxu0
    %1134 = vmatprep.mubr.f32.mxu0 0.0
    %1135 = vmatmul.mubr.f32.gmra.mrb[0].mxu0 %v717
    %v1136 = vpop.f32.mrb[0].mxu0
    %v1137 = vadd.f32 %v484, %v1136
    %v1138 = vpop.f32.mrb[0].mxu0
    %1139 = vmatprep.mubr.f32.mxu0 0.0
    %1140 = vmatmul.mubr.f32.gmra.mrb[0].mxu0 %v720
    %v1141 = vpop.f32.mrb[0].mxu0
    %v1142 = vadd.f32 %v489, %v1141
    %v1143 = vpop.f32.mrb[0].mxu0
    %1144 = vmatprep.mubr.f32.mxu0 0.0
    %1145 = vmatmul.mubr.f32.gmra.mrb[0].mxu0 %v723
    %v1146 = vpop.f32.mrb[0].mxu0
    %v1147 = vadd.f32 %v494, %v1146
    %v1148 = vpop.f32.mrb[0].mxu0
    %1149 = vmatprep.mubr.f32.mxu0 0.0
    %1150 = vmatmul.mubr.f32.gmra.mrb[0].mxu0 %v726
    %v1151 = vpop.f32.mrb[0].mxu0
    %v1152 = vadd.f32 %v499, %v1151
    %v1153 = vpop.f32.mrb[0].mxu0
    %1154 = vmatprep.mubr.f32.mxu0 0.0
    %1155 = vmatmul.mubr.f32.gmra.mrb[0].mxu0 %v729
    %v1156 = vpop.f32.mrb[0].mxu0
    %v1157 = vadd.f32 %v504, %v1156
    %v1158 = vpop.f32.mrb[0].mxu0
    %1159 = vmatprep.mubr.f32.mxu0 0.0
    %1160 = vmatmul.mubr.f32.gmra.mrb[0].mxu0 %v732
    %v1161 = vpop.f32.mrb[0].mxu0
    %v1162 = vadd.f32 %v509, %v1161
    %v1163 = vpop.f32.mrb[0].mxu0
    %1164 = vmatprep.mubr.f32.mxu0 0.0
    %1165 = vmatmul.mubr.f32.gmra.mrb[0].mxu0 %v735
    %v1166 = vpop.f32.mrb[0].mxu0
    %v1167 = vadd.f32 %v514, %v1166
    %v1168 = vpop.f32.mrb[0].mxu0
    %1169 = vmatprep.mubr.f32.mxu0 0.0
    %1170 = vmatmul.mubr.f32.gmra.mrb[0].mxu0 %v738
    %v1171 = vpop.f32.mrb[0].mxu0
    %v1172 = vadd.f32 %v519, %v1171
    %v1173 = vpop.f32.mrb[0].mxu0
    %1174 = vmatprep.mubr.f32.mxu0 0.0
    %1175 = vmatmul.mubr.f32.gmra.mrb[0].mxu0 %v741
    %v1176 = vpop.f32.mrb[0].mxu0
    %v1177 = vadd.f32 %v524, %v1176
    %v1178 = vpop.f32.mrb[0].mxu0
    %1179 = vdwg.mxu0
    %v1180 = vmul.f32 %v862, %v1022
    %v1181 = vmul.f32 %v867, %v1027
    %v1182 = vmul.f32 %v872, %v1032
    %v1183 = vmul.f32 %v877, %v1037
    %v1184 = vmul.f32 %v862, %v1042
    %v1185 = vmul.f32 %v867, %v1047
    %v1186 = vmul.f32 %v872, %v1052
    %v1187 = vmul.f32 %v877, %v1057
    %v1188 = vmul.f32 %v862, %v1062
    %v1189 = vmul.f32 %v867, %v1067
    %v1190 = vmul.f32 %v872, %v1072
    %v1191 = vmul.f32 %v877, %v1077
    %v1192 = vmul.f32 %v862, %v1082
    %v1193 = vmul.f32 %v867, %v1087
    %v1194 = vmul.f32 %v872, %v1092
    %v1195 = vmul.f32 %v877, %v1097
    %v1196 = vmul.f32 %v862, %v1102
    %v1197 = vmul.f32 %v867, %v1107
    %v1198 = vmul.f32 %v872, %v1112
    %v1199 = vmul.f32 %v877, %v1117
    %v1200 = vmul.f32 %v862, %v1122
    %v1201 = vmul.f32 %v867, %v1127
    %v1202 = vmul.f32 %v872, %v1132
    %v1203 = vmul.f32 %v877, %v1137
    %v1204 = vmul.f32 %v862, %v1142
    %v1205 = vmul.f32 %v867, %v1147
    %v1206 = vmul.f32 %v872, %v1152
    %v1207 = vmul.f32 %v877, %v1157
    %v1208 = vmul.f32 %v862, %v1162
    %v1209 = vmul.f32 %v867, %v1167
    %v1210 = vmul.f32 %v872, %v1172
    %v1211 = vmul.f32 %v877, %v1177
    %vm1212 = vcmask 261120
    %v1213 = vsel %vm1212, %v1180, 0.0
    %v1214 = vsel %vm1212, %v1181, 0.0
    %v1215 = vadd.f32 %v1213, %v1214
    %v1216 = vsel %vm1212, %v1182, 0.0
    %v1217 = vadd.f32 %v1215, %v1216
    %v1218 = vsel %vm1212, %v1183, 0.0
    %v1219 = vadd.f32 %v1217, %v1218
    %v1220 = vrot.slane %v1219, 4
    %v1221 = vadd.f32 %v1219, %v1220
    %v1222 = vrot.slane %v1221, 2
    %v1223 = vadd.f32 %v1221, %v1222
    %v1224 = vrot.slane %v1223, 1
    %v1225 = vadd.f32 %v1223, %v1224
    %v1226 = vsel %vm1212, %v1184, 0.0
    %v1227 = vsel %vm1212, %v1185, 0.0
    %v1228 = vadd.f32 %v1226, %v1227
    %v1229 = vsel %vm1212, %v1186, 0.0
    %v1230 = vadd.f32 %v1228, %v1229
    %v1231 = vsel %vm1212, %v1187, 0.0
    %v1232 = vadd.f32 %v1230, %v1231
    %v1233 = vrot.slane %v1232, 4
    %v1234 = vadd.f32 %v1232, %v1233
    %v1235 = vrot.slane %v1234, 2
    %v1236 = vadd.f32 %v1234, %v1235
    %v1237 = vrot.slane %v1236, 1
    %v1238 = vadd.f32 %v1236, %v1237
    %v1239 = vsel %vm1212, %v1188, 0.0
    %v1240 = vsel %vm1212, %v1189, 0.0
    %v1241 = vadd.f32 %v1239, %v1240
    %v1242 = vsel %vm1212, %v1190, 0.0
    %v1243 = vadd.f32 %v1241, %v1242
    %v1244 = vsel %vm1212, %v1191, 0.0
    %v1245 = vadd.f32 %v1243, %v1244
    %v1246 = vrot.slane %v1245, 4
    %v1247 = vadd.f32 %v1245, %v1246
    %v1248 = vrot.slane %v1247, 2
    %v1249 = vadd.f32 %v1247, %v1248
    %v1250 = vrot.slane %v1249, 1
    %v1251 = vadd.f32 %v1249, %v1250
    %v1252 = vsel %vm1212, %v1192, 0.0
    %v1253 = vsel %vm1212, %v1193, 0.0
    %v1254 = vadd.f32 %v1252, %v1253
    %v1255 = vsel %vm1212, %v1194, 0.0
    %v1256 = vadd.f32 %v1254, %v1255
    %v1257 = vsel %vm1212, %v1195, 0.0
    %v1258 = vadd.f32 %v1256, %v1257
    %v1259 = vrot.slane %v1258, 4
    %v1260 = vadd.f32 %v1258, %v1259
    %v1261 = vrot.slane %v1260, 2
    %v1262 = vadd.f32 %v1260, %v1261
    %v1263 = vrot.slane %v1262, 1
    %v1264 = vadd.f32 %v1262, %v1263
    %v1265 = vsel %vm1212, %v1196, 0.0
    %v1266 = vsel %vm1212, %v1197, 0.0
    %v1267 = vadd.f32 %v1265, %v1266
    %v1268 = vsel %vm1212, %v1198, 0.0
    %v1269 = vadd.f32 %v1267, %v1268
    %v1270 = vsel %vm1212, %v1199, 0.0
    %v1271 = vadd.f32 %v1269, %v1270
    %v1272 = vrot.slane %v1271, 4
    %v1273 = vadd.f32 %v1271, %v1272
    %v1274 = vrot.slane %v1273, 2
    %v1275 = vadd.f32 %v1273, %v1274
    %v1276 = vrot.slane %v1275, 1
    %v1277 = vadd.f32 %v1275, %v1276
    %v1278 = vsel %vm1212, %v1200, 0.0
    %v1279 = vsel %vm1212, %v1201, 0.0
    %v1280 = vadd.f32 %v1278, %v1279
    %v1281 = vsel %vm1212, %v1202, 0.0
    %v1282 = vadd.f32 %v1280, %v1281
    %v1283 = vsel %vm1212, %v1203, 0.0
    %v1284 = vadd.f32 %v1282, %v1283
    %v1285 = vrot.slane %v1284, 4
    %v1286 = vadd.f32 %v1284, %v1285
    %v1287 = vrot.slane %v1286, 2
    %v1288 = vadd.f32 %v1286, %v1287
    %v1289 = vrot.slane %v1288, 1
    %v1290 = vadd.f32 %v1288, %v1289
    %v1291 = vsel %vm1212, %v1204, 0.0
    %v1292 = vsel %vm1212, %v1205, 0.0
    %v1293 = vadd.f32 %v1291, %v1292
    %v1294 = vsel %vm1212, %v1206, 0.0
    %v1295 = vadd.f32 %v1293, %v1294
    %v1296 = vsel %vm1212, %v1207, 0.0
    %v1297 = vadd.f32 %v1295, %v1296
    %v1298 = vrot.slane %v1297, 4
    %v1299 = vadd.f32 %v1297, %v1298
    %v1300 = vrot.slane %v1299, 2
    %v1301 = vadd.f32 %v1299, %v1300
    %v1302 = vrot.slane %v1301, 1
    %v1303 = vadd.f32 %v1301, %v1302
    %v1304 = vsel %vm1212, %v1208, 0.0
    %v1305 = vsel %vm1212, %v1209, 0.0
    %v1306 = vadd.f32 %v1304, %v1305
    %v1307 = vsel %vm1212, %v1210, 0.0
    %v1308 = vadd.f32 %v1306, %v1307
    %v1309 = vsel %vm1212, %v1211, 0.0
    %v1310 = vadd.f32 %v1308, %v1309
    %v1311 = vrot.slane %v1310, 4
    %v1312 = vadd.f32 %v1310, %v1311
    %v1313 = vrot.slane %v1312, 2
    %v1314 = vadd.f32 %v1312, %v1313
    %v1315 = vrot.slane %v1314, 1
    %v1316 = vadd.f32 %v1314, %v1315
    %v1317 = vsel %vm1212, %v1225, -inf
    %v1318 = vsel %vm1212, %v1238, -inf
    %v1319 = vsel %vm1212, %v1251, -inf
    %v1320 = vsel %vm1212, %v1264, -inf
    %v1321 = vsel %vm1212, %v1277, -inf
    %v1322 = vmax.f32 %v1317, %v1321
    %v1323 = vsel %vm1212, %v1290, -inf
    %v1324 = vmax.f32 %v1318, %v1323
    %v1325 = vsel %vm1212, %v1303, -inf
    %v1326 = vmax.f32 %v1319, %v1325
    %v1327 = vsel %vm1212, %v1316, -inf
    %v1328 = vmax.f32 %v1320, %v1327
    %v1329 = vmax.f32 %v1322, %v1324
    %v1330 = vmax.f32 %v1326, %v1328
    %v1331 = vmax.f32 %v1329, %v1330
    %v1332 = vsub.f32 %v1225, %v1331
    %v1333 = vsub.f32 %v1238, %v1331
    %v1334 = vsub.f32 %v1251, %v1331
    %v1335 = vsub.f32 %v1264, %v1331
    %v1336 = vsub.f32 %v1277, %v1331
    %v1337 = vsub.f32 %v1290, %v1331
    %v1338 = vsub.f32 %v1303, %v1331
    %v1339 = vsub.f32 %v1316, %v1331
    %v1340 = vmul.f32 %v1332, 1.442695
    %v1341 = vpow.pop %v1340
    %v1342 = vmul.f32 %v1333, 1.442695
    %v1343 = vpow.pop %v1342
    %v1344 = vmul.f32 %v1334, 1.442695
    %v1345 = vpow.pop %v1344
    %v1346 = vmul.f32 %v1335, 1.442695
    %v1347 = vpow.pop %v1346
    %v1348 = vmul.f32 %v1336, 1.442695
    %v1349 = vpow.pop %v1348
    %v1350 = vmul.f32 %v1337, 1.442695
    %v1351 = vpow.pop %v1350
    %v1352 = vmul.f32 %v1338, 1.442695
    %v1353 = vpow.pop %v1352
    %v1354 = vmul.f32 %v1339, 1.442695
    %v1355 = vpow.pop %v1354
    %v1364 = vrot.slane %v1343, 7
    %vm1365 = vcmask 1041409
    %v1366 = vsel %vm1365, %v1364, %v1341
    %v1367 = vrot.slane %v1345, 6
    %vm1368 = vcmask 1042434
    %v1369 = vsel %vm1368, %v1367, %v1366
    %v1370 = vrot.slane %v1347, 5
    %vm1371 = vcmask 1043459
    %v1372 = vsel %vm1371, %v1370, %v1369
    %v1373 = vrot.slane %v1349, 4
    %vm1374 = vcmask 1044484
    %v1375 = vsel %vm1374, %v1373, %v1372
    %v1376 = vrot.slane %v1351, 3
    %vm1377 = vcmask 1045509
    %v1378 = vsel %vm1377, %v1376, %v1375
    %v1379 = vrot.slane %v1353, 2
    %vm1380 = vcmask 1046534
    %v1381 = vsel %vm1380, %v1379, %v1378
    %v1382 = vrot.slane %v1355, 1
    %vm1383 = vcmask 1047559
    %v1384 = vsel %vm1383, %v1382, %v1381
    %v1386 = vsel %vm1212, %v1384, 0.0
    %v1387 = vrot.slane %v1386, 4
    %v1388 = vadd.f32 %v1386, %v1387
    %v1389 = vrot.slane %v1388, 2
    %v1390 = vadd.f32 %v1388, %v1389
    %v1391 = vrot.slane %v1390, 1
    %v1392 = vadd.f32 %v1390, %v1391
    %v1393 = vrcp.pop %v1392
    %v1394 = vmul.f32 1.0, %v1393
    %v1395 = vlaneseq
    %v1396 = vshrl.u32 %v1395, 7
    %v1397 = vsub.s32 0, %v1396
    %v1398 = vrot.slane %v1394, %v1397
    %v1399 = vmul.f32 %v1341, %v1398
    %v1400 = vmul.f32 %v1343, %v1398
    %v1401 = vmul.f32 %v1345, %v1398
    %v1402 = vmul.f32 %v1347, %v1398
    %v1403 = vmul.f32 %v1349, %v1398
    %v1404 = vmul.f32 %v1351, %v1398
    %v1405 = vmul.f32 %v1353, %v1398
    %v1406 = vmul.f32 %v1355, %v1398
    %v1408 = vrot.slane %v822, 1
    %v1409 = vrot.slane %v822, 2
    %v1410 = vrot.slane %v822, 3
    %v1411 = vrot.slane %v822, 4
    %v1412 = vrot.slane %v822, 5
    %v1413 = vrot.slane %v822, 6
    %v1414 = vrot.slane %v822, 7
    %v1423 = vmul.f32 %v1399, %v822
    %v1424 = vmul.f32 %v1400, %v1408
    %v1425 = vmul.f32 %v1401, %v1409
    %v1426 = vmul.f32 %v1402, %v1410
    %v1427 = vmul.f32 %v1403, %v1411
    %v1428 = vmul.f32 %v1404, %v1412
    %v1429 = vmul.f32 %v1405, %v1413
    %v1430 = vmul.f32 %v1406, %v1414
    %v1439 = vrot.slane %v1424, 7
    %v1440 = vsel %vm1365, %v1439, %v1423
    %v1441 = vrot.slane %v1425, 6
    %v1442 = vsel %vm1368, %v1441, %v1440
    %v1443 = vrot.slane %v1426, 5
    %v1444 = vsel %vm1371, %v1443, %v1442
    %v1445 = vrot.slane %v1427, 4
    %v1446 = vsel %vm1374, %v1445, %v1444
    %v1447 = vrot.slane %v1428, 3
    %v1448 = vsel %vm1377, %v1447, %v1446
    %v1449 = vrot.slane %v1429, 2
    %v1450 = vsel %vm1380, %v1449, %v1448
    %v1451 = vrot.slane %v1430, 1
    %v1452 = vsel %vm1383, %v1451, %v1450
    %1454 = vst.msk [vmem:[#allocation2] sm:$0xff] %vm1212, %v1452
    %v1455 = vmul.f32 %v882, %v1022
    %v1456 = vmul.f32 %v887, %v1027
    %v1457 = vmul.f32 %v892, %v1032
    %v1458 = vmul.f32 %v897, %v1037
    %v1459 = vmul.f32 %v882, %v1042
    %v1460 = vmul.f32 %v887, %v1047
    %v1461 = vmul.f32 %v892, %v1052
    %v1462 = vmul.f32 %v897, %v1057
    %v1463 = vmul.f32 %v882, %v1062
    %v1464 = vmul.f32 %v887, %v1067
    %v1465 = vmul.f32 %v892, %v1072
    %v1466 = vmul.f32 %v897, %v1077
    %v1467 = vmul.f32 %v882, %v1082
    %v1468 = vmul.f32 %v887, %v1087
    %v1469 = vmul.f32 %v892, %v1092
    %v1470 = vmul.f32 %v897, %v1097
    %v1471 = vmul.f32 %v882, %v1102
    %v1472 = vmul.f32 %v887, %v1107
    %v1473 = vmul.f32 %v892, %v1112
    %v1474 = vmul.f32 %v897, %v1117
    %v1475 = vmul.f32 %v882, %v1122
    %v1476 = vmul.f32 %v887, %v1127
    %v1477 = vmul.f32 %v892, %v1132
    %v1478 = vmul.f32 %v897, %v1137
    %v1479 = vmul.f32 %v882, %v1142
    %v1480 = vmul.f32 %v887, %v1147
    %v1481 = vmul.f32 %v892, %v1152
    %v1482 = vmul.f32 %v897, %v1157
    %v1483 = vmul.f32 %v882, %v1162
    %v1484 = vmul.f32 %v887, %v1167
    %v1485 = vmul.f32 %v892, %v1172
    %v1486 = vmul.f32 %v897, %v1177
    %v1487 = vsel %vm1212, %v1455, 0.0
    %v1488 = vsel %vm1212, %v1456, 0.0
    %v1489 = vadd.f32 %v1487, %v1488
    %v1490 = vsel %vm1212, %v1457, 0.0
    %v1491 = vadd.f32 %v1489, %v1490
    %v1492 = vsel %vm1212, %v1458, 0.0
    %v1493 = vadd.f32 %v1491, %v1492
    %v1494 = vrot.slane %v1493, 4
    %v1495 = vadd.f32 %v1493, %v1494
    %v1496 = vrot.slane %v1495, 2
    %v1497 = vadd.f32 %v1495, %v1496
    %v1498 = vrot.slane %v1497, 1
    %v1499 = vadd.f32 %v1497, %v1498
    %v1500 = vsel %vm1212, %v1459, 0.0
    %v1501 = vsel %vm1212, %v1460, 0.0
    %v1502 = vadd.f32 %v1500, %v1501
    %v1503 = vsel %vm1212, %v1461, 0.0
    %v1504 = vadd.f32 %v1502, %v1503
    %v1505 = vsel %vm1212, %v1462, 0.0
    %v1506 = vadd.f32 %v1504, %v1505
    %v1507 = vrot.slane %v1506, 4
    %v1508 = vadd.f32 %v1506, %v1507
    %v1509 = vrot.slane %v1508, 2
    %v1510 = vadd.f32 %v1508, %v1509
    %v1511 = vrot.slane %v1510, 1
    %v1512 = vadd.f32 %v1510, %v1511
    %v1513 = vsel %vm1212, %v1463, 0.0
    %v1514 = vsel %vm1212, %v1464, 0.0
    %v1515 = vadd.f32 %v1513, %v1514
    %v1516 = vsel %vm1212, %v1465, 0.0
    %v1517 = vadd.f32 %v1515, %v1516
    %v1518 = vsel %vm1212, %v1466, 0.0
    %v1519 = vadd.f32 %v1517, %v1518
    %v1520 = vrot.slane %v1519, 4
    %v1521 = vadd.f32 %v1519, %v1520
    %v1522 = vrot.slane %v1521, 2
    %v1523 = vadd.f32 %v1521, %v1522
    %v1524 = vrot.slane %v1523, 1
    %v1525 = vadd.f32 %v1523, %v1524
    %v1526 = vsel %vm1212, %v1467, 0.0
    %v1527 = vsel %vm1212, %v1468, 0.0
    %v1528 = vadd.f32 %v1526, %v1527
    %v1529 = vsel %vm1212, %v1469, 0.0
    %v1530 = vadd.f32 %v1528, %v1529
    %v1531 = vsel %vm1212, %v1470, 0.0
    %v1532 = vadd.f32 %v1530, %v1531
    %v1533 = vrot.slane %v1532, 4
    %v1534 = vadd.f32 %v1532, %v1533
    %v1535 = vrot.slane %v1534, 2
    %v1536 = vadd.f32 %v1534, %v1535
    %v1537 = vrot.slane %v1536, 1
    %v1538 = vadd.f32 %v1536, %v1537
    %v1539 = vsel %vm1212, %v1471, 0.0
    %v1540 = vsel %vm1212, %v1472, 0.0
    %v1541 = vadd.f32 %v1539, %v1540
    %v1542 = vsel %vm1212, %v1473, 0.0
    %v1543 = vadd.f32 %v1541, %v1542
    %v1544 = vsel %vm1212, %v1474, 0.0
    %v1545 = vadd.f32 %v1543, %v1544
    %v1546 = vrot.slane %v1545, 4
    %v1547 = vadd.f32 %v1545, %v1546
    %v1548 = vrot.slane %v1547, 2
    %v1549 = vadd.f32 %v1547, %v1548
    %v1550 = vrot.slane %v1549, 1
    %v1551 = vadd.f32 %v1549, %v1550
    %v1552 = vsel %vm1212, %v1475, 0.0
    %v1553 = vsel %vm1212, %v1476, 0.0
    %v1554 = vadd.f32 %v1552, %v1553
    %v1555 = vsel %vm1212, %v1477, 0.0
    %v1556 = vadd.f32 %v1554, %v1555
    %v1557 = vsel %vm1212, %v1478, 0.0
    %v1558 = vadd.f32 %v1556, %v1557
    %v1559 = vrot.slane %v1558, 4
    %v1560 = vadd.f32 %v1558, %v1559
    %v1561 = vrot.slane %v1560, 2
    %v1562 = vadd.f32 %v1560, %v1561
    %v1563 = vrot.slane %v1562, 1
    %v1564 = vadd.f32 %v1562, %v1563
    %v1565 = vsel %vm1212, %v1479, 0.0
    %v1566 = vsel %vm1212, %v1480, 0.0
    %v1567 = vadd.f32 %v1565, %v1566
    %v1568 = vsel %vm1212, %v1481, 0.0
    %v1569 = vadd.f32 %v1567, %v1568
    %v1570 = vsel %vm1212, %v1482, 0.0
    %v1571 = vadd.f32 %v1569, %v1570
    %v1572 = vrot.slane %v1571, 4
    %v1573 = vadd.f32 %v1571, %v1572
    %v1574 = vrot.slane %v1573, 2
    %v1575 = vadd.f32 %v1573, %v1574
    %v1576 = vrot.slane %v1575, 1
    %v1577 = vadd.f32 %v1575, %v1576
    %v1578 = vsel %vm1212, %v1483, 0.0
    %v1579 = vsel %vm1212, %v1484, 0.0
    %v1580 = vadd.f32 %v1578, %v1579
    %v1581 = vsel %vm1212, %v1485, 0.0
    %v1582 = vadd.f32 %v1580, %v1581
    %v1583 = vsel %vm1212, %v1486, 0.0
    %v1584 = vadd.f32 %v1582, %v1583
    %v1585 = vrot.slane %v1584, 4
    %v1586 = vadd.f32 %v1584, %v1585
    %v1587 = vrot.slane %v1586, 2
    %v1588 = vadd.f32 %v1586, %v1587
    %v1589 = vrot.slane %v1588, 1
    %v1590 = vadd.f32 %v1588, %v1589
    %v1591 = vsel %vm1212, %v1499, -inf
    %v1592 = vsel %vm1212, %v1512, -inf
    %v1593 = vsel %vm1212, %v1525, -inf
    %v1594 = vsel %vm1212, %v1538, -inf
    %v1595 = vsel %vm1212, %v1551, -inf
    %v1596 = vmax.f32 %v1591, %v1595
    %v1597 = vsel %vm1212, %v1564, -inf
    %v1598 = vmax.f32 %v1592, %v1597
    %v1599 = vsel %vm1212, %v1577, -inf
    %v1600 = vmax.f32 %v1593, %v1599
    %v1601 = vsel %vm1212, %v1590, -inf
    %v1602 = vmax.f32 %v1594, %v1601
    %v1603 = vmax.f32 %v1596, %v1598
    %v1604 = vmax.f32 %v1600, %v1602
    %v1605 = vmax.f32 %v1603, %v1604
    %v1606 = vsub.f32 %v1499, %v1605
    %v1607 = vsub.f32 %v1512, %v1605
    %v1608 = vsub.f32 %v1525, %v1605
    %v1609 = vsub.f32 %v1538, %v1605
    %v1610 = vsub.f32 %v1551, %v1605
    %v1611 = vsub.f32 %v1564, %v1605
    %v1612 = vsub.f32 %v1577, %v1605
    %v1613 = vsub.f32 %v1590, %v1605
    %v1614 = vmul.f32 %v1606, 1.442695
    %v1615 = vpow.pop %v1614
    %v1616 = vmul.f32 %v1607, 1.442695
    %v1617 = vpow.pop %v1616
    %v1618 = vmul.f32 %v1608, 1.442695
    %v1619 = vpow.pop %v1618
    %v1620 = vmul.f32 %v1609, 1.442695
    %v1621 = vpow.pop %v1620
    %v1622 = vmul.f32 %v1610, 1.442695
    %v1623 = vpow.pop %v1622
    %v1624 = vmul.f32 %v1611, 1.442695
    %v1625 = vpow.pop %v1624
    %v1626 = vmul.f32 %v1612, 1.442695
    %v1627 = vpow.pop %v1626
    %v1628 = vmul.f32 %v1613, 1.442695
    %v1629 = vpow.pop %v1628
    %v1638 = vrot.slane %v1617, 7
    %v1639 = vsel %vm1365, %v1638, %v1615
    %v1640 = vrot.slane %v1619, 6
    %v1641 = vsel %vm1368, %v1640, %v1639
    %v1642 = vrot.slane %v1621, 5
    %v1643 = vsel %vm1371, %v1642, %v1641
    %v1644 = vrot.slane %v1623, 4
    %v1645 = vsel %vm1374, %v1644, %v1643
    %v1646 = vrot.slane %v1625, 3
    %v1647 = vsel %vm1377, %v1646, %v1645
    %v1648 = vrot.slane %v1627, 2
    %v1649 = vsel %vm1380, %v1648, %v1647
    %v1650 = vrot.slane %v1629, 1
    %v1651 = vsel %vm1383, %v1650, %v1649
    %v1653 = vsel %vm1212, %v1651, 0.0
    %v1654 = vrot.slane %v1653, 4
    %v1655 = vadd.f32 %v1653, %v1654
    %v1656 = vrot.slane %v1655, 2
    %v1657 = vadd.f32 %v1655, %v1656
    %v1658 = vrot.slane %v1657, 1
    %v1659 = vadd.f32 %v1657, %v1658
    %v1660 = vrcp.pop %v1659
    %v1661 = vmul.f32 1.0, %v1660
    %v1662 = vlaneseq
    %v1663 = vshrl.u32 %v1662, 7
    %v1664 = vsub.s32 0, %v1663
    %v1665 = vrot.slane %v1661, %v1664
    %v1666 = vmul.f32 %v1615, %v1665
    %v1667 = vmul.f32 %v1617, %v1665
    %v1668 = vmul.f32 %v1619, %v1665
    %v1669 = vmul.f32 %v1621, %v1665
    %v1670 = vmul.f32 %v1623, %v1665
    %v1671 = vmul.f32 %v1625, %v1665
    %v1672 = vmul.f32 %v1627, %v1665
    %v1673 = vmul.f32 %v1629, %v1665
    %v1675 = vrot.slane %v827, 1
    %v1676 = vrot.slane %v827, 2
    %v1677 = vrot.slane %v827, 3
    %v1678 = vrot.slane %v827, 4
    %v1679 = vrot.slane %v827, 5
    %v1680 = vrot.slane %v827, 6
    %v1681 = vrot.slane %v827, 7
    %v1690 = vmul.f32 %v1666, %v827
    %v1691 = vmul.f32 %v1667, %v1675
    %v1692 = vmul.f32 %v1668, %v1676
    %v1693 = vmul.f32 %v1669, %v1677
    %v1694 = vmul.f32 %v1670, %v1678
    %v1695 = vmul.f32 %v1671, %v1679
    %v1696 = vmul.f32 %v1672, %v1680
    %v1697 = vmul.f32 %v1673, %v1681
    %v1706 = vrot.slane %v1691, 7
    %v1707 = vsel %vm1365, %v1706, %v1690
    %v1708 = vrot.slane %v1692, 6
    %v1709 = vsel %vm1368, %v1708, %v1707
    %v1710 = vrot.slane %v1693, 5
    %v1711 = vsel %vm1371, %v1710, %v1709
    %v1712 = vrot.slane %v1694, 4
    %v1713 = vsel %vm1374, %v1712, %v1711
    %v1714 = vrot.slane %v1695, 3
    %v1715 = vsel %vm1377, %v1714, %v1713
    %v1716 = vrot.slane %v1696, 2
    %v1717 = vsel %vm1380, %v1716, %v1715
    %v1718 = vrot.slane %v1697, 1
    %v1719 = vsel %vm1383, %v1718, %v1717
    %1721 = vst.msk [vmem:[#allocation2 + $0x8] sm:$0xff] %vm1212, %v1719
    %v1722 = vmul.f32 %v902, %v1022
    %v1723 = vmul.f32 %v907, %v1027
    %v1724 = vmul.f32 %v912, %v1032
    %v1725 = vmul.f32 %v917, %v1037
    %v1726 = vmul.f32 %v902, %v1042
    %v1727 = vmul.f32 %v907, %v1047
    %v1728 = vmul.f32 %v912, %v1052
    %v1729 = vmul.f32 %v917, %v1057
    %v1730 = vmul.f32 %v902, %v1062
    %v1731 = vmul.f32 %v907, %v1067
    %v1732 = vmul.f32 %v912, %v1072
    %v1733 = vmul.f32 %v917, %v1077
    %v1734 = vmul.f32 %v902, %v1082
    %v1735 = vmul.f32 %v907, %v1087
    %v1736 = vmul.f32 %v912, %v1092
    %v1737 = vmul.f32 %v917, %v1097
    %v1738 = vmul.f32 %v902, %v1102
    %v1739 = vmul.f32 %v907, %v1107
    %v1740 = vmul.f32 %v912, %v1112
    %v1741 = vmul.f32 %v917, %v1117
    %v1742 = vmul.f32 %v902, %v1122
    %v1743 = vmul.f32 %v907, %v1127
    %v1744 = vmul.f32 %v912, %v1132
    %v1745 = vmul.f32 %v917, %v1137
    %v1746 = vmul.f32 %v902, %v1142
    %v1747 = vmul.f32 %v907, %v1147
    %v1748 = vmul.f32 %v912, %v1152
    %v1749 = vmul.f32 %v917, %v1157
    %v1750 = vmul.f32 %v902, %v1162
    %v1751 = vmul.f32 %v907, %v1167
    %v1752 = vmul.f32 %v912, %v1172
    %v1753 = vmul.f32 %v917, %v1177
    %v1754 = vsel %vm1212, %v1722, 0.0
    %v1755 = vsel %vm1212, %v1723, 0.0
    %v1756 = vadd.f32 %v1754, %v1755
    %v1757 = vsel %vm1212, %v1724, 0.0
    %v1758 = vadd.f32 %v1756, %v1757
    %v1759 = vsel %vm1212, %v1725, 0.0
    %v1760 = vadd.f32 %v1758, %v1759
    %v1761 = vrot.slane %v1760, 4
    %v1762 = vadd.f32 %v1760, %v1761
    %v1763 = vrot.slane %v1762, 2
    %v1764 = vadd.f32 %v1762, %v1763
    %v1765 = vrot.slane %v1764, 1
    %v1766 = vadd.f32 %v1764, %v1765
    %v1767 = vsel %vm1212, %v1726, 0.0
    %v1768 = vsel %vm1212, %v1727, 0.0
    %v1769 = vadd.f32 %v1767, %v1768
    %v1770 = vsel %vm1212, %v1728, 0.0
    %v1771 = vadd.f32 %v1769, %v1770
    %v1772 = vsel %vm1212, %v1729, 0.0
    %v1773 = vadd.f32 %v1771, %v1772
    %v1774 = vrot.slane %v1773, 4
    %v1775 = vadd.f32 %v1773, %v1774
    %v1776 = vrot.slane %v1775, 2
    %v1777 = vadd.f32 %v1775, %v1776
    %v1778 = vrot.slane %v1777, 1
    %v1779 = vadd.f32 %v1777, %v1778
    %v1780 = vsel %vm1212, %v1730, 0.0
    %v1781 = vsel %vm1212, %v1731, 0.0
    %v1782 = vadd.f32 %v1780, %v1781
    %v1783 = vsel %vm1212, %v1732, 0.0
    %v1784 = vadd.f32 %v1782, %v1783
    %v1785 = vsel %vm1212, %v1733, 0.0
    %v1786 = vadd.f32 %v1784, %v1785
    %v1787 = vrot.slane %v1786, 4
    %v1788 = vadd.f32 %v1786, %v1787
    %v1789 = vrot.slane %v1788, 2
    %v1790 = vadd.f32 %v1788, %v1789
    %v1791 = vrot.slane %v1790, 1
    %v1792 = vadd.f32 %v1790, %v1791
    %v1793 = vsel %vm1212, %v1734, 0.0
    %v1794 = vsel %vm1212, %v1735, 0.0
    %v1795 = vadd.f32 %v1793, %v1794
    %v1796 = vsel %vm1212, %v1736, 0.0
    %v1797 = vadd.f32 %v1795, %v1796
    %v1798 = vsel %vm1212, %v1737, 0.0
    %v1799 = vadd.f32 %v1797, %v1798
    %v1800 = vrot.slane %v1799, 4
    %v1801 = vadd.f32 %v1799, %v1800
    %v1802 = vrot.slane %v1801, 2
    %v1803 = vadd.f32 %v1801, %v1802
    %v1804 = vrot.slane %v1803, 1
    %v1805 = vadd.f32 %v1803, %v1804
    %v1806 = vsel %vm1212, %v1738, 0.0
    %v1807 = vsel %vm1212, %v1739, 0.0
    %v1808 = vadd.f32 %v1806, %v1807
    %v1809 = vsel %vm1212, %v1740, 0.0
    %v1810 = vadd.f32 %v1808, %v1809
    %v1811 = vsel %vm1212, %v1741, 0.0
    %v1812 = vadd.f32 %v1810, %v1811
    %v1813 = vrot.slane %v1812, 4
    %v1814 = vadd.f32 %v1812, %v1813
    %v1815 = vrot.slane %v1814, 2
    %v1816 = vadd.f32 %v1814, %v1815
    %v1817 = vrot.slane %v1816, 1
    %v1818 = vadd.f32 %v1816, %v1817
    %v1819 = vsel %vm1212, %v1742, 0.0
    %v1820 = vsel %vm1212, %v1743, 0.0
    %v1821 = vadd.f32 %v1819, %v1820
    %v1822 = vsel %vm1212, %v1744, 0.0
    %v1823 = vadd.f32 %v1821, %v1822
    %v1824 = vsel %vm1212, %v1745, 0.0
    %v1825 = vadd.f32 %v1823, %v1824
    %v1826 = vrot.slane %v1825, 4
    %v1827 = vadd.f32 %v1825, %v1826
    %v1828 = vrot.slane %v1827, 2
    %v1829 = vadd.f32 %v1827, %v1828
    %v1830 = vrot.slane %v1829, 1
    %v1831 = vadd.f32 %v1829, %v1830
    %v1832 = vsel %vm1212, %v1746, 0.0
    %v1833 = vsel %vm1212, %v1747, 0.0
    %v1834 = vadd.f32 %v1832, %v1833
    %v1835 = vsel %vm1212, %v1748, 0.0
    %v1836 = vadd.f32 %v1834, %v1835
    %v1837 = vsel %vm1212, %v1749, 0.0
    %v1838 = vadd.f32 %v1836, %v1837
    %v1839 = vrot.slane %v1838, 4
    %v1840 = vadd.f32 %v1838, %v1839
    %v1841 = vrot.slane %v1840, 2
    %v1842 = vadd.f32 %v1840, %v1841
    %v1843 = vrot.slane %v1842, 1
    %v1844 = vadd.f32 %v1842, %v1843
    %v1845 = vsel %vm1212, %v1750, 0.0
    %v1846 = vsel %vm1212, %v1751, 0.0
    %v1847 = vadd.f32 %v1845, %v1846
    %v1848 = vsel %vm1212, %v1752, 0.0
    %v1849 = vadd.f32 %v1847, %v1848
    %v1850 = vsel %vm1212, %v1753, 0.0
    %v1851 = vadd.f32 %v1849, %v1850
    %v1852 = vrot.slane %v1851, 4
    %v1853 = vadd.f32 %v1851, %v1852
    %v1854 = vrot.slane %v1853, 2
    %v1855 = vadd.f32 %v1853, %v1854
    %v1856 = vrot.slane %v1855, 1
    %v1857 = vadd.f32 %v1855, %v1856
    %v1858 = vsel %vm1212, %v1766, -inf
    %v1859 = vsel %vm1212, %v1779, -inf
    %v1860 = vsel %vm1212, %v1792, -inf
    %v1861 = vsel %vm1212, %v1805, -inf
    %v1862 = vsel %vm1212, %v1818, -inf
    %v1863 = vmax.f32 %v1858, %v1862
    %v1864 = vsel %vm1212, %v1831, -inf
    %v1865 = vmax.f32 %v1859, %v1864
    %v1866 = vsel %vm1212, %v1844, -inf
    %v1867 = vmax.f32 %v1860, %v1866
    %v1868 = vsel %vm1212, %v1857, -inf
    %v1869 = vmax.f32 %v1861, %v1868
    %v1870 = vmax.f32 %v1863, %v1865
    %v1871 = vmax.f32 %v1867, %v1869
    %v1872 = vmax.f32 %v1870, %v1871
    %v1873 = vsub.f32 %v1766, %v1872
    %v1874 = vsub.f32 %v1779, %v1872
    %v1875 = vsub.f32 %v1792, %v1872
    %v1876 = vsub.f32 %v1805, %v1872
    %v1877 = vsub.f32 %v1818, %v1872
    %v1878 = vsub.f32 %v1831, %v1872
    %v1879 = vsub.f32 %v1844, %v1872
    %v1880 = vsub.f32 %v1857, %v1872
    %v1881 = vmul.f32 %v1873, 1.442695
    %v1882 = vpow.pop %v1881
    %v1883 = vmul.f32 %v1874, 1.442695
    %v1884 = vpow.pop %v1883
    %v1885 = vmul.f32 %v1875, 1.442695
    %v1886 = vpow.pop %v1885
    %v1887 = vmul.f32 %v1876, 1.442695
    %v1888 = vpow.pop %v1887
    %v1889 = vmul.f32 %v1877, 1.442695
    %v1890 = vpow.pop %v1889
    %v1891 = vmul.f32 %v1878, 1.442695
    %v1892 = vpow.pop %v1891
    %v1893 = vmul.f32 %v1879, 1.442695
    %v1894 = vpow.pop %v1893
    %v1895 = vmul.f32 %v1880, 1.442695
    %v1896 = vpow.pop %v1895
    %v1905 = vrot.slane %v1884, 7
    %v1906 = vsel %vm1365, %v1905, %v1882
    %v1907 = vrot.slane %v1886, 6
    %v1908 = vsel %vm1368, %v1907, %v1906
    %v1909 = vrot.slane %v1888, 5
    %v1910 = vsel %vm1371, %v1909, %v1908
    %v1911 = vrot.slane %v1890, 4
    %v1912 = vsel %vm1374, %v1911, %v1910
    %v1913 = vrot.slane %v1892, 3
    %v1914 = vsel %vm1377, %v1913, %v1912
    %v1915 = vrot.slane %v1894, 2
    %v1916 = vsel %vm1380, %v1915, %v1914
    %v1917 = vrot.slane %v1896, 1
    %v1918 = vsel %vm1383, %v1917, %v1916
    %v1920 = vsel %vm1212, %v1918, 0.0
    %v1921 = vrot.slane %v1920, 4
    %v1922 = vadd.f32 %v1920, %v1921
    %v1923 = vrot.slane %v1922, 2
    %v1924 = vadd.f32 %v1922, %v1923
    %v1925 = vrot.slane %v1924, 1
    %v1926 = vadd.f32 %v1924, %v1925
    %v1927 = vrcp.pop %v1926
    %v1928 = vmul.f32 1.0, %v1927
    %v1929 = vlaneseq
    %v1930 = vshrl.u32 %v1929, 7
    %v1931 = vsub.s32 0, %v1930
    %v1932 = vrot.slane %v1928, %v1931
    %v1933 = vmul.f32 %v1882, %v1932
    %v1934 = vmul.f32 %v1884, %v1932
    %v1935 = vmul.f32 %v1886, %v1932
    %v1936 = vmul.f32 %v1888, %v1932
    %v1937 = vmul.f32 %v1890, %v1932
    %v1938 = vmul.f32 %v1892, %v1932
    %v1939 = vmul.f32 %v1894, %v1932
    %v1940 = vmul.f32 %v1896, %v1932
    %v1942 = vrot.slane %v832, 1
    %v1943 = vrot.slane %v832, 2
    %v1944 = vrot.slane %v832, 3
    %v1945 = vrot.slane %v832, 4
    %v1946 = vrot.slane %v832, 5
    %v1947 = vrot.slane %v832, 6
    %v1948 = vrot.slane %v832, 7
    %v1957 = vmul.f32 %v1933, %v832
    %v1958 = vmul.f32 %v1934, %v1942
    %v1959 = vmul.f32 %v1935, %v1943
    %v1960 = vmul.f32 %v1936, %v1944
    %v1961 = vmul.f32 %v1937, %v1945
    %v1962 = vmul.f32 %v1938, %v1946
    %v1963 = vmul.f32 %v1939, %v1947
    %v1964 = vmul.f32 %v1940, %v1948
    %v1973 = vrot.slane %v1958, 7
    %v1974 = vsel %vm1365, %v1973, %v1957
    %v1975 = vrot.slane %v1959, 6
    %v1976 = vsel %vm1368, %v1975, %v1974
    %v1977 = vrot.slane %v1960, 5
    %v1978 = vsel %vm1371, %v1977, %v1976
    %v1979 = vrot.slane %v1961, 4
    %v1980 = vsel %vm1374, %v1979, %v1978
    %v1981 = vrot.slane %v1962, 3
    %v1982 = vsel %vm1377, %v1981, %v1980
    %v1983 = vrot.slane %v1963, 2
    %v1984 = vsel %vm1380, %v1983, %v1982
    %v1985 = vrot.slane %v1964, 1
    %v1986 = vsel %vm1383, %v1985, %v1984
    %1988 = vst.msk [vmem:[#allocation2 + $0x10] sm:$0xff] %vm1212, %v1986
    %v1989 = vmul.f32 %v922, %v1022
    %v1990 = vmul.f32 %v927, %v1027
    %v1991 = vmul.f32 %v932, %v1032
    %v1992 = vmul.f32 %v937, %v1037
    %v1993 = vmul.f32 %v922, %v1042
    %v1994 = vmul.f32 %v927, %v1047
    %v1995 = vmul.f32 %v932, %v1052
    %v1996 = vmul.f32 %v937, %v1057
    %v1997 = vmul.f32 %v922, %v1062
    %v1998 = vmul.f32 %v927, %v1067
    %v1999 = vmul.f32 %v932, %v1072
    %v2000 = vmul.f32 %v937, %v1077
    %v2001 = vmul.f32 %v922, %v1082
    %v2002 = vmul.f32 %v927, %v1087
    %v2003 = vmul.f32 %v932, %v1092
    %v2004 = vmul.f32 %v937, %v1097
    %v2005 = vmul.f32 %v922, %v1102
    %v2006 = vmul.f32 %v927, %v1107
    %v2007 = vmul.f32 %v932, %v1112
    %v2008 = vmul.f32 %v937, %v1117
    %v2009 = vmul.f32 %v922, %v1122
    %v2010 = vmul.f32 %v927, %v1127
    %v2011 = vmul.f32 %v932, %v1132
    %v2012 = vmul.f32 %v937, %v1137
    %v2013 = vmul.f32 %v922, %v1142
    %v2014 = vmul.f32 %v927, %v1147
    %v2015 = vmul.f32 %v932, %v1152
    %v2016 = vmul.f32 %v937, %v1157
    %v2017 = vmul.f32 %v922, %v1162
    %v2018 = vmul.f32 %v927, %v1167
    %v2019 = vmul.f32 %v932, %v1172
    %v2020 = vmul.f32 %v937, %v1177
    %v2021 = vsel %vm1212, %v1989, 0.0
    %v2022 = vsel %vm1212, %v1990, 0.0
    %v2023 = vadd.f32 %v2021, %v2022
    %v2024 = vsel %vm1212, %v1991, 0.0
    %v2025 = vadd.f32 %v2023, %v2024
    %v2026 = vsel %vm1212, %v1992, 0.0
    %v2027 = vadd.f32 %v2025, %v2026
    %v2028 = vrot.slane %v2027, 4
    %v2029 = vadd.f32 %v2027, %v2028
    %v2030 = vrot.slane %v2029, 2
    %v2031 = vadd.f32 %v2029, %v2030
    %v2032 = vrot.slane %v2031, 1
    %v2033 = vadd.f32 %v2031, %v2032
    %v2034 = vsel %vm1212, %v1993, 0.0
    %v2035 = vsel %vm1212, %v1994, 0.0
    %v2036 = vadd.f32 %v2034, %v2035
    %v2037 = vsel %vm1212, %v1995, 0.0
    %v2038 = vadd.f32 %v2036, %v2037
    %v2039 = vsel %vm1212, %v1996, 0.0
    %v2040 = vadd.f32 %v2038, %v2039
    %v2041 = vrot.slane %v2040, 4
    %v2042 = vadd.f32 %v2040, %v2041
    %v2043 = vrot.slane %v2042, 2
    %v2044 = vadd.f32 %v2042, %v2043
    %v2045 = vrot.slane %v2044, 1
    %v2046 = vadd.f32 %v2044, %v2045
    %v2047 = vsel %vm1212, %v1997, 0.0
    %v2048 = vsel %vm1212, %v1998, 0.0
    %v2049 = vadd.f32 %v2047, %v2048
    %v2050 = vsel %vm1212, %v1999, 0.0
    %v2051 = vadd.f32 %v2049, %v2050
    %v2052 = vsel %vm1212, %v2000, 0.0
    %v2053 = vadd.f32 %v2051, %v2052
    %v2054 = vrot.slane %v2053, 4
    %v2055 = vadd.f32 %v2053, %v2054
    %v2056 = vrot.slane %v2055, 2
    %v2057 = vadd.f32 %v2055, %v2056
    %v2058 = vrot.slane %v2057, 1
    %v2059 = vadd.f32 %v2057, %v2058
    %v2060 = vsel %vm1212, %v2001, 0.0
    %v2061 = vsel %vm1212, %v2002, 0.0
    %v2062 = vadd.f32 %v2060, %v2061
    %v2063 = vsel %vm1212, %v2003, 0.0
    %v2064 = vadd.f32 %v2062, %v2063
    %v2065 = vsel %vm1212, %v2004, 0.0
    %v2066 = vadd.f32 %v2064, %v2065
    %v2067 = vrot.slane %v2066, 4
    %v2068 = vadd.f32 %v2066, %v2067
    %v2069 = vrot.slane %v2068, 2
    %v2070 = vadd.f32 %v2068, %v2069
    %v2071 = vrot.slane %v2070, 1
    %v2072 = vadd.f32 %v2070, %v2071
    %v2073 = vsel %vm1212, %v2005, 0.0
    %v2074 = vsel %vm1212, %v2006, 0.0
    %v2075 = vadd.f32 %v2073, %v2074
    %v2076 = vsel %vm1212, %v2007, 0.0
    %v2077 = vadd.f32 %v2075, %v2076
    %v2078 = vsel %vm1212, %v2008, 0.0
    %v2079 = vadd.f32 %v2077, %v2078
    %v2080 = vrot.slane %v2079, 4
    %v2081 = vadd.f32 %v2079, %v2080
    %v2082 = vrot.slane %v2081, 2
    %v2083 = vadd.f32 %v2081, %v2082
    %v2084 = vrot.slane %v2083, 1
    %v2085 = vadd.f32 %v2083, %v2084
    %v2086 = vsel %vm1212, %v2009, 0.0
    %v2087 = vsel %vm1212, %v2010, 0.0
    %v2088 = vadd.f32 %v2086, %v2087
    %v2089 = vsel %vm1212, %v2011, 0.0
    %v2090 = vadd.f32 %v2088, %v2089
    %v2091 = vsel %vm1212, %v2012, 0.0
    %v2092 = vadd.f32 %v2090, %v2091
    %v2093 = vrot.slane %v2092, 4
    %v2094 = vadd.f32 %v2092, %v2093
    %v2095 = vrot.slane %v2094, 2
    %v2096 = vadd.f32 %v2094, %v2095
    %v2097 = vrot.slane %v2096, 1
    %v2098 = vadd.f32 %v2096, %v2097
    %v2099 = vsel %vm1212, %v2013, 0.0
    %v2100 = vsel %vm1212, %v2014, 0.0
    %v2101 = vadd.f32 %v2099, %v2100
    %v2102 = vsel %vm1212, %v2015, 0.0
    %v2103 = vadd.f32 %v2101, %v2102
    %v2104 = vsel %vm1212, %v2016, 0.0
    %v2105 = vadd.f32 %v2103, %v2104
    %v2106 = vrot.slane %v2105, 4
    %v2107 = vadd.f32 %v2105, %v2106
    %v2108 = vrot.slane %v2107, 2
    %v2109 = vadd.f32 %v2107, %v2108
    %v2110 = vrot.slane %v2109, 1
    %v2111 = vadd.f32 %v2109, %v2110
    %v2112 = vsel %vm1212, %v2017, 0.0
    %v2113 = vsel %vm1212, %v2018, 0.0
    %v2114 = vadd.f32 %v2112, %v2113
    %v2115 = vsel %vm1212, %v2019, 0.0
    %v2116 = vadd.f32 %v2114, %v2115
    %v2117 = vsel %vm1212, %v2020, 0.0
    %v2118 = vadd.f32 %v2116, %v2117
    %v2119 = vrot.slane %v2118, 4
    %v2120 = vadd.f32 %v2118, %v2119
    %v2121 = vrot.slane %v2120, 2
    %v2122 = vadd.f32 %v2120, %v2121
    %v2123 = vrot.slane %v2122, 1
    %v2124 = vadd.f32 %v2122, %v2123
    %v2125 = vsel %vm1212, %v2033, -inf
    %v2126 = vsel %vm1212, %v2046, -inf
    %v2127 = vsel %vm1212, %v2059, -inf
    %v2128 = vsel %vm1212, %v2072, -inf
    %v2129 = vsel %vm1212, %v2085, -inf
    %v2130 = vmax.f32 %v2125, %v2129
    %v2131 = vsel %vm1212, %v2098, -inf
    %v2132 = vmax.f32 %v2126, %v2131
    %v2133 = vsel %vm1212, %v2111, -inf
    %v2134 = vmax.f32 %v2127, %v2133
    %v2135 = vsel %vm1212, %v2124, -inf
    %v2136 = vmax.f32 %v2128, %v2135
    %v2137 = vmax.f32 %v2130, %v2132
    %v2138 = vmax.f32 %v2134, %v2136
    %v2139 = vmax.f32 %v2137, %v2138
    %v2140 = vsub.f32 %v2033, %v2139
    %v2141 = vsub.f32 %v2046, %v2139
    %v2142 = vsub.f32 %v2059, %v2139
    %v2143 = vsub.f32 %v2072, %v2139
    %v2144 = vsub.f32 %v2085, %v2139
    %v2145 = vsub.f32 %v2098, %v2139
    %v2146 = vsub.f32 %v2111, %v2139
    %v2147 = vsub.f32 %v2124, %v2139
    %v2148 = vmul.f32 %v2140, 1.442695
    %v2149 = vpow.pop %v2148
    %v2150 = vmul.f32 %v2141, 1.442695
    %v2151 = vpow.pop %v2150
    %v2152 = vmul.f32 %v2142, 1.442695
    %v2153 = vpow.pop %v2152
    %v2154 = vmul.f32 %v2143, 1.442695
    %v2155 = vpow.pop %v2154
    %v2156 = vmul.f32 %v2144, 1.442695
    %v2157 = vpow.pop %v2156
    %v2158 = vmul.f32 %v2145, 1.442695
    %v2159 = vpow.pop %v2158
    %v2160 = vmul.f32 %v2146, 1.442695
    %v2161 = vpow.pop %v2160
    %v2162 = vmul.f32 %v2147, 1.442695
    %v2163 = vpow.pop %v2162
    %v2172 = vrot.slane %v2151, 7
    %v2173 = vsel %vm1365, %v2172, %v2149
    %v2174 = vrot.slane %v2153, 6
    %v2175 = vsel %vm1368, %v2174, %v2173
    %v2176 = vrot.slane %v2155, 5
    %v2177 = vsel %vm1371, %v2176, %v2175
    %v2178 = vrot.slane %v2157, 4
    %v2179 = vsel %vm1374, %v2178, %v2177
    %v2180 = vrot.slane %v2159, 3
    %v2181 = vsel %vm1377, %v2180, %v2179
    %v2182 = vrot.slane %v2161, 2
    %v2183 = vsel %vm1380, %v2182, %v2181
    %v2184 = vrot.slane %v2163, 1
    %v2185 = vsel %vm1383, %v2184, %v2183
    %v2187 = vsel %vm1212, %v2185, 0.0
    %v2188 = vrot.slane %v2187, 4
    %v2189 = vadd.f32 %v2187, %v2188
    %v2190 = vrot.slane %v2189, 2
    %v2191 = vadd.f32 %v2189, %v2190
    %v2192 = vrot.slane %v2191, 1
    %v2193 = vadd.f32 %v2191, %v2192
    %v2194 = vrcp.pop %v2193
    %v2195 = vmul.f32 1.0, %v2194
    %v2196 = vlaneseq
    %v2197 = vshrl.u32 %v2196, 7
    %v2198 = vsub.s32 0, %v2197
    %v2199 = vrot.slane %v2195, %v2198
    %v2200 = vmul.f32 %v2149, %v2199
    %v2201 = vmul.f32 %v2151, %v2199
    %v2202 = vmul.f32 %v2153, %v2199
    %v2203 = vmul.f32 %v2155, %v2199
    %v2204 = vmul.f32 %v2157, %v2199
    %v2205 = vmul.f32 %v2159, %v2199
    %v2206 = vmul.f32 %v2161, %v2199
    %v2207 = vmul.f32 %v2163, %v2199
    %v2209 = vrot.slane %v837, 1
    %v2210 = vrot.slane %v837, 2
    %v2211 = vrot.slane %v837, 3
    %v2212 = vrot.slane %v837, 4
    %v2213 = vrot.slane %v837, 5
    %v2214 = vrot.slane %v837, 6
    %v2215 = vrot.slane %v837, 7
    %v2224 = vmul.f32 %v2200, %v837
    %v2225 = vmul.f32 %v2201, %v2209
    %v2226 = vmul.f32 %v2202, %v2210
    %v2227 = vmul.f32 %v2203, %v2211
    %v2228 = vmul.f32 %v2204, %v2212
    %v2229 = vmul.f32 %v2205, %v2213
    %v2230 = vmul.f32 %v2206, %v2214
    %v2231 = vmul.f32 %v2207, %v2215
    %v2240 = vrot.slane %v2225, 7
    %v2241 = vsel %vm1365, %v2240, %v2224
    %v2242 = vrot.slane %v2226, 6
    %v2243 = vsel %vm1368, %v2242, %v2241
    %v2244 = vrot.slane %v2227, 5
    %v2245 = vsel %vm1371, %v2244, %v2243
    %v2246 = vrot.slane %v2228, 4
    %v2247 = vsel %vm1374, %v2246, %v2245
    %v2248 = vrot.slane %v2229, 3
    %v2249 = vsel %vm1377, %v2248, %v2247
    %v2250 = vrot.slane %v2230, 2
    %v2251 = vsel %vm1380, %v2250, %v2249
    %v2252 = vrot.slane %v2231, 1
    %v2253 = vsel %vm1383, %v2252, %v2251
    %2255 = vst.msk [vmem:[#allocation2 + $0x18] sm:$0xff] %vm1212, %v2253
    %v2256 = vmul.f32 %v942, %v1022
    %v2257 = vmul.f32 %v947, %v1027
    %v2258 = vmul.f32 %v952, %v1032
    %v2259 = vmul.f32 %v957, %v1037
    %v2260 = vmul.f32 %v942, %v1042
    %v2261 = vmul.f32 %v947, %v1047
    %v2262 = vmul.f32 %v952, %v1052
    %v2263 = vmul.f32 %v957, %v1057
    %v2264 = vmul.f32 %v942, %v1062
    %v2265 = vmul.f32 %v947, %v1067
    %v2266 = vmul.f32 %v952, %v1072
    %v2267 = vmul.f32 %v957, %v1077
    %v2268 = vmul.f32 %v942, %v1082
    %v2269 = vmul.f32 %v947, %v1087
    %v2270 = vmul.f32 %v952, %v1092
    %v2271 = vmul.f32 %v957, %v1097
    %v2272 = vmul.f32 %v942, %v1102
    %v2273 = vmul.f32 %v947, %v1107
    %v2274 = vmul.f32 %v952, %v1112
    %v2275 = vmul.f32 %v957, %v1117
    %v2276 = vmul.f32 %v942, %v1122
    %v2277 = vmul.f32 %v947, %v1127
    %v2278 = vmul.f32 %v952, %v1132
    %v2279 = vmul.f32 %v957, %v1137
    %v2280 = vmul.f32 %v942, %v1142
    %v2281 = vmul.f32 %v947, %v1147
    %v2282 = vmul.f32 %v952, %v1152
    %v2283 = vmul.f32 %v957, %v1157
    %v2284 = vmul.f32 %v942, %v1162
    %v2285 = vmul.f32 %v947, %v1167
    %v2286 = vmul.f32 %v952, %v1172
    %v2287 = vmul.f32 %v957, %v1177
    %v2288 = vsel %vm1212, %v2256, 0.0
    %v2289 = vsel %vm1212, %v2257, 0.0
    %v2290 = vadd.f32 %v2288, %v2289
    %v2291 = vsel %vm1212, %v2258, 0.0
    %v2292 = vadd.f32 %v2290, %v2291
    %v2293 = vsel %vm1212, %v2259, 0.0
    %v2294 = vadd.f32 %v2292, %v2293
    %v2295 = vrot.slane %v2294, 4
    %v2296 = vadd.f32 %v2294, %v2295
    %v2297 = vrot.slane %v2296, 2
    %v2298 = vadd.f32 %v2296, %v2297
    %v2299 = vrot.slane %v2298, 1
    %v2300 = vadd.f32 %v2298, %v2299
    %v2301 = vsel %vm1212, %v2260, 0.0
    %v2302 = vsel %vm1212, %v2261, 0.0
    %v2303 = vadd.f32 %v2301, %v2302
    %v2304 = vsel %vm1212, %v2262, 0.0
    %v2305 = vadd.f32 %v2303, %v2304
    %v2306 = vsel %vm1212, %v2263, 0.0
    %v2307 = vadd.f32 %v2305, %v2306
    %v2308 = vrot.slane %v2307, 4
    %v2309 = vadd.f32 %v2307, %v2308
    %v2310 = vrot.slane %v2309, 2
    %v2311 = vadd.f32 %v2309, %v2310
    %v2312 = vrot.slane %v2311, 1
    %v2313 = vadd.f32 %v2311, %v2312
    %v2314 = vsel %vm1212, %v2264, 0.0
    %v2315 = vsel %vm1212, %v2265, 0.0
    %v2316 = vadd.f32 %v2314, %v2315
    %v2317 = vsel %vm1212, %v2266, 0.0
    %v2318 = vadd.f32 %v2316, %v2317
    %v2319 = vsel %vm1212, %v2267, 0.0
    %v2320 = vadd.f32 %v2318, %v2319
    %v2321 = vrot.slane %v2320, 4
    %v2322 = vadd.f32 %v2320, %v2321
    %v2323 = vrot.slane %v2322, 2
    %v2324 = vadd.f32 %v2322, %v2323
    %v2325 = vrot.slane %v2324, 1
    %v2326 = vadd.f32 %v2324, %v2325
    %v2327 = vsel %vm1212, %v2268, 0.0
    %v2328 = vsel %vm1212, %v2269, 0.0
    %v2329 = vadd.f32 %v2327, %v2328
    %v2330 = vsel %vm1212, %v2270, 0.0
    %v2331 = vadd.f32 %v2329, %v2330
    %v2332 = vsel %vm1212, %v2271, 0.0
    %v2333 = vadd.f32 %v2331, %v2332
    %v2334 = vrot.slane %v2333, 4
    %v2335 = vadd.f32 %v2333, %v2334
    %v2336 = vrot.slane %v2335, 2
    %v2337 = vadd.f32 %v2335, %v2336
    %v2338 = vrot.slane %v2337, 1
    %v2339 = vadd.f32 %v2337, %v2338
    %v2340 = vsel %vm1212, %v2272, 0.0
    %v2341 = vsel %vm1212, %v2273, 0.0
    %v2342 = vadd.f32 %v2340, %v2341
    %v2343 = vsel %vm1212, %v2274, 0.0
    %v2344 = vadd.f32 %v2342, %v2343
    %v2345 = vsel %vm1212, %v2275, 0.0
    %v2346 = vadd.f32 %v2344, %v2345
    %v2347 = vrot.slane %v2346, 4
    %v2348 = vadd.f32 %v2346, %v2347
    %v2349 = vrot.slane %v2348, 2
    %v2350 = vadd.f32 %v2348, %v2349
    %v2351 = vrot.slane %v2350, 1
    %v2352 = vadd.f32 %v2350, %v2351
    %v2353 = vsel %vm1212, %v2276, 0.0
    %v2354 = vsel %vm1212, %v2277, 0.0
    %v2355 = vadd.f32 %v2353, %v2354
    %v2356 = vsel %vm1212, %v2278, 0.0
    %v2357 = vadd.f32 %v2355, %v2356
    %v2358 = vsel %vm1212, %v2279, 0.0
    %v2359 = vadd.f32 %v2357, %v2358
    %v2360 = vrot.slane %v2359, 4
    %v2361 = vadd.f32 %v2359, %v2360
    %v2362 = vrot.slane %v2361, 2
    %v2363 = vadd.f32 %v2361, %v2362
    %v2364 = vrot.slane %v2363, 1
    %v2365 = vadd.f32 %v2363, %v2364
    %v2366 = vsel %vm1212, %v2280, 0.0
    %v2367 = vsel %vm1212, %v2281, 0.0
    %v2368 = vadd.f32 %v2366, %v2367
    %v2369 = vsel %vm1212, %v2282, 0.0
    %v2370 = vadd.f32 %v2368, %v2369
    %v2371 = vsel %vm1212, %v2283, 0.0
    %v2372 = vadd.f32 %v2370, %v2371
    %v2373 = vrot.slane %v2372, 4
    %v2374 = vadd.f32 %v2372, %v2373
    %v2375 = vrot.slane %v2374, 2
    %v2376 = vadd.f32 %v2374, %v2375
    %v2377 = vrot.slane %v2376, 1
    %v2378 = vadd.f32 %v2376, %v2377
    %v2379 = vsel %vm1212, %v2284, 0.0
    %v2380 = vsel %vm1212, %v2285, 0.0
    %v2381 = vadd.f32 %v2379, %v2380
    %v2382 = vsel %vm1212, %v2286, 0.0
    %v2383 = vadd.f32 %v2381, %v2382
    %v2384 = vsel %vm1212, %v2287, 0.0
    %v2385 = vadd.f32 %v2383, %v2384
    %v2386 = vrot.slane %v2385, 4
    %v2387 = vadd.f32 %v2385, %v2386
    %v2388 = vrot.slane %v2387, 2
    %v2389 = vadd.f32 %v2387, %v2388
    %v2390 = vrot.slane %v2389, 1
    %v2391 = vadd.f32 %v2389, %v2390
    %v2392 = vsel %vm1212, %v2300, -inf
    %v2393 = vsel %vm1212, %v2313, -inf
    %v2394 = vsel %vm1212, %v2326, -inf
    %v2395 = vsel %vm1212, %v2339, -inf
    %v2396 = vsel %vm1212, %v2352, -inf
    %v2397 = vmax.f32 %v2392, %v2396
    %v2398 = vsel %vm1212, %v2365, -inf
    %v2399 = vmax.f32 %v2393, %v2398
    %v2400 = vsel %vm1212, %v2378, -inf
    %v2401 = vmax.f32 %v2394, %v2400
    %v2402 = vsel %vm1212, %v2391, -inf
    %v2403 = vmax.f32 %v2395, %v2402
    %v2404 = vmax.f32 %v2397, %v2399
    %v2405 = vmax.f32 %v2401, %v2403
    %v2406 = vmax.f32 %v2404, %v2405
    %v2407 = vsub.f32 %v2300, %v2406
    %v2408 = vsub.f32 %v2313, %v2406
    %v2409 = vsub.f32 %v2326, %v2406
    %v2410 = vsub.f32 %v2339, %v2406
    %v2411 = vsub.f32 %v2352, %v2406
    %v2412 = vsub.f32 %v2365, %v2406
    %v2413 = vsub.f32 %v2378, %v2406
    %v2414 = vsub.f32 %v2391, %v2406
    %v2415 = vmul.f32 %v2407, 1.442695
    %v2416 = vpow.pop %v2415
    %v2417 = vmul.f32 %v2408, 1.442695
    %v2418 = vpow.pop %v2417
    %v2419 = vmul.f32 %v2409, 1.442695
    %v2420 = vpow.pop %v2419
    %v2421 = vmul.f32 %v2410, 1.442695
    %v2422 = vpow.pop %v2421
    %v2423 = vmul.f32 %v2411, 1.442695
    %v2424 = vpow.pop %v2423
    %v2425 = vmul.f32 %v2412, 1.442695
    %v2426 = vpow.pop %v2425
    %v2427 = vmul.f32 %v2413, 1.442695
    %v2428 = vpow.pop %v2427
    %v2429 = vmul.f32 %v2414, 1.442695
    %v2430 = vpow.pop %v2429
    %v2439 = vrot.slane %v2418, 7
    %v2440 = vsel %vm1365, %v2439, %v2416
    %v2441 = vrot.slane %v2420, 6
    %v2442 = vsel %vm1368, %v2441, %v2440
    %v2443 = vrot.slane %v2422, 5
    %v2444 = vsel %vm1371, %v2443, %v2442
    %v2445 = vrot.slane %v2424, 4
    %v2446 = vsel %vm1374, %v2445, %v2444
    %v2447 = vrot.slane %v2426, 3
    %v2448 = vsel %vm1377, %v2447, %v2446
    %v2449 = vrot.slane %v2428, 2
    %v2450 = vsel %vm1380, %v2449, %v2448
    %v2451 = vrot.slane %v2430, 1
    %v2452 = vsel %vm1383, %v2451, %v2450
    %v2454 = vsel %vm1212, %v2452, 0.0
    %v2455 = vrot.slane %v2454, 4
    %v2456 = vadd.f32 %v2454, %v2455
    %v2457 = vrot.slane %v2456, 2
    %v2458 = vadd.f32 %v2456, %v2457
    %v2459 = vrot.slane %v2458, 1
    %v2460 = vadd.f32 %v2458, %v2459
    %v2461 = vrcp.pop %v2460
    %v2462 = vmul.f32 1.0, %v2461
    %v2463 = vlaneseq
    %v2464 = vshrl.u32 %v2463, 7
    %v2465 = vsub.s32 0, %v2464
    %v2466 = vrot.slane %v2462, %v2465
    %v2467 = vmul.f32 %v2416, %v2466
    %v2468 = vmul.f32 %v2418, %v2466
    %v2469 = vmul.f32 %v2420, %v2466
    %v2470 = vmul.f32 %v2422, %v2466
    %v2471 = vmul.f32 %v2424, %v2466
    %v2472 = vmul.f32 %v2426, %v2466
    %v2473 = vmul.f32 %v2428, %v2466
    %v2474 = vmul.f32 %v2430, %v2466
    %v2476 = vrot.slane %v842, 1
    %v2477 = vrot.slane %v842, 2
    %v2478 = vrot.slane %v842, 3
    %v2479 = vrot.slane %v842, 4
    %v2480 = vrot.slane %v842, 5
    %v2481 = vrot.slane %v842, 6
    %v2482 = vrot.slane %v842, 7
    %v2491 = vmul.f32 %v2467, %v842
    %v2492 = vmul.f32 %v2468, %v2476
    %v2493 = vmul.f32 %v2469, %v2477
    %v2494 = vmul.f32 %v2470, %v2478
    %v2495 = vmul.f32 %v2471, %v2479
    %v2496 = vmul.f32 %v2472, %v2480
    %v2497 = vmul.f32 %v2473, %v2481
    %v2498 = vmul.f32 %v2474, %v2482
    %v2507 = vrot.slane %v2492, 7
    %v2508 = vsel %vm1365, %v2507, %v2491
    %v2509 = vrot.slane %v2493, 6
    %v2510 = vsel %vm1368, %v2509, %v2508
    %v2511 = vrot.slane %v2494, 5
    %v2512 = vsel %vm1371, %v2511, %v2510
    %v2513 = vrot.slane %v2495, 4
    %v2514 = vsel %vm1374, %v2513, %v2512
    %v2515 = vrot.slane %v2496, 3
    %v2516 = vsel %vm1377, %v2515, %v2514
    %v2517 = vrot.slane %v2497, 2
    %v2518 = vsel %vm1380, %v2517, %v2516
    %v2519 = vrot.slane %v2498, 1
    %v2520 = vsel %vm1383, %v2519, %v2518
    %2522 = vst.msk [vmem:[#allocation2 + $0x20] sm:$0xff] %vm1212, %v2520
    %v2523 = vmul.f32 %v962, %v1022
    %v2524 = vmul.f32 %v967, %v1027
    %v2525 = vmul.f32 %v972, %v1032
    %v2526 = vmul.f32 %v977, %v1037
    %v2527 = vmul.f32 %v962, %v1042
    %v2528 = vmul.f32 %v967, %v1047
    %v2529 = vmul.f32 %v972, %v1052
    %v2530 = vmul.f32 %v977, %v1057
    %v2531 = vmul.f32 %v962, %v1062
    %v2532 = vmul.f32 %v967, %v1067
    %v2533 = vmul.f32 %v972, %v1072
    %v2534 = vmul.f32 %v977, %v1077
    %v2535 = vmul.f32 %v962, %v1082
    %v2536 = vmul.f32 %v967, %v1087
    %v2537 = vmul.f32 %v972, %v1092
    %v2538 = vmul.f32 %v977, %v1097
    %v2539 = vmul.f32 %v962, %v1102
    %v2540 = vmul.f32 %v967, %v1107
    %v2541 = vmul.f32 %v972, %v1112
    %v2542 = vmul.f32 %v977, %v1117
    %v2543 = vmul.f32 %v962, %v1122
    %v2544 = vmul.f32 %v967, %v1127
    %v2545 = vmul.f32 %v972, %v1132
    %v2546 = vmul.f32 %v977, %v1137
    %v2547 = vmul.f32 %v962, %v1142
    %v2548 = vmul.f32 %v967, %v1147
    %v2549 = vmul.f32 %v972, %v1152
    %v2550 = vmul.f32 %v977, %v1157
    %v2551 = vmul.f32 %v962, %v1162
    %v2552 = vmul.f32 %v967, %v1167
    %v2553 = vmul.f32 %v972, %v1172
    %v2554 = vmul.f32 %v977, %v1177
    %v2555 = vsel %vm1212, %v2523, 0.0
    %v2556 = vsel %vm1212, %v2524, 0.0
    %v2557 = vadd.f32 %v2555, %v2556
    %v2558 = vsel %vm1212, %v2525, 0.0
    %v2559 = vadd.f32 %v2557, %v2558
    %v2560 = vsel %vm1212, %v2526, 0.0
    %v2561 = vadd.f32 %v2559, %v2560
    %v2562 = vrot.slane %v2561, 4
    %v2563 = vadd.f32 %v2561, %v2562
    %v2564 = vrot.slane %v2563, 2
    %v2565 = vadd.f32 %v2563, %v2564
    %v2566 = vrot.slane %v2565, 1
    %v2567 = vadd.f32 %v2565, %v2566
    %v2568 = vsel %vm1212, %v2527, 0.0
    %v2569 = vsel %vm1212, %v2528, 0.0
    %v2570 = vadd.f32 %v2568, %v2569
    %v2571 = vsel %vm1212, %v2529, 0.0
    %v2572 = vadd.f32 %v2570, %v2571
    %v2573 = vsel %vm1212, %v2530, 0.0
    %v2574 = vadd.f32 %v2572, %v2573
    %v2575 = vrot.slane %v2574, 4
    %v2576 = vadd.f32 %v2574, %v2575
    %v2577 = vrot.slane %v2576, 2
    %v2578 = vadd.f32 %v2576, %v2577
    %v2579 = vrot.slane %v2578, 1
    %v2580 = vadd.f32 %v2578, %v2579
    %v2581 = vsel %vm1212, %v2531, 0.0
    %v2582 = vsel %vm1212, %v2532, 0.0
    %v2583 = vadd.f32 %v2581, %v2582
    %v2584 = vsel %vm1212, %v2533, 0.0
    %v2585 = vadd.f32 %v2583, %v2584
    %v2586 = vsel %vm1212, %v2534, 0.0
    %v2587 = vadd.f32 %v2585, %v2586
    %v2588 = vrot.slane %v2587, 4
    %v2589 = vadd.f32 %v2587, %v2588
    %v2590 = vrot.slane %v2589, 2
    %v2591 = vadd.f32 %v2589, %v2590
    %v2592 = vrot.slane %v2591, 1
    %v2593 = vadd.f32 %v2591, %v2592
    %v2594 = vsel %vm1212, %v2535, 0.0
    %v2595 = vsel %vm1212, %v2536, 0.0
    %v2596 = vadd.f32 %v2594, %v2595
    %v2597 = vsel %vm1212, %v2537, 0.0
    %v2598 = vadd.f32 %v2596, %v2597
    %v2599 = vsel %vm1212, %v2538, 0.0
    %v2600 = vadd.f32 %v2598, %v2599
    %v2601 = vrot.slane %v2600, 4
    %v2602 = vadd.f32 %v2600, %v2601
    %v2603 = vrot.slane %v2602, 2
    %v2604 = vadd.f32 %v2602, %v2603
    %v2605 = vrot.slane %v2604, 1
    %v2606 = vadd.f32 %v2604, %v2605
    %v2607 = vsel %vm1212, %v2539, 0.0
    %v2608 = vsel %vm1212, %v2540, 0.0
    %v2609 = vadd.f32 %v2607, %v2608
    %v2610 = vsel %vm1212, %v2541, 0.0
    %v2611 = vadd.f32 %v2609, %v2610
    %v2612 = vsel %vm1212, %v2542, 0.0
    %v2613 = vadd.f32 %v2611, %v2612
    %v2614 = vrot.slane %v2613, 4
    %v2615 = vadd.f32 %v2613, %v2614
    %v2616 = vrot.slane %v2615, 2
    %v2617 = vadd.f32 %v2615, %v2616
    %v2618 = vrot.slane %v2617, 1
    %v2619 = vadd.f32 %v2617, %v2618
    %v2620 = vsel %vm1212, %v2543, 0.0
    %v2621 = vsel %vm1212, %v2544, 0.0
    %v2622 = vadd.f32 %v2620, %v2621
    %v2623 = vsel %vm1212, %v2545, 0.0
    %v2624 = vadd.f32 %v2622, %v2623
    %v2625 = vsel %vm1212, %v2546, 0.0
    %v2626 = vadd.f32 %v2624, %v2625
    %v2627 = vrot.slane %v2626, 4
    %v2628 = vadd.f32 %v2626, %v2627
    %v2629 = vrot.slane %v2628, 2
    %v2630 = vadd.f32 %v2628, %v2629
    %v2631 = vrot.slane %v2630, 1
    %v2632 = vadd.f32 %v2630, %v2631
    %v2633 = vsel %vm1212, %v2547, 0.0
    %v2634 = vsel %vm1212, %v2548, 0.0
    %v2635 = vadd.f32 %v2633, %v2634
    %v2636 = vsel %vm1212, %v2549, 0.0
    %v2637 = vadd.f32 %v2635, %v2636
    %v2638 = vsel %vm1212, %v2550, 0.0
    %v2639 = vadd.f32 %v2637, %v2638
    %v2640 = vrot.slane %v2639, 4
    %v2641 = vadd.f32 %v2639, %v2640
    %v2642 = vrot.slane %v2641, 2
    %v2643 = vadd.f32 %v2641, %v2642
    %v2644 = vrot.slane %v2643, 1
    %v2645 = vadd.f32 %v2643, %v2644
    %v2646 = vsel %vm1212, %v2551, 0.0
    %v2647 = vsel %vm1212, %v2552, 0.0
    %v2648 = vadd.f32 %v2646, %v2647
    %v2649 = vsel %vm1212, %v2553, 0.0
    %v2650 = vadd.f32 %v2648, %v2649
    %v2651 = vsel %vm1212, %v2554, 0.0
    %v2652 = vadd.f32 %v2650, %v2651
    %v2653 = vrot.slane %v2652, 4
    %v2654 = vadd.f32 %v2652, %v2653
    %v2655 = vrot.slane %v2654, 2
    %v2656 = vadd.f32 %v2654, %v2655
    %v2657 = vrot.slane %v2656, 1
    %v2658 = vadd.f32 %v2656, %v2657
    %v2659 = vsel %vm1212, %v2567, -inf
    %v2660 = vsel %vm1212, %v2580, -inf
    %v2661 = vsel %vm1212, %v2593, -inf
    %v2662 = vsel %vm1212, %v2606, -inf
    %v2663 = vsel %vm1212, %v2619, -inf
    %v2664 = vmax.f32 %v2659, %v2663
    %v2665 = vsel %vm1212, %v2632, -inf
    %v2666 = vmax.f32 %v2660, %v2665
    %v2667 = vsel %vm1212, %v2645, -inf
    %v2668 = vmax.f32 %v2661, %v2667
    %v2669 = vsel %vm1212, %v2658, -inf
    %v2670 = vmax.f32 %v2662, %v2669
    %v2671 = vmax.f32 %v2664, %v2666
    %v2672 = vmax.f32 %v2668, %v2670
    %v2673 = vmax.f32 %v2671, %v2672
    %v2674 = vsub.f32 %v2567, %v2673
    %v2675 = vsub.f32 %v2580, %v2673
    %v2676 = vsub.f32 %v2593, %v2673
    %v2677 = vsub.f32 %v2606, %v2673
    %v2678 = vsub.f32 %v2619, %v2673
    %v2679 = vsub.f32 %v2632, %v2673
    %v2680 = vsub.f32 %v2645, %v2673
    %v2681 = vsub.f32 %v2658, %v2673
    %v2682 = vmul.f32 %v2674, 1.442695
    %v2683 = vpow.pop %v2682
    %v2684 = vmul.f32 %v2675, 1.442695
    %v2685 = vpow.pop %v2684
    %v2686 = vmul.f32 %v2676, 1.442695
    %v2687 = vpow.pop %v2686
    %v2688 = vmul.f32 %v2677, 1.442695
    %v2689 = vpow.pop %v2688
    %v2690 = vmul.f32 %v2678, 1.442695
    %v2691 = vpow.pop %v2690
    %v2692 = vmul.f32 %v2679, 1.442695
    %v2693 = vpow.pop %v2692
    %v2694 = vmul.f32 %v2680, 1.442695
    %v2695 = vpow.pop %v2694
    %v2696 = vmul.f32 %v2681, 1.442695
    %v2697 = vpow.pop %v2696
    %v2706 = vrot.slane %v2685, 7
    %v2707 = vsel %vm1365, %v2706, %v2683
    %v2708 = vrot.slane %v2687, 6
    %v2709 = vsel %vm1368, %v2708, %v2707
    %v2710 = vrot.slane %v2689, 5
    %v2711 = vsel %vm1371, %v2710, %v2709
    %v2712 = vrot.slane %v2691, 4
    %v2713 = vsel %vm1374, %v2712, %v2711
    %v2714 = vrot.slane %v2693, 3
    %v2715 = vsel %vm1377, %v2714, %v2713
    %v2716 = vrot.slane %v2695, 2
    %v2717 = vsel %vm1380, %v2716, %v2715
    %v2718 = vrot.slane %v2697, 1
    %v2719 = vsel %vm1383, %v2718, %v2717
    %v2721 = vsel %vm1212, %v2719, 0.0
    %v2722 = vrot.slane %v2721, 4
    %v2723 = vadd.f32 %v2721, %v2722
    %v2724 = vrot.slane %v2723, 2
    %v2725 = vadd.f32 %v2723, %v2724
    %v2726 = vrot.slane %v2725, 1
    %v2727 = vadd.f32 %v2725, %v2726
    %v2728 = vrcp.pop %v2727
    %v2729 = vmul.f32 1.0, %v2728
    %v2730 = vlaneseq
    %v2731 = vshrl.u32 %v2730, 7
    %v2732 = vsub.s32 0, %v2731
    %v2733 = vrot.slane %v2729, %v2732
    %v2734 = vmul.f32 %v2683, %v2733
    %v2735 = vmul.f32 %v2685, %v2733
    %v2736 = vmul.f32 %v2687, %v2733
    %v2737 = vmul.f32 %v2689, %v2733
    %v2738 = vmul.f32 %v2691, %v2733
    %v2739 = vmul.f32 %v2693, %v2733
    %v2740 = vmul.f32 %v2695, %v2733
    %v2741 = vmul.f32 %v2697, %v2733
    %v2743 = vrot.slane %v847, 1
    %v2744 = vrot.slane %v847, 2
    %v2745 = vrot.slane %v847, 3
    %v2746 = vrot.slane %v847, 4
    %v2747 = vrot.slane %v847, 5
    %v2748 = vrot.slane %v847, 6
    %v2749 = vrot.slane %v847, 7
    %v2758 = vmul.f32 %v2734, %v847
    %v2759 = vmul.f32 %v2735, %v2743
    %v2760 = vmul.f32 %v2736, %v2744
    %v2761 = vmul.f32 %v2737, %v2745
    %v2762 = vmul.f32 %v2738, %v2746
    %v2763 = vmul.f32 %v2739, %v2747
    %v2764 = vmul.f32 %v2740, %v2748
    %v2765 = vmul.f32 %v2741, %v2749
    %v2774 = vrot.slane %v2759, 7
    %v2775 = vsel %vm1365, %v2774, %v2758
    %v2776 = vrot.slane %v2760, 6
    %v2777 = vsel %vm1368, %v2776, %v2775
    %v2778 = vrot.slane %v2761, 5
    %v2779 = vsel %vm1371, %v2778, %v2777
    %v2780 = vrot.slane %v2762, 4
    %v2781 = vsel %vm1374, %v2780, %v2779
    %v2782 = vrot.slane %v2763, 3
    %v2783 = vsel %vm1377, %v2782, %v2781
    %v2784 = vrot.slane %v2764, 2
    %v2785 = vsel %vm1380, %v2784, %v2783
    %v2786 = vrot.slane %v2765, 1
    %v2787 = vsel %vm1383, %v2786, %v2785
    %2789 = vst.msk [vmem:[#allocation2 + $0x28] sm:$0xff] %vm1212, %v2787
    %v2790 = vmul.f32 %v982, %v1022
    %v2791 = vmul.f32 %v987, %v1027
    %v2792 = vmul.f32 %v992, %v1032
    %v2793 = vmul.f32 %v997, %v1037
    %v2794 = vmul.f32 %v982, %v1042
    %v2795 = vmul.f32 %v987, %v1047
    %v2796 = vmul.f32 %v992, %v1052
    %v2797 = vmul.f32 %v997, %v1057
    %v2798 = vmul.f32 %v982, %v1062
    %v2799 = vmul.f32 %v987, %v1067
    %v2800 = vmul.f32 %v992, %v1072
    %v2801 = vmul.f32 %v997, %v1077
    %v2802 = vmul.f32 %v982, %v1082
    %v2803 = vmul.f32 %v987, %v1087
    %v2804 = vmul.f32 %v992, %v1092
    %v2805 = vmul.f32 %v997, %v1097
    %v2806 = vmul.f32 %v982, %v1102
    %v2807 = vmul.f32 %v987, %v1107
    %v2808 = vmul.f32 %v992, %v1112
    %v2809 = vmul.f32 %v997, %v1117
    %v2810 = vmul.f32 %v982, %v1122
    %v2811 = vmul.f32 %v987, %v1127
    %v2812 = vmul.f32 %v992, %v1132
    %v2813 = vmul.f32 %v997, %v1137
    %v2814 = vmul.f32 %v982, %v1142
    %v2815 = vmul.f32 %v987, %v1147
    %v2816 = vmul.f32 %v992, %v1152
    %v2817 = vmul.f32 %v997, %v1157
    %v2818 = vmul.f32 %v982, %v1162
    %v2819 = vmul.f32 %v987, %v1167
    %v2820 = vmul.f32 %v992, %v1172
    %v2821 = vmul.f32 %v997, %v1177
    %v2822 = vsel %vm1212, %v2790, 0.0
    %v2823 = vsel %vm1212, %v2791, 0.0
    %v2824 = vadd.f32 %v2822, %v2823
    %v2825 = vsel %vm1212, %v2792, 0.0
    %v2826 = vadd.f32 %v2824, %v2825
    %v2827 = vsel %vm1212, %v2793, 0.0
    %v2828 = vadd.f32 %v2826, %v2827
    %v2829 = vrot.slane %v2828, 4
    %v2830 = vadd.f32 %v2828, %v2829
    %v2831 = vrot.slane %v2830, 2
    %v2832 = vadd.f32 %v2830, %v2831
    %v2833 = vrot.slane %v2832, 1
    %v2834 = vadd.f32 %v2832, %v2833
    %v2835 = vsel %vm1212, %v2794, 0.0
    %v2836 = vsel %vm1212, %v2795, 0.0
    %v2837 = vadd.f32 %v2835, %v2836
    %v2838 = vsel %vm1212, %v2796, 0.0
    %v2839 = vadd.f32 %v2837, %v2838
    %v2840 = vsel %vm1212, %v2797, 0.0
    %v2841 = vadd.f32 %v2839, %v2840
    %v2842 = vrot.slane %v2841, 4
    %v2843 = vadd.f32 %v2841, %v2842
    %v2844 = vrot.slane %v2843, 2
    %v2845 = vadd.f32 %v2843, %v2844
    %v2846 = vrot.slane %v2845, 1
    %v2847 = vadd.f32 %v2845, %v2846
    %v2848 = vsel %vm1212, %v2798, 0.0
    %v2849 = vsel %vm1212, %v2799, 0.0
    %v2850 = vadd.f32 %v2848, %v2849
    %v2851 = vsel %vm1212, %v2800, 0.0
    %v2852 = vadd.f32 %v2850, %v2851
    %v2853 = vsel %vm1212, %v2801, 0.0
    %v2854 = vadd.f32 %v2852, %v2853
    %v2855 = vrot.slane %v2854, 4
    %v2856 = vadd.f32 %v2854, %v2855
    %v2857 = vrot.slane %v2856, 2
    %v2858 = vadd.f32 %v2856, %v2857
    %v2859 = vrot.slane %v2858, 1
    %v2860 = vadd.f32 %v2858, %v2859
    %v2861 = vsel %vm1212, %v2802, 0.0
    %v2862 = vsel %vm1212, %v2803, 0.0
    %v2863 = vadd.f32 %v2861, %v2862
    %v2864 = vsel %vm1212, %v2804, 0.0
    %v2865 = vadd.f32 %v2863, %v2864
    %v2866 = vsel %vm1212, %v2805, 0.0
    %v2867 = vadd.f32 %v2865, %v2866
    %v2868 = vrot.slane %v2867, 4
    %v2869 = vadd.f32 %v2867, %v2868
    %v2870 = vrot.slane %v2869, 2
    %v2871 = vadd.f32 %v2869, %v2870
    %v2872 = vrot.slane %v2871, 1
    %v2873 = vadd.f32 %v2871, %v2872
    %v2874 = vsel %vm1212, %v2806, 0.0
    %v2875 = vsel %vm1212, %v2807, 0.0
    %v2876 = vadd.f32 %v2874, %v2875
    %v2877 = vsel %vm1212, %v2808, 0.0
    %v2878 = vadd.f32 %v2876, %v2877
    %v2879 = vsel %vm1212, %v2809, 0.0
    %v2880 = vadd.f32 %v2878, %v2879
    %v2881 = vrot.slane %v2880, 4
    %v2882 = vadd.f32 %v2880, %v2881
    %v2883 = vrot.slane %v2882, 2
    %v2884 = vadd.f32 %v2882, %v2883
    %v2885 = vrot.slane %v2884, 1
    %v2886 = vadd.f32 %v2884, %v2885
    %v2887 = vsel %vm1212, %v2810, 0.0
    %v2888 = vsel %vm1212, %v2811, 0.0
    %v2889 = vadd.f32 %v2887, %v2888
    %v2890 = vsel %vm1212, %v2812, 0.0
    %v2891 = vadd.f32 %v2889, %v2890
    %v2892 = vsel %vm1212, %v2813, 0.0
    %v2893 = vadd.f32 %v2891, %v2892
    %v2894 = vrot.slane %v2893, 4
    %v2895 = vadd.f32 %v2893, %v2894
    %v2896 = vrot.slane %v2895, 2
    %v2897 = vadd.f32 %v2895, %v2896
    %v2898 = vrot.slane %v2897, 1
    %v2899 = vadd.f32 %v2897, %v2898
    %v2900 = vsel %vm1212, %v2814, 0.0
    %v2901 = vsel %vm1212, %v2815, 0.0
    %v2902 = vadd.f32 %v2900, %v2901
    %v2903 = vsel %vm1212, %v2816, 0.0
    %v2904 = vadd.f32 %v2902, %v2903
    %v2905 = vsel %vm1212, %v2817, 0.0
    %v2906 = vadd.f32 %v2904, %v2905
    %v2907 = vrot.slane %v2906, 4
    %v2908 = vadd.f32 %v2906, %v2907
    %v2909 = vrot.slane %v2908, 2
    %v2910 = vadd.f32 %v2908, %v2909
    %v2911 = vrot.slane %v2910, 1
    %v2912 = vadd.f32 %v2910, %v2911
    %v2913 = vsel %vm1212, %v2818, 0.0
    %v2914 = vsel %vm1212, %v2819, 0.0
    %v2915 = vadd.f32 %v2913, %v2914
    %v2916 = vsel %vm1212, %v2820, 0.0
    %v2917 = vadd.f32 %v2915, %v2916
    %v2918 = vsel %vm1212, %v2821, 0.0
    %v2919 = vadd.f32 %v2917, %v2918
    %v2920 = vrot.slane %v2919, 4
    %v2921 = vadd.f32 %v2919, %v2920
    %v2922 = vrot.slane %v2921, 2
    %v2923 = vadd.f32 %v2921, %v2922
    %v2924 = vrot.slane %v2923, 1
    %v2925 = vadd.f32 %v2923, %v2924
    %v2926 = vsel %vm1212, %v2834, -inf
    %v2927 = vsel %vm1212, %v2847, -inf
    %v2928 = vsel %vm1212, %v2860, -inf
    %v2929 = vsel %vm1212, %v2873, -inf
    %v2930 = vsel %vm1212, %v2886, -inf
    %v2931 = vmax.f32 %v2926, %v2930
    %v2932 = vsel %vm1212, %v2899, -inf
    %v2933 = vmax.f32 %v2927, %v2932
    %v2934 = vsel %vm1212, %v2912, -inf
    %v2935 = vmax.f32 %v2928, %v2934
    %v2936 = vsel %vm1212, %v2925, -inf
    %v2937 = vmax.f32 %v2929, %v2936
    %v2938 = vmax.f32 %v2931, %v2933
    %v2939 = vmax.f32 %v2935, %v2937
    %v2940 = vmax.f32 %v2938, %v2939
    %v2941 = vsub.f32 %v2834, %v2940
    %v2942 = vsub.f32 %v2847, %v2940
    %v2943 = vsub.f32 %v2860, %v2940
    %v2944 = vsub.f32 %v2873, %v2940
    %v2945 = vsub.f32 %v2886, %v2940
    %v2946 = vsub.f32 %v2899, %v2940
    %v2947 = vsub.f32 %v2912, %v2940
    %v2948 = vsub.f32 %v2925, %v2940
    %v2949 = vmul.f32 %v2941, 1.442695
    %v2950 = vpow.pop %v2949
    %v2951 = vmul.f32 %v2942, 1.442695
    %v2952 = vpow.pop %v2951
    %v2953 = vmul.f32 %v2943, 1.442695
    %v2954 = vpow.pop %v2953
    %v2955 = vmul.f32 %v2944, 1.442695
    %v2956 = vpow.pop %v2955
    %v2957 = vmul.f32 %v2945, 1.442695
    %v2958 = vpow.pop %v2957
    %v2959 = vmul.f32 %v2946, 1.442695
    %v2960 = vpow.pop %v2959
    %v2961 = vmul.f32 %v2947, 1.442695
    %v2962 = vpow.pop %v2961
    %v2963 = vmul.f32 %v2948, 1.442695
    %v2964 = vpow.pop %v2963
    %v2973 = vrot.slane %v2952, 7
    %v2974 = vsel %vm1365, %v2973, %v2950
    %v2975 = vrot.slane %v2954, 6
    %v2976 = vsel %vm1368, %v2975, %v2974
    %v2977 = vrot.slane %v2956, 5
    %v2978 = vsel %vm1371, %v2977, %v2976
    %v2979 = vrot.slane %v2958, 4
    %v2980 = vsel %vm1374, %v2979, %v2978
    %v2981 = vrot.slane %v2960, 3
    %v2982 = vsel %vm1377, %v2981, %v2980
    %v2983 = vrot.slane %v2962, 2
    %v2984 = vsel %vm1380, %v2983, %v2982
    %v2985 = vrot.slane %v2964, 1
    %v2986 = vsel %vm1383, %v2985, %v2984
    %v2988 = vsel %vm1212, %v2986, 0.0
    %v2989 = vrot.slane %v2988, 4
    %v2990 = vadd.f32 %v2988, %v2989
    %v2991 = vrot.slane %v2990, 2
    %v2992 = vadd.f32 %v2990, %v2991
    %v2993 = vrot.slane %v2992, 1
    %v2994 = vadd.f32 %v2992, %v2993
    %v2995 = vrcp.pop %v2994
    %v2996 = vmul.f32 1.0, %v2995
    %v2997 = vlaneseq
    %v2998 = vshrl.u32 %v2997, 7
    %v2999 = vsub.s32 0, %v2998
    %v3000 = vrot.slane %v2996, %v2999
    %v3001 = vmul.f32 %v2950, %v3000
    %v3002 = vmul.f32 %v2952, %v3000
    %v3003 = vmul.f32 %v2954, %v3000
    %v3004 = vmul.f32 %v2956, %v3000
    %v3005 = vmul.f32 %v2958, %v3000
    %v3006 = vmul.f32 %v2960, %v3000
    %v3007 = vmul.f32 %v2962, %v3000
    %v3008 = vmul.f32 %v2964, %v3000
    %v3010 = vrot.slane %v852, 1
    %v3011 = vrot.slane %v852, 2
    %v3012 = vrot.slane %v852, 3
    %v3013 = vrot.slane %v852, 4
    %v3014 = vrot.slane %v852, 5
    %v3015 = vrot.slane %v852, 6
    %v3016 = vrot.slane %v852, 7
    %v3025 = vmul.f32 %v3001, %v852
    %v3026 = vmul.f32 %v3002, %v3010
    %v3027 = vmul.f32 %v3003, %v3011
    %v3028 = vmul.f32 %v3004, %v3012
    %v3029 = vmul.f32 %v3005, %v3013
    %v3030 = vmul.f32 %v3006, %v3014
    %v3031 = vmul.f32 %v3007, %v3015
    %v3032 = vmul.f32 %v3008, %v3016
    %v3041 = vrot.slane %v3026, 7
    %v3042 = vsel %vm1365, %v3041, %v3025
    %v3043 = vrot.slane %v3027, 6
    %v3044 = vsel %vm1368, %v3043, %v3042
    %v3045 = vrot.slane %v3028, 5
    %v3046 = vsel %vm1371, %v3045, %v3044
    %v3047 = vrot.slane %v3029, 4
    %v3048 = vsel %vm1374, %v3047, %v3046
    %v3049 = vrot.slane %v3030, 3
    %v3050 = vsel %vm1377, %v3049, %v3048
    %v3051 = vrot.slane %v3031, 2
    %v3052 = vsel %vm1380, %v3051, %v3050
    %v3053 = vrot.slane %v3032, 1
    %v3054 = vsel %vm1383, %v3053, %v3052
    %3056 = vst.msk [vmem:[#allocation2 + $0x30] sm:$0xff] %vm1212, %v3054
    %v3057 = vmul.f32 %v1002, %v1022
    %v3058 = vmul.f32 %v1007, %v1027
    %v3059 = vmul.f32 %v1012, %v1032
    %v3060 = vmul.f32 %v1017, %v1037
    %v3061 = vmul.f32 %v1002, %v1042
    %v3062 = vmul.f32 %v1007, %v1047
    %v3063 = vmul.f32 %v1012, %v1052
    %v3064 = vmul.f32 %v1017, %v1057
    %v3065 = vmul.f32 %v1002, %v1062
    %v3066 = vmul.f32 %v1007, %v1067
    %v3067 = vmul.f32 %v1012, %v1072
    %v3068 = vmul.f32 %v1017, %v1077
    %v3069 = vmul.f32 %v1002, %v1082
    %v3070 = vmul.f32 %v1007, %v1087
    %v3071 = vmul.f32 %v1012, %v1092
    %v3072 = vmul.f32 %v1017, %v1097
    %v3073 = vmul.f32 %v1002, %v1102
    %v3074 = vmul.f32 %v1007, %v1107
    %v3075 = vmul.f32 %v1012, %v1112
    %v3076 = vmul.f32 %v1017, %v1117
    %v3077 = vmul.f32 %v1002, %v1122
    %v3078 = vmul.f32 %v1007, %v1127
    %v3079 = vmul.f32 %v1012, %v1132
    %v3080 = vmul.f32 %v1017, %v1137
    %v3081 = vmul.f32 %v1002, %v1142
    %v3082 = vmul.f32 %v1007, %v1147
    %v3083 = vmul.f32 %v1012, %v1152
    %v3084 = vmul.f32 %v1017, %v1157
    %v3085 = vmul.f32 %v1002, %v1162
    %v3086 = vmul.f32 %v1007, %v1167
    %v3087 = vmul.f32 %v1012, %v1172
    %v3088 = vmul.f32 %v1017, %v1177
    %v3089 = vsel %vm1212, %v3057, 0.0
    %v3090 = vsel %vm1212, %v3058, 0.0
    %v3091 = vadd.f32 %v3089, %v3090
    %v3092 = vsel %vm1212, %v3059, 0.0
    %v3093 = vadd.f32 %v3091, %v3092
    %v3094 = vsel %vm1212, %v3060, 0.0
    %v3095 = vadd.f32 %v3093, %v3094
    %v3096 = vrot.slane %v3095, 4
    %v3097 = vadd.f32 %v3095, %v3096
    %v3098 = vrot.slane %v3097, 2
    %v3099 = vadd.f32 %v3097, %v3098
    %v3100 = vrot.slane %v3099, 1
    %v3101 = vadd.f32 %v3099, %v3100
    %v3102 = vsel %vm1212, %v3061, 0.0
    %v3103 = vsel %vm1212, %v3062, 0.0
    %v3104 = vadd.f32 %v3102, %v3103
    %v3105 = vsel %vm1212, %v3063, 0.0
    %v3106 = vadd.f32 %v3104, %v3105
    %v3107 = vsel %vm1212, %v3064, 0.0
    %v3108 = vadd.f32 %v3106, %v3107
    %v3109 = vrot.slane %v3108, 4
    %v3110 = vadd.f32 %v3108, %v3109
    %v3111 = vrot.slane %v3110, 2
    %v3112 = vadd.f32 %v3110, %v3111
    %v3113 = vrot.slane %v3112, 1
    %v3114 = vadd.f32 %v3112, %v3113
    %v3115 = vsel %vm1212, %v3065, 0.0
    %v3116 = vsel %vm1212, %v3066, 0.0
    %v3117 = vadd.f32 %v3115, %v3116
    %v3118 = vsel %vm1212, %v3067, 0.0
    %v3119 = vadd.f32 %v3117, %v3118
    %v3120 = vsel %vm1212, %v3068, 0.0
    %v3121 = vadd.f32 %v3119, %v3120
    %v3122 = vrot.slane %v3121, 4
    %v3123 = vadd.f32 %v3121, %v3122
    %v3124 = vrot.slane %v3123, 2
    %v3125 = vadd.f32 %v3123, %v3124
    %v3126 = vrot.slane %v3125, 1
    %v3127 = vadd.f32 %v3125, %v3126
    %v3128 = vsel %vm1212, %v3069, 0.0
    %v3129 = vsel %vm1212, %v3070, 0.0
    %v3130 = vadd.f32 %v3128, %v3129
    %v3131 = vsel %vm1212, %v3071, 0.0
    %v3132 = vadd.f32 %v3130, %v3131
    %v3133 = vsel %vm1212, %v3072, 0.0
    %v3134 = vadd.f32 %v3132, %v3133
    %v3135 = vrot.slane %v3134, 4
    %v3136 = vadd.f32 %v3134, %v3135
    %v3137 = vrot.slane %v3136, 2
    %v3138 = vadd.f32 %v3136, %v3137
    %v3139 = vrot.slane %v3138, 1
    %v3140 = vadd.f32 %v3138, %v3139
    %v3141 = vsel %vm1212, %v3073, 0.0
    %v3142 = vsel %vm1212, %v3074, 0.0
    %v3143 = vadd.f32 %v3141, %v3142
    %v3144 = vsel %vm1212, %v3075, 0.0
    %v3145 = vadd.f32 %v3143, %v3144
    %v3146 = vsel %vm1212, %v3076, 0.0
    %v3147 = vadd.f32 %v3145, %v3146
    %v3148 = vrot.slane %v3147, 4
    %v3149 = vadd.f32 %v3147, %v3148
    %v3150 = vrot.slane %v3149, 2
    %v3151 = vadd.f32 %v3149, %v3150
    %v3152 = vrot.slane %v3151, 1
    %v3153 = vadd.f32 %v3151, %v3152
    %v3154 = vsel %vm1212, %v3077, 0.0
    %v3155 = vsel %vm1212, %v3078, 0.0
    %v3156 = vadd.f32 %v3154, %v3155
    %v3157 = vsel %vm1212, %v3079, 0.0
    %v3158 = vadd.f32 %v3156, %v3157
    %v3159 = vsel %vm1212, %v3080, 0.0
    %v3160 = vadd.f32 %v3158, %v3159
    %v3161 = vrot.slane %v3160, 4
    %v3162 = vadd.f32 %v3160, %v3161
    %v3163 = vrot.slane %v3162, 2
    %v3164 = vadd.f32 %v3162, %v3163
    %v3165 = vrot.slane %v3164, 1
    %v3166 = vadd.f32 %v3164, %v3165
    %v3167 = vsel %vm1212, %v3081, 0.0
    %v3168 = vsel %vm1212, %v3082, 0.0
    %v3169 = vadd.f32 %v3167, %v3168
    %v3170 = vsel %vm1212, %v3083, 0.0
    %v3171 = vadd.f32 %v3169, %v3170
    %v3172 = vsel %vm1212, %v3084, 0.0
    %v3173 = vadd.f32 %v3171, %v3172
    %v3174 = vrot.slane %v3173, 4
    %v3175 = vadd.f32 %v3173, %v3174
    %v3176 = vrot.slane %v3175, 2
    %v3177 = vadd.f32 %v3175, %v3176
    %v3178 = vrot.slane %v3177, 1
    %v3179 = vadd.f32 %v3177, %v3178
    %v3180 = vsel %vm1212, %v3085, 0.0
    %v3181 = vsel %vm1212, %v3086, 0.0
    %v3182 = vadd.f32 %v3180, %v3181
    %v3183 = vsel %vm1212, %v3087, 0.0
    %v3184 = vadd.f32 %v3182, %v3183
    %v3185 = vsel %vm1212, %v3088, 0.0
    %v3186 = vadd.f32 %v3184, %v3185
    %v3187 = vrot.slane %v3186, 4
    %v3188 = vadd.f32 %v3186, %v3187
    %v3189 = vrot.slane %v3188, 2
    %v3190 = vadd.f32 %v3188, %v3189
    %v3191 = vrot.slane %v3190, 1
    %v3192 = vadd.f32 %v3190, %v3191
    %v3193 = vsel %vm1212, %v3101, -inf
    %v3194 = vsel %vm1212, %v3114, -inf
    %v3195 = vsel %vm1212, %v3127, -inf
    %v3196 = vsel %vm1212, %v3140, -inf
    %v3197 = vsel %vm1212, %v3153, -inf
    %v3198 = vmax.f32 %v3193, %v3197
    %v3199 = vsel %vm1212, %v3166, -inf
    %v3200 = vmax.f32 %v3194, %v3199
    %v3201 = vsel %vm1212, %v3179, -inf
    %v3202 = vmax.f32 %v3195, %v3201
    %v3203 = vsel %vm1212, %v3192, -inf
    %v3204 = vmax.f32 %v3196, %v3203
    %v3205 = vmax.f32 %v3198, %v3200
    %v3206 = vmax.f32 %v3202, %v3204
    %v3207 = vmax.f32 %v3205, %v3206
    %v3208 = vsub.f32 %v3101, %v3207
    %v3209 = vsub.f32 %v3114, %v3207
    %v3210 = vsub.f32 %v3127, %v3207
    %v3211 = vsub.f32 %v3140, %v3207
    %v3212 = vsub.f32 %v3153, %v3207
    %v3213 = vsub.f32 %v3166, %v3207
    %v3214 = vsub.f32 %v3179, %v3207
    %v3215 = vsub.f32 %v3192, %v3207
    %v3216 = vmul.f32 %v3208, 1.442695
    %v3217 = vpow.pop %v3216
    %v3218 = vmul.f32 %v3209, 1.442695
    %v3219 = vpow.pop %v3218
    %v3220 = vmul.f32 %v3210, 1.442695
    %v3221 = vpow.pop %v3220
    %v3222 = vmul.f32 %v3211, 1.442695
    %v3223 = vpow.pop %v3222
    %v3224 = vmul.f32 %v3212, 1.442695
    %v3225 = vpow.pop %v3224
    %v3226 = vmul.f32 %v3213, 1.442695
    %v3227 = vpow.pop %v3226
    %v3228 = vmul.f32 %v3214, 1.442695
    %v3229 = vpow.pop %v3228
    %v3230 = vmul.f32 %v3215, 1.442695
    %v3231 = vpow.pop %v3230
    %v3240 = vrot.slane %v3219, 7
    %v3241 = vsel %vm1365, %v3240, %v3217
    %v3242 = vrot.slane %v3221, 6
    %v3243 = vsel %vm1368, %v3242, %v3241
    %v3244 = vrot.slane %v3223, 5
    %v3245 = vsel %vm1371, %v3244, %v3243
    %v3246 = vrot.slane %v3225, 4
    %v3247 = vsel %vm1374, %v3246, %v3245
    %v3248 = vrot.slane %v3227, 3
    %v3249 = vsel %vm1377, %v3248, %v3247
    %v3250 = vrot.slane %v3229, 2
    %v3251 = vsel %vm1380, %v3250, %v3249
    %v3252 = vrot.slane %v3231, 1
    %v3253 = vsel %vm1383, %v3252, %v3251
    %v3255 = vsel %vm1212, %v3253, 0.0
    %v3256 = vrot.slane %v3255, 4
    %v3257 = vadd.f32 %v3255, %v3256
    %v3258 = vrot.slane %v3257, 2
    %v3259 = vadd.f32 %v3257, %v3258
    %v3260 = vrot.slane %v3259, 1
    %v3261 = vadd.f32 %v3259, %v3260
    %v3262 = vrcp.pop %v3261
    %v3263 = vmul.f32 1.0, %v3262
    %v3264 = vlaneseq
    %v3265 = vshrl.u32 %v3264, 7
    %v3266 = vsub.s32 0, %v3265
    %v3267 = vrot.slane %v3263, %v3266
    %v3268 = vmul.f32 %v3217, %v3267
    %v3269 = vmul.f32 %v3219, %v3267
    %v3270 = vmul.f32 %v3221, %v3267
    %v3271 = vmul.f32 %v3223, %v3267
    %v3272 = vmul.f32 %v3225, %v3267
    %v3273 = vmul.f32 %v3227, %v3267
    %v3274 = vmul.f32 %v3229, %v3267
    %v3275 = vmul.f32 %v3231, %v3267
    %v3277 = vrot.slane %v857, 1
    %v3278 = vrot.slane %v857, 2
    %v3279 = vrot.slane %v857, 3
    %v3280 = vrot.slane %v857, 4
    %v3281 = vrot.slane %v857, 5
    %v3282 = vrot.slane %v857, 6
    %v3283 = vrot.slane %v857, 7
    %v3292 = vmul.f32 %v3268, %v857
    %v3293 = vmul.f32 %v3269, %v3277
    %v3294 = vmul.f32 %v3270, %v3278
    %v3295 = vmul.f32 %v3271, %v3279
    %v3296 = vmul.f32 %v3272, %v3280
    %v3297 = vmul.f32 %v3273, %v3281
    %v3298 = vmul.f32 %v3274, %v3282
    %v3299 = vmul.f32 %v3275, %v3283
    %v3308 = vrot.slane %v3293, 7
    %v3309 = vsel %vm1365, %v3308, %v3292
    %v3310 = vrot.slane %v3294, 6
    %v3311 = vsel %vm1368, %v3310, %v3309
    %v3312 = vrot.slane %v3295, 5
    %v3313 = vsel %vm1371, %v3312, %v3311
    %v3314 = vrot.slane %v3296, 4
    %v3315 = vsel %vm1374, %v3314, %v3313
    %v3316 = vrot.slane %v3297, 3
    %v3317 = vsel %vm1377, %v3316, %v3315
    %v3318 = vrot.slane %v3298, 2
    %v3319 = vsel %vm1380, %v3318, %v3317
    %v3320 = vrot.slane %v3299, 1
    %v3321 = vsel %vm1383, %v3320, %v3319
    %3323 = vst.msk [vmem:[#allocation2 + $0x38] sm:$0xff] %vm1212, %v3321
    %v3324 = vld [vmem:[#allocation2] sm:$0xff]
    %v3325 = vld [vmem:[#allocation2 + $0x8] sm:$0xff]
    %v3326 = vld [vmem:[#allocation2 + $0x10] sm:$0xff]
    %v3327 = vld [vmem:[#allocation2 + $0x18] sm:$0xff]
    %v3328 = vld [vmem:[#allocation2 + $0x20] sm:$0xff]
    %v3329 = vld [vmem:[#allocation2 + $0x28] sm:$0xff]
    %v3330 = vld [vmem:[#allocation2 + $0x30] sm:$0xff]
    %v3331 = vld [vmem:[#allocation2 + $0x38] sm:$0xff]
    %3332 = vxpose.xlu0.b32.start [1/16] %v3324, 128
    %3333 = vxpose.xlu0.b32.cont [2/16] %v3325, 128
    %3334 = vxpose.xlu0.b32.cont [3/16] %v3326, 128
    %3335 = vxpose.xlu0.b32.cont [4/16] %v3327, 128
    %3336 = vxpose.xlu0.b32.cont [5/16] %v3328, 128
    %3337 = vxpose.xlu0.b32.cont [6/16] %v3329, 128
    %3338 = vxpose.xlu0.b32.cont [7/16] %v3330, 128
    %3339 = vxpose.xlu0.b32.cont [8/16] %v3331, 128
    %3340 = vxpose.xlu0.b32.cont [9/16] 0.0, 128
    %3341 = vxpose.xlu0.b32.cont [10/16] 0.0, 128
    %3342 = vxpose.xlu0.b32.cont [11/16] 0.0, 128
    %3343 = vxpose.xlu0.b32.cont [12/16] 0.0, 128
    %3344 = vxpose.xlu0.b32.cont [13/16] 0.0, 128
    %3345 = vxpose.xlu0.b32.cont [14/16] 0.0, 128
    %3346 = vxpose.xlu0.b32.cont [15/16] 0.0, 128
    %3347 = vxpose.xlu0.b32.end [16/16] 0.0, 128
    %v3348 = vpop.trf.xlu0
    %v3349 = vpop.trf.xlu0
    %v3350 = vpop.trf.xlu0
    %v3351 = vpop.trf.xlu0
    %v3352 = vpop.trf.xlu0
    %v3353 = vpop.trf.xlu0
    %v3354 = vpop.trf.xlu0
    %v3355 = vpop.trf.xlu0
    %v3356 = vpop.trf.xlu0
    %v3357 = vpop.trf.xlu0
    %v3358 = vpop.trf.xlu0
    %v3359 = vpop.trf.xlu0
    %v3360 = vpop.trf.xlu0
    %v3361 = vpop.trf.xlu0
    %v3362 = vpop.trf.xlu0
    %v3363 = vpop.trf.xlu0
    %v3364 = vld [vmem:[%s1] sm:$0xff]
    %v3365 = vld [vmem:[%s1 + $0x8] sm:$0xff]
    %v3366 = vld [vmem:[%s1 + $0x10] sm:$0xff]
    %v3367 = vld [vmem:[%s1 + $0x18] sm:$0xff]
    %v3368 = vadd.f32 %v3348, %v3364
    %v3369 = vadd.f32 %v3349, %v3365
    %v3370 = vadd.f32 %v3350, %v3366
    %v3371 = vadd.f32 %v3351, %v3367
    %3372 = vst.msk [vmem:[#allocation3] sm:$0xff] %vm526, %v3368
    %3373 = vst.msk [vmem:[#allocation3 + $0x8] sm:$0xff] %vm526, %v3369
    %3374 = vst.msk [vmem:[#allocation3 + $0x10] sm:$0xff] %vm526, %v3370
    %3375 = vst.msk [vmem:[#allocation3 + $0x18] sm:$0xff] %vm526, %v3371
    // Predicated region
    $region18: #{tpu_custom_call.1} parent=1 // pred_check
      _
    $region19: #{tpu_custom_call.1} parent=1 // pred_check_branch
      %3377 = sbr.rel (0) target = $region21
    $region20: #{tpu_custom_call.1} parent=1 // pred_region
      %s3379 = ssub.s32 512, 512
      %3380 = vsyncadd [#allocation4], %s3379
      %s3381 = sshll.u32 [#allocation3], 4
      %s3382 = int_to_ptr.vmem [resolvable:$true] %s3381
      %3387 = dma.vmem_to_hbm [thread:$0]  %s3382, 512, %s4, [#allocation4], 128, 128, 8
    $region21: #{tpu_custom_call.1} parent=1 // pred_fallthru
      _
    // Predicated region
    $region22: #{tpu_custom_call.1} parent=1 // pred_check
      _
    $region23: #{tpu_custom_call.1} parent=1 // pred_check_branch
      %3389 = sbr.rel (0) target = $region25
    $region24: #{tpu_custom_call.1} parent=1 // pred_region
      %3390 = dma.done [#allocation4], 512
    $region25: #{tpu_custom_call.1} parent=1 // pred_fallthru
      _
    %3391 = vsyncpa [#allocation4], 1

</llo_original>
